<compile_context>
chip_gen: v7x
topology: tpu7x:2x2x1
jax: 0.10.0
libtpu: 0.0.40
codegen_flags: <defaults>
</compile_context>

<pallas_src>
import functools

import jax
import jax.numpy as jnp
from jax.experimental import pallas as pl
from jax.experimental.pallas import tpu as pltpu


# ----------------------------------------------------------------------------- kernel
def self_attention_kernel(x_ref, mask_ref, pair_ref, gamma_ref, beta_ref,
                          w8_ref, wscale_ref, bq_ref, wt8_ref, wtscale_ref,
                          out_ref, *, num_head, qkv_dim):
    d = qkv_dim
    H = num_head
    C = H * d

    # --- affine LayerNorm (eps=1e-5), computed once ---
    x = x_ref[...]                                              # (N, C) f32
    mean = jnp.mean(x, axis=-1, keepdims=True)
    xc = x - mean
    var = jnp.mean(xc * xc, axis=-1, keepdims=True)
    xn = xc * jax.lax.rsqrt(var + 1e-5)
    xn = xn * gamma_ref[...] + beta_ref[...]
    xn_bf16 = xn.astype(jnp.bfloat16)                           # (N, C) bf16

    # --- fused projection: int8 weights -> bf16 on the VPU, one MXU pass,
    #     per-column scales applied to the small (N, 4C) activation ---
    w_bf16 = w8_ref[...].astype(jnp.float32).astype(jnp.bfloat16)     # (C, 4C)
    qkvg = jnp.dot(xn_bf16, w_bf16, preferred_element_type=jnp.float32)
    qkvg = qkvg * wscale_ref[...]                               # dequant scales
    q = qkvg[:, 0 * C:1 * C] + bq_ref[...]                      # scaled q bias only
    k = qkvg[:, 1 * C:2 * C]
    v = qkvg[:, 2 * C:3 * C]
    g = qkvg[:, 3 * C:4 * C]

    # --- key mask as a single additive bias (computed once) ---
    mask_bias = jnp.where(mask_ref[...] > 0.5,
                          jnp.float32(0.0), jnp.float32(-1e9))  # (1, N)

    # --- per-head attention (short static unroll, all operands already in VMEM) ---
    heads = []
    for h in range(H):
        qh = q[:, h * d:(h + 1) * d]
        kh = k[:, h * d:(h + 1) * d]
        vh = v[:, h * d:(h + 1) * d]
        gh = g[:, h * d:(h + 1) * d]

        logits = jax.lax.dot_general(qh, kh, (((1,), (1,)), ((), ())),
                                     preferred_element_type=jnp.float32)  # (N, N)
        logits = logits + pair_ref[h] + mask_bias

        m = jnp.max(logits, axis=-1, keepdims=True)
        p = jnp.exp(logits - m)
        p = p * pl.reciprocal(jnp.sum(p, axis=-1, keepdims=True), approx=True)

        head = jnp.dot(p.astype(jnp.bfloat16), vh.astype(jnp.bfloat16),
                       preferred_element_type=jnp.float32)      # (N, d)
        heads.append(head * jax.nn.sigmoid(gh))                 # output gating

    gated = jnp.concatenate(heads, axis=-1).astype(jnp.bfloat16)       # (N, C)

    # --- output projection (int8 weight -> bf16, scales on the (N, C) result) ---
    wt_bf16 = wt8_ref[...].astype(jnp.float32).astype(jnp.bfloat16)    # (C, C)
    out = jnp.dot(gated, wt_bf16, preferred_element_type=jnp.float32)
    out_ref[...] = out * wtscale_ref[...]


# ----------------------------------------------------------------------------- params
def _quantize_per_col(w):
    """Symmetric int8 quantization with a per-output-column f32 scale."""
    amax = jnp.max(jnp.abs(w), axis=0, keepdims=True)           # (1, out)
    scale = jnp.where(amax > 0, amax / 127.0, jnp.float32(1.0))
    w_q = jnp.clip(jnp.round(w / scale), -127, 127).astype(jnp.int8)
    return w_q, scale.astype(jnp.float32)


def prepare_params(params, *, num_head):
    """Pack torch-style (already transposed to (in,out)) weights into a fused
    int8 projection tile with the attention scale / q-bias folded in."""
    C = params["wq_t"].shape[0]
    d = C // num_head
    scale = jnp.float32(1.0 / (float(d) ** 0.5))

    # (C, 4C): [q * 1/sqrt(d) | k | v | gate]
    w_fused = jnp.concatenate(
        [params["wq_t"] * scale, params["wk_t"], params["wv_t"], params["wg_t"]],
        axis=1).astype(jnp.float32)
    w8, w_scale = _quantize_per_col(w_fused)
    wt8, wt_scale = _quantize_per_col(params["wt_t"].astype(jnp.float32))

    return {
        "gamma": params["gamma"].reshape(1, C).astype(jnp.float32),
        "beta": params["beta"].reshape(1, C).astype(jnp.float32),
        "w8": w8,                                   # (C, 4C) int8
        "w_scale": w_scale,                         # (1, 4C) f32
        "bq": (params["bq"] * scale).reshape(1, C).astype(jnp.float32),
        "wt8": wt8,                                 # (C, C) int8
        "wt_scale": wt_scale,                       # (1, C) f32
    }


# ----------------------------------------------------------------------------- wrapper
def self_attention(x, mask, pair_logits, prep, *, num_head):
    N, C = x.shape
    H = num_head
    d = C // H
    kernel = functools.partial(self_attention_kernel, num_head=H, qkv_dim=d)

    inputs = (
        x.astype(jnp.float32),
        mask.reshape(1, N).astype(jnp.float32),
        pair_logits.astype(jnp.float32),
        prep["gamma"],
        prep["beta"],
        prep["w8"],
        prep["w_scale"],
        prep["bq"],
        prep["wt8"],
        prep["wt_scale"],
    )

    grid_spec = pltpu.PrefetchScalarGridSpec(
        num_scalar_prefetch=0,
        grid=(1,),                                   # single step: one big weight DMA
        in_specs=[
            pl.BlockSpec((N, C), lambda i: (0, 0)),           # x
            pl.BlockSpec((1, N), lambda i: (0, 0)),           # key mask
            pl.BlockSpec((H, N, N), lambda i: (0, 0, 0)),     # pair_logits (all heads)
            pl.BlockSpec((1, C), lambda i: (0, 0)),           # gamma
            pl.BlockSpec((1, C), lambda i: (0, 0)),           # beta
            pl.BlockSpec((C, 4 * C), lambda i: (0, 0)),       # fused qkvg W (int8)
            pl.BlockSpec((1, 4 * C), lambda i: (0, 0)),       # per-column scales (f32)
            pl.BlockSpec((1, C), lambda i: (0, 0)),           # scaled q bias (f32)
            pl.BlockSpec((C, C), lambda i: (0, 0)),           # out-proj W (int8)
            pl.BlockSpec((1, C), lambda i: (0, 0)),           # out-proj scales (f32)
        ],
        out_specs=pl.BlockSpec((N, C), lambda i: (0, 0)),
    )

    return pl.pallas_call(
        kernel,
        out_shape=jax.ShapeDtypeStruct((N, C), jnp.float32),
        grid_spec=grid_spec,
        compiler_params=pltpu.CompilerParams(dimension_semantics=("arbitrary",)),
    )(*inputs)


# ----------------------------------------------------------------------------- references
def self_attention_reference_f32(x, mask, pair_logits, params, *, num_head):
    """Pure-JAX f32 reference with the original module semantics."""
    N, C = x.shape
    d = C // num_head
    mean = jnp.mean(x, axis=-1, keepdims=True)
    xc = x - mean
    var = jnp.mean(xc * xc, axis=-1, keepdims=True)
    xn = xc * jax.lax.rsqrt(var + 1e-5)
    xn = xn * params["gamma"][None, :] + params["beta"][None, :]
    q = xn @ params["wq_t"] + params["bq"][None, :]
    k = xn @ params["wk_t"]
    v = xn @ params["wv_t"]
    qh = q.reshape(N, num_head, d).transpose(1, 0, 2) * (1.0 / jnp.sqrt(jnp.float32(d)))
    kh = k.reshape(N, num_head, d).transpose(1, 0, 2)
    vh = v.reshape(N, num_head, d).transpose(1, 0, 2)
    logits = jnp.einsum("hqc,hkc->hqk", qh, kh) + pair_logits
    logits = jnp.where(mask[None, None, :] > 0.5, logits, jnp.float32(-1e9))
    probs = jax.nn.softmax(logits, axis=-1)
    out = jnp.einsum("hqk,hkc->hqc", probs, vh)
    out = out.transpose(1, 0, 2).reshape(N, C)
    out = out * jax.nn.sigmoid(xn @ params["wg_t"])
    return out @ params["wt_t"]


def self_attention_reference_quant(x, mask, pair_logits, prep, *, num_head):
    """Reference that mirrors the kernel's int8/bf16/f32 precision path exactly."""
    N, C = x.shape
    d = C // num_head
    mean = jnp.mean(x, axis=-1, keepdims=True)
    xc = x - mean
    var = jnp.mean(xc * xc, axis=-1, keepdims=True)
    xn = xc * jax.lax.rsqrt(var + 1e-5)
    xn = (xn * prep["gamma"] + prep["beta"]).astype(jnp.bfloat16)

    w = prep["w8"].astype(jnp.float32).astype(jnp.bfloat16)
    qkvg = jnp.dot(xn, w, preferred_element_type=jnp.float32) * prep["w_scale"]
    q = qkvg[:, 0 * C:1 * C] + prep["bq"]
    k = qkvg[:, 1 * C:2 * C]
    v = qkvg[:, 2 * C:3 * C]
    g = qkvg[:, 3 * C:4 * C]
    mask_bias = jnp.where(mask[None, :] > 0.5, jnp.float32(0.0), jnp.float32(-1e9))

    heads = []
    for h in range(num_head):
        qh = q[:, h * d:(h + 1) * d]
        kh = k[:, h * d:(h + 1) * d]
        vh = v[:, h * d:(h + 1) * d]
        gh = g[:, h * d:(h + 1) * d]
        logits = jax.lax.dot_general(qh, kh, (((1,), (1,)), ((), ())),
                                     preferred_element_type=jnp.float32)
        logits = logits + pair_logits[h] + mask_bias
        p = jax.nn.softmax(logits, axis=-1)
        head = jnp.dot(p.astype(jnp.bfloat16), vh.astype(jnp.bfloat16),
                       preferred_element_type=jnp.float32)
        heads.append(head * jax.nn.sigmoid(gh))
    gated = jnp.concatenate(heads, axis=-1).astype(jnp.bfloat16)

    wt = prep["wt8"].astype(jnp.float32).astype(jnp.bfloat16)
    return jnp.dot(gated, wt, preferred_element_type=jnp.float32) * prep["wt_scale"]


# ----------------------------------------------------------------------------- main
if __name__ == "__main__":
    # SelfAttention(c_x=512, num_head=4) -> qkv_dim = 128 (lane aligned); 16 tokens.
    N, C, H = 16, 512, 4

    key = jax.random.PRNGKey(0)
    ks = jax.random.split(key, 12)

    def w(k, shape, scale=0.02):
        return (scale * jax.random.normal(k, shape)).astype(jnp.float32)

    # Torch Linear weight is (out, in); we store the (in, out) transpose so every
    # matmul is x @ W.
    params = {
        "gamma": jnp.ones((C,), jnp.float32),
        "beta": jnp.zeros((C,), jnp.float32),
        "wq_t": w(ks[0], (C, C)),
        "bq": w(ks[1], (C,)),
        "wk_t": w(ks[2], (C, C)),
        "wv_t": w(ks[3], (C, C)),
        "wg_t": w(ks[4], (C, C)),
        "wt_t": w(ks[5], (C, C)),   # AdaLNZero.transition2 (no bias)
    }

    x = jax.random.normal(ks[6], (N, C), jnp.float32)
    mask = (jax.random.uniform(ks[7], (N,)) > 0.2).astype(jnp.float32)
    mask = mask.at[0].set(1.0)  # keep at least one valid key
    pair_logits = w(ks[8], (H, N, N), scale=0.1)

    prep = prepare_params(params, num_head=H)

    out = self_attention(x, mask, pair_logits, prep, num_head=H)
    out = jax.block_until_ready(out)
    assert out.shape == (N, C)

    # Strict check against a reference that uses the same int8/bf16 precision path.
    ref_q = self_attention_reference_quant(x, mask, pair_logits, prep, num_head=H)
    err_strict = float(jnp.max(jnp.abs(out - ref_q)))
    assert jnp.allclose(out, ref_q, atol=3e-3, rtol=2e-2), err_strict

    # Loose check against the full-f32 module semantics (bounds int8+bf16 quantization).
    ref_f32 = self_attention_reference_f32(x, mask, pair_logits, params, num_head=H)
    err_loose = float(jnp.max(jnp.abs(out - ref_f32)))
    assert jnp.allclose(out, ref_f32, atol=1e-2, rtol=5e-2), err_loose

    print("KERNEL_OK")
</pallas_src>

<mosaic_0001>
module attributes {stable_mosaic.version = 11 : i64} {
  func.func @self_attention_kernel(%arg0: i32, %arg1: memref<16x512xf32, #tpu.memory_space<vmem>>, %arg2: memref<1x16xf32, #tpu.memory_space<vmem>>, %arg3: memref<4x16x16xf32, #tpu.memory_space<vmem>>, %arg4: memref<1x512xf32, #tpu.memory_space<vmem>>, %arg5: memref<1x512xf32, #tpu.memory_space<vmem>>, %arg6: memref<512x2048xi8, #tpu.memory_space<vmem>>, %arg7: memref<1x2048xf32, #tpu.memory_space<vmem>>, %arg8: memref<1x512xf32, #tpu.memory_space<vmem>>, %arg9: memref<512x512xi8, #tpu.memory_space<vmem>>, %arg10: memref<1x512xf32, #tpu.memory_space<vmem>>, %arg11: memref<16x512xf32, #tpu.memory_space<vmem>>) attributes {dimension_semantics = [#tpu.dimension_semantics<arbitrary>], iteration_bounds = array<i64: 1>, scalar_prefetch = 0 : i64, scratch_operands = 0 : i64, tpu.core_type = #tpu.core_type<tc>, window_params = [{pipeline_mode = #tpu.pipeline_mode<synchronous>, transform_indices = @transform_0, window_bounds = array<i64: 16, 512>}, {pipeline_mode = #tpu.pipeline_mode<synchronous>, transform_indices = @transform_1, window_bounds = array<i64: 1, 16>}, {pipeline_mode = #tpu.pipeline_mode<synchronous>, transform_indices = @transform_2, window_bounds = array<i64: 4, 16, 16>}, {pipeline_mode = #tpu.pipeline_mode<synchronous>, transform_indices = @transform_3, window_bounds = array<i64: 1, 512>}, {pipeline_mode = #tpu.pipeline_mode<synchronous>, transform_indices = @transform_4, window_bounds = array<i64: 1, 512>}, {pipeline_mode = #tpu.pipeline_mode<synchronous>, transform_indices = @transform_5, window_bounds = array<i64: 512, 2048>}, {pipeline_mode = #tpu.pipeline_mode<synchronous>, transform_indices = @transform_6, window_bounds = array<i64: 1, 2048>}, {pipeline_mode = #tpu.pipeline_mode<synchronous>, transform_indices = @transform_7, window_bounds = array<i64: 1, 512>}, {pipeline_mode = #tpu.pipeline_mode<synchronous>, transform_indices = @transform_8, window_bounds = array<i64: 512, 512>}, {pipeline_mode = #tpu.pipeline_mode<synchronous>, transform_indices = @transform_9, window_bounds = array<i64: 1, 512>}, {pipeline_mode = #tpu.pipeline_mode<synchronous>, transform_indices = @transform_10, window_bounds = array<i64: 16, 512>}]} {
    %c0 = arith.constant 0 : index
    %c0_0 = arith.constant 0 : index
    %0 = vector.load %arg1[%c0, %c0_0] : memref<16x512xf32, #tpu.memory_space<vmem>>, vector<16x512xf32>
    %cst = arith.constant dense<0.000000e+00> : vector<16xf32>
    %1 = vector.multi_reduction <add>, %0, %cst [1] : vector<16x512xf32> to vector<16xf32>
    %2 = vector.shape_cast %1 : vector<16xf32> to vector<16x1xf32>
    %cst_1 = arith.constant 5.120000e+02 : f32
    %3 = vector.broadcast %cst_1 : f32 to vector<16x1xf32>
    %4 = arith.divf %2, %3 : vector<16x1xf32>
    %5 = vector.broadcast %4 : vector<16x1xf32> to vector<16x512xf32>
    %6 = arith.subf %0, %5 : vector<16x512xf32>
    %7 = arith.mulf %6, %6 : vector<16x512xf32>
    %cst_2 = arith.constant dense<0.000000e+00> : vector<16xf32>
    %8 = vector.multi_reduction <add>, %7, %cst_2 [1] : vector<16x512xf32> to vector<16xf32>
    %9 = vector.shape_cast %8 : vector<16xf32> to vector<16x1xf32>
    %cst_3 = arith.constant 5.120000e+02 : f32
    %10 = vector.broadcast %cst_3 : f32 to vector<16x1xf32>
    %11 = arith.divf %9, %10 : vector<16x1xf32>
    %cst_4 = arith.constant 9.99999974E-6 : f32
    %12 = vector.broadcast %cst_4 : f32 to vector<16x1xf32>
    %13 = arith.addf %11, %12 : vector<16x1xf32>
    %14 = math.rsqrt %13 : vector<16x1xf32>
    %15 = vector.broadcast %14 : vector<16x1xf32> to vector<16x512xf32>
    %16 = arith.mulf %6, %15 : vector<16x512xf32>
    %c0_5 = arith.constant 0 : index
    %c0_6 = arith.constant 0 : index
    %17 = vector.load %arg4[%c0_5, %c0_6] : memref<1x512xf32, #tpu.memory_space<vmem>>, vector<1x512xf32>
    %18 = vector.broadcast %17 : vector<1x512xf32> to vector<16x512xf32>
    %19 = arith.mulf %16, %18 : vector<16x512xf32>
    %c0_7 = arith.constant 0 : index
    %c0_8 = arith.constant 0 : index
    %20 = vector.load %arg5[%c0_7, %c0_8] : memref<1x512xf32, #tpu.memory_space<vmem>>, vector<1x512xf32>
    %21 = vector.broadcast %20 : vector<1x512xf32> to vector<16x512xf32>
    %22 = arith.addf %19, %21 : vector<16x512xf32>
    %23 = arith.truncf %22 : vector<16x512xf32> to vector<16x512xbf16>
    %c0_9 = arith.constant 0 : index
    %c0_10 = arith.constant 0 : index
    %24 = vector.load %arg6[%c0_9, %c0_10] : memref<512x2048xi8, #tpu.memory_space<vmem>>, vector<512x2048xi8>
    %25 = arith.sitofp %24 : vector<512x2048xi8> to vector<512x2048xf32>
    %26 = arith.truncf %25 : vector<512x2048xf32> to vector<512x2048xbf16>
    %cst_11 = arith.constant dense<0.000000e+00> : vector<16x2048xf32>
    %27 = tpu.matmul %23, %26, %cst_11 {dimension_numbers = #tpu.dot_dimension_numbers<[1], [0], [0], [1], [0, 0, 1, 1], [], []>} : vector<16x512xbf16>, vector<512x2048xbf16>, vector<16x2048xf32> -> vector<16x2048xf32>
    %c0_12 = arith.constant 0 : index
    %c0_13 = arith.constant 0 : index
    %28 = vector.load %arg7[%c0_12, %c0_13] : memref<1x2048xf32, #tpu.memory_space<vmem>>, vector<1x2048xf32>
    %29 = vector.broadcast %28 : vector<1x2048xf32> to vector<16x2048xf32>
    %30 = arith.mulf %27, %29 : vector<16x2048xf32>
    %31 = vector.extract_strided_slice %30 {offsets = [0, 0], sizes = [16, 512], strides = [1, 1]} : vector<16x2048xf32> to vector<16x512xf32>
    %c0_14 = arith.constant 0 : index
    %c0_15 = arith.constant 0 : index
    %32 = vector.load %arg8[%c0_14, %c0_15] : memref<1x512xf32, #tpu.memory_space<vmem>>, vector<1x512xf32>
    %33 = vector.broadcast %32 : vector<1x512xf32> to vector<16x512xf32>
    %34 = arith.addf %31, %33 : vector<16x512xf32>
    %35 = vector.extract_strided_slice %30 {offsets = [0, 512], sizes = [16, 512], strides = [1, 1]} : vector<16x2048xf32> to vector<16x512xf32>
    %36 = vector.extract_strided_slice %30 {offsets = [0, 1024], sizes = [16, 512], strides = [1, 1]} : vector<16x2048xf32> to vector<16x512xf32>
    %37 = vector.extract_strided_slice %30 {offsets = [0, 1536], sizes = [16, 512], strides = [1, 1]} : vector<16x2048xf32> to vector<16x512xf32>
    %c0_16 = arith.constant 0 : index
    %c0_17 = arith.constant 0 : index
    %38 = vector.load %arg2[%c0_16, %c0_17] : memref<1x16xf32, #tpu.memory_space<vmem>>, vector<1x16xf32>
    %cst_18 = arith.constant 5.000000e-01 : f32
    %39 = vector.broadcast %cst_18 : f32 to vector<1x16xf32>
    %40 = arith.cmpf ogt, %38, %39 : vector<1x16xf32>
    %cst_19 = arith.constant 0.000000e+00 : f32
    %cst_20 = arith.constant -1.000000e+09 : f32
    %41 = vector.broadcast %cst_19 : f32 to vector<1x16xf32>
    %42 = vector.broadcast %cst_20 : f32 to vector<1x16xf32>
    %43 = arith.select %40, %41, %42 : vector<1x16xi1>, vector<1x16xf32>
    %44 = vector.extract_strided_slice %34 {offsets = [0, 0], sizes = [16, 128], strides = [1, 1]} : vector<16x512xf32> to vector<16x128xf32>
    %45 = vector.extract_strided_slice %35 {offsets = [0, 0], sizes = [16, 128], strides = [1, 1]} : vector<16x512xf32> to vector<16x128xf32>
    %46 = vector.extract_strided_slice %36 {offsets = [0, 0], sizes = [16, 128], strides = [1, 1]} : vector<16x512xf32> to vector<16x128xf32>
    %47 = vector.extract_strided_slice %37 {offsets = [0, 0], sizes = [16, 128], strides = [1, 1]} : vector<16x512xf32> to vector<16x128xf32>
    %cst_21 = arith.constant dense<0.000000e+00> : vector<16x16xf32>
    %48 = tpu.matmul %44, %45, %cst_21 {dimension_numbers = #tpu.dot_dimension_numbers<[1], [1], [0], [0], [0, 0, 1, 0], [], []>} : vector<16x128xf32>, vector<16x128xf32>, vector<16x16xf32> -> vector<16x16xf32>
    %c0_22 = arith.constant 0 : index
    %c0_23 = arith.constant 0 : index
    %c0_24 = arith.constant 0 : index
    %49 = vector.load %arg3[%c0_22, %c0_23, %c0_24] : memref<4x16x16xf32, #tpu.memory_space<vmem>>, vector<1x16x16xf32>
    %50 = vector.shape_cast %49 : vector<1x16x16xf32> to vector<16x16xf32>
    %51 = arith.addf %48, %50 : vector<16x16xf32>
    %52 = vector.broadcast %43 : vector<1x16xf32> to vector<16x16xf32>
    %53 = arith.addf %51, %52 : vector<16x16xf32>
    %cst_25 = arith.constant dense<0xFF800000> : vector<16xf32>
    %54 = vector.multi_reduction <maximumf>, %53, %cst_25 [1] : vector<16x16xf32> to vector<16xf32>
    %55 = vector.shape_cast %54 : vector<16xf32> to vector<16x1xf32>
    %56 = vector.broadcast %55 : vector<16x1xf32> to vector<16x16xf32>
    %57 = arith.subf %53, %56 : vector<16x16xf32>
    %58 = math.exp %57 : vector<16x16xf32>
    %cst_26 = arith.constant dense<0.000000e+00> : vector<16xf32>
    %59 = vector.multi_reduction <add>, %58, %cst_26 [1] : vector<16x16xf32> to vector<16xf32>
    %60 = vector.shape_cast %59 : vector<16xf32> to vector<16x1xf32>
    %61 = tpu.reciprocal %60 {approx = true} : vector<16x1xf32> -> vector<16x1xf32>
    %62 = vector.broadcast %61 : vector<16x1xf32> to vector<16x16xf32>
    %63 = arith.mulf %58, %62 : vector<16x16xf32>
    %64 = arith.truncf %63 : vector<16x16xf32> to vector<16x16xbf16>
    %65 = arith.truncf %46 : vector<16x128xf32> to vector<16x128xbf16>
    %cst_27 = arith.constant dense<0.000000e+00> : vector<16x128xf32>
    %66 = tpu.matmul %64, %65, %cst_27 {dimension_numbers = #tpu.dot_dimension_numbers<[1], [0], [0], [1], [0, 0, 1, 1], [], []>} : vector<16x16xbf16>, vector<16x128xbf16>, vector<16x128xf32> -> vector<16x128xf32>
    %67 = arith.negf %47 : vector<16x128xf32>
    %68 = math.exp %67 : vector<16x128xf32>
    %cst_28 = arith.constant 1.000000e+00 : f32
    %69 = vector.broadcast %cst_28 : f32 to vector<16x128xf32>
    %70 = arith.addf %69, %68 : vector<16x128xf32>
    %71 = arith.divf %69, %70 : vector<16x128xf32>
    %72 = arith.mulf %66, %71 : vector<16x128xf32>
    %73 = vector.extract_strided_slice %34 {offsets = [0, 128], sizes = [16, 128], strides = [1, 1]} : vector<16x512xf32> to vector<16x128xf32>
    %74 = vector.extract_strided_slice %35 {offsets = [0, 128], sizes = [16, 128], strides = [1, 1]} : vector<16x512xf32> to vector<16x128xf32>
    %75 = vector.extract_strided_slice %36 {offsets = [0, 128], sizes = [16, 128], strides = [1, 1]} : vector<16x512xf32> to vector<16x128xf32>
    %76 = vector.extract_strided_slice %37 {offsets = [0, 128], sizes = [16, 128], strides = [1, 1]} : vector<16x512xf32> to vector<16x128xf32>
    %cst_29 = arith.constant dense<0.000000e+00> : vector<16x16xf32>
    %77 = tpu.matmul %73, %74, %cst_29 {dimension_numbers = #tpu.dot_dimension_numbers<[1], [1], [0], [0], [0, 0, 1, 0], [], []>} : vector<16x128xf32>, vector<16x128xf32>, vector<16x16xf32> -> vector<16x16xf32>
    %c1 = arith.constant 1 : index
    %c0_30 = arith.constant 0 : index
    %c0_31 = arith.constant 0 : index
    %78 = vector.load %arg3[%c1, %c0_30, %c0_31] : memref<4x16x16xf32, #tpu.memory_space<vmem>>, vector<1x16x16xf32>
    %79 = vector.shape_cast %78 : vector<1x16x16xf32> to vector<16x16xf32>
    %80 = arith.addf %77, %79 : vector<16x16xf32>
    %81 = vector.broadcast %43 : vector<1x16xf32> to vector<16x16xf32>
    %82 = arith.addf %80, %81 : vector<16x16xf32>
    %cst_32 = arith.constant dense<0xFF800000> : vector<16xf32>
    %83 = vector.multi_reduction <maximumf>, %82, %cst_32 [1] : vector<16x16xf32> to vector<16xf32>
    %84 = vector.shape_cast %83 : vector<16xf32> to vector<16x1xf32>
    %85 = vector.broadcast %84 : vector<16x1xf32> to vector<16x16xf32>
    %86 = arith.subf %82, %85 : vector<16x16xf32>
    %87 = math.exp %86 : vector<16x16xf32>
    %cst_33 = arith.constant dense<0.000000e+00> : vector<16xf32>
    %88 = vector.multi_reduction <add>, %87, %cst_33 [1] : vector<16x16xf32> to vector<16xf32>
    %89 = vector.shape_cast %88 : vector<16xf32> to vector<16x1xf32>
    %90 = tpu.reciprocal %89 {approx = true} : vector<16x1xf32> -> vector<16x1xf32>
    %91 = vector.broadcast %90 : vector<16x1xf32> to vector<16x16xf32>
    %92 = arith.mulf %87, %91 : vector<16x16xf32>
    %93 = arith.truncf %92 : vector<16x16xf32> to vector<16x16xbf16>
    %94 = arith.truncf %75 : vector<16x128xf32> to vector<16x128xbf16>
    %cst_34 = arith.constant dense<0.000000e+00> : vector<16x128xf32>
    %95 = tpu.matmul %93, %94, %cst_34 {dimension_numbers = #tpu.dot_dimension_numbers<[1], [0], [0], [1], [0, 0, 1, 1], [], []>} : vector<16x16xbf16>, vector<16x128xbf16>, vector<16x128xf32> -> vector<16x128xf32>
    %96 = arith.negf %76 : vector<16x128xf32>
    %97 = math.exp %96 : vector<16x128xf32>
    %cst_35 = arith.constant 1.000000e+00 : f32
    %98 = vector.broadcast %cst_35 : f32 to vector<16x128xf32>
    %99 = arith.addf %98, %97 : vector<16x128xf32>
    %100 = arith.divf %98, %99 : vector<16x128xf32>
    %101 = arith.mulf %95, %100 : vector<16x128xf32>
    %102 = vector.extract_strided_slice %34 {offsets = [0, 256], sizes = [16, 128], strides = [1, 1]} : vector<16x512xf32> to vector<16x128xf32>
    %103 = vector.extract_strided_slice %35 {offsets = [0, 256], sizes = [16, 128], strides = [1, 1]} : vector<16x512xf32> to vector<16x128xf32>
    %104 = vector.extract_strided_slice %36 {offsets = [0, 256], sizes = [16, 128], strides = [1, 1]} : vector<16x512xf32> to vector<16x128xf32>
    %105 = vector.extract_strided_slice %37 {offsets = [0, 256], sizes = [16, 128], strides = [1, 1]} : vector<16x512xf32> to vector<16x128xf32>
    %cst_36 = arith.constant dense<0.000000e+00> : vector<16x16xf32>
    %106 = tpu.matmul %102, %103, %cst_36 {dimension_numbers = #tpu.dot_dimension_numbers<[1], [1], [0], [0], [0, 0, 1, 0], [], []>} : vector<16x128xf32>, vector<16x128xf32>, vector<16x16xf32> -> vector<16x16xf32>
    %c2 = arith.constant 2 : index
    %c0_37 = arith.constant 0 : index
    %c0_38 = arith.constant 0 : index
    %107 = vector.load %arg3[%c2, %c0_37, %c0_38] : memref<4x16x16xf32, #tpu.memory_space<vmem>>, vector<1x16x16xf32>
    %108 = vector.shape_cast %107 : vector<1x16x16xf32> to vector<16x16xf32>
    %109 = arith.addf %106, %108 : vector<16x16xf32>
    %110 = vector.broadcast %43 : vector<1x16xf32> to vector<16x16xf32>
    %111 = arith.addf %109, %110 : vector<16x16xf32>
    %cst_39 = arith.constant dense<0xFF800000> : vector<16xf32>
    %112 = vector.multi_reduction <maximumf>, %111, %cst_39 [1] : vector<16x16xf32> to vector<16xf32>
    %113 = vector.shape_cast %112 : vector<16xf32> to vector<16x1xf32>
    %114 = vector.broadcast %113 : vector<16x1xf32> to vector<16x16xf32>
    %115 = arith.subf %111, %114 : vector<16x16xf32>
    %116 = math.exp %115 : vector<16x16xf32>
    %cst_40 = arith.constant dense<0.000000e+00> : vector<16xf32>
    %117 = vector.multi_reduction <add>, %116, %cst_40 [1] : vector<16x16xf32> to vector<16xf32>
    %118 = vector.shape_cast %117 : vector<16xf32> to vector<16x1xf32>
    %119 = tpu.reciprocal %118 {approx = true} : vector<16x1xf32> -> vector<16x1xf32>
    %120 = vector.broadcast %119 : vector<16x1xf32> to vector<16x16xf32>
    %121 = arith.mulf %116, %120 : vector<16x16xf32>
    %122 = arith.truncf %121 : vector<16x16xf32> to vector<16x16xbf16>
    %123 = arith.truncf %104 : vector<16x128xf32> to vector<16x128xbf16>
    %cst_41 = arith.constant dense<0.000000e+00> : vector<16x128xf32>
    %124 = tpu.matmul %122, %123, %cst_41 {dimension_numbers = #tpu.dot_dimension_numbers<[1], [0], [0], [1], [0, 0, 1, 1], [], []>} : vector<16x16xbf16>, vector<16x128xbf16>, vector<16x128xf32> -> vector<16x128xf32>
    %125 = arith.negf %105 : vector<16x128xf32>
    %126 = math.exp %125 : vector<16x128xf32>
    %cst_42 = arith.constant 1.000000e+00 : f32
    %127 = vector.broadcast %cst_42 : f32 to vector<16x128xf32>
    %128 = arith.addf %127, %126 : vector<16x128xf32>
    %129 = arith.divf %127, %128 : vector<16x128xf32>
    %130 = arith.mulf %124, %129 : vector<16x128xf32>
    %131 = vector.extract_strided_slice %34 {offsets = [0, 384], sizes = [16, 128], strides = [1, 1]} : vector<16x512xf32> to vector<16x128xf32>
    %132 = vector.extract_strided_slice %35 {offsets = [0, 384], sizes = [16, 128], strides = [1, 1]} : vector<16x512xf32> to vector<16x128xf32>
    %133 = vector.extract_strided_slice %36 {offsets = [0, 384], sizes = [16, 128], strides = [1, 1]} : vector<16x512xf32> to vector<16x128xf32>
    %134 = vector.extract_strided_slice %37 {offsets = [0, 384], sizes = [16, 128], strides = [1, 1]} : vector<16x512xf32> to vector<16x128xf32>
    %cst_43 = arith.constant dense<0.000000e+00> : vector<16x16xf32>
    %135 = tpu.matmul %131, %132, %cst_43 {dimension_numbers = #tpu.dot_dimension_numbers<[1], [1], [0], [0], [0, 0, 1, 0], [], []>} : vector<16x128xf32>, vector<16x128xf32>, vector<16x16xf32> -> vector<16x16xf32>
    %c3 = arith.constant 3 : index
    %c0_44 = arith.constant 0 : index
    %c0_45 = arith.constant 0 : index
    %136 = vector.load %arg3[%c3, %c0_44, %c0_45] : memref<4x16x16xf32, #tpu.memory_space<vmem>>, vector<1x16x16xf32>
    %137 = vector.shape_cast %136 : vector<1x16x16xf32> to vector<16x16xf32>
    %138 = arith.addf %135, %137 : vector<16x16xf32>
    %139 = vector.broadcast %43 : vector<1x16xf32> to vector<16x16xf32>
    %140 = arith.addf %138, %139 : vector<16x16xf32>
    %cst_46 = arith.constant dense<0xFF800000> : vector<16xf32>
    %141 = vector.multi_reduction <maximumf>, %140, %cst_46 [1] : vector<16x16xf32> to vector<16xf32>
    %142 = vector.shape_cast %141 : vector<16xf32> to vector<16x1xf32>
    %143 = vector.broadcast %142 : vector<16x1xf32> to vector<16x16xf32>
    %144 = arith.subf %140, %143 : vector<16x16xf32>
    %145 = math.exp %144 : vector<16x16xf32>
    %cst_47 = arith.constant dense<0.000000e+00> : vector<16xf32>
    %146 = vector.multi_reduction <add>, %145, %cst_47 [1] : vector<16x16xf32> to vector<16xf32>
    %147 = vector.shape_cast %146 : vector<16xf32> to vector<16x1xf32>
    %148 = tpu.reciprocal %147 {approx = true} : vector<16x1xf32> -> vector<16x1xf32>
    %149 = vector.broadcast %148 : vector<16x1xf32> to vector<16x16xf32>
    %150 = arith.mulf %145, %149 : vector<16x16xf32>
    %151 = arith.truncf %150 : vector<16x16xf32> to vector<16x16xbf16>
    %152 = arith.truncf %133 : vector<16x128xf32> to vector<16x128xbf16>
    %cst_48 = arith.constant dense<0.000000e+00> : vector<16x128xf32>
    %153 = tpu.matmul %151, %152, %cst_48 {dimension_numbers = #tpu.dot_dimension_numbers<[1], [0], [0], [1], [0, 0, 1, 1], [], []>} : vector<16x16xbf16>, vector<16x128xbf16>, vector<16x128xf32> -> vector<16x128xf32>
    %154 = arith.negf %134 : vector<16x128xf32>
    %155 = math.exp %154 : vector<16x128xf32>
    %cst_49 = arith.constant 1.000000e+00 : f32
    %156 = vector.broadcast %cst_49 : f32 to vector<16x128xf32>
    %157 = arith.addf %156, %155 : vector<16x128xf32>
    %158 = arith.divf %156, %157 : vector<16x128xf32>
    %159 = arith.mulf %153, %158 : vector<16x128xf32>
    %160 = tpu.concatenate %72, %101, %130, %159 in 1 : vector<16x128xf32>, vector<16x128xf32>, vector<16x128xf32>, vector<16x128xf32> -> vector<16x512xf32>
    %161 = arith.truncf %160 : vector<16x512xf32> to vector<16x512xbf16>
    %c0_50 = arith.constant 0 : index
    %c0_51 = arith.constant 0 : index
    %162 = vector.load %arg9[%c0_50, %c0_51] : memref<512x512xi8, #tpu.memory_space<vmem>>, vector<512x512xi8>
    %163 = arith.sitofp %162 : vector<512x512xi8> to vector<512x512xf32>
    %164 = arith.truncf %163 : vector<512x512xf32> to vector<512x512xbf16>
    %cst_52 = arith.constant dense<0.000000e+00> : vector<16x512xf32>
    %165 = tpu.matmul %161, %164, %cst_52 {dimension_numbers = #tpu.dot_dimension_numbers<[1], [0], [0], [1], [0, 0, 1, 1], [], []>} : vector<16x512xbf16>, vector<512x512xbf16>, vector<16x512xf32> -> vector<16x512xf32>
    %c0_53 = arith.constant 0 : index
    %c0_54 = arith.constant 0 : index
    %166 = vector.load %arg10[%c0_53, %c0_54] : memref<1x512xf32, #tpu.memory_space<vmem>>, vector<1x512xf32>
    %167 = vector.broadcast %166 : vector<1x512xf32> to vector<16x512xf32>
    %168 = arith.mulf %165, %167 : vector<16x512xf32>
    %c0_55 = arith.constant 0 : index
    %c0_56 = arith.constant 0 : index
    %169 = vector.load %arg11[%c0_55, %c0_56] : memref<16x512xf32, #tpu.memory_space<vmem>>, vector<16x512xf32>
    tpu.vector_store %arg11[%c0_55, %c0_56], %168 {strides = array<i32>} : memref<16x512xf32, #tpu.memory_space<vmem>>, vector<16x512xf32>,
    return
  }
  func.func @transform_0(%arg0: i32) -> (i32, i32) {
    %c0_i32 = arith.constant 0 : i32
    %c0_i32_0 = arith.constant 0 : i32
    %c0_i32_1 = arith.constant 0 : i32
    return %c0_i32, %c0_i32_0 : i32, i32
  }
  func.func @transform_1(%arg0: i32) -> (i32, i32) {
    %c0_i32 = arith.constant 0 : i32
    %c0_i32_0 = arith.constant 0 : i32
    %c0_i32_1 = arith.constant 0 : i32
    return %c0_i32, %c0_i32_0 : i32, i32
  }
  func.func @transform_2(%arg0: i32) -> (i32, i32, i32) {
    %c0_i32 = arith.constant 0 : i32
    %c0_i32_0 = arith.constant 0 : i32
    %c0_i32_1 = arith.constant 0 : i32
    %c0_i32_2 = arith.constant 0 : i32
    return %c0_i32, %c0_i32_0, %c0_i32_1 : i32, i32, i32
  }
  func.func @transform_3(%arg0: i32) -> (i32, i32) {
    %c0_i32 = arith.constant 0 : i32
    %c0_i32_0 = arith.constant 0 : i32
    %c0_i32_1 = arith.constant 0 : i32
    return %c0_i32, %c0_i32_0 : i32, i32
  }
  func.func @transform_4(%arg0: i32) -> (i32, i32) {
    %c0_i32 = arith.constant 0 : i32
    %c0_i32_0 = arith.constant 0 : i32
    %c0_i32_1 = arith.constant 0 : i32
    return %c0_i32, %c0_i32_0 : i32, i32
  }
  func.func @transform_5(%arg0: i32) -> (i32, i32) {
    %c0_i32 = arith.constant 0 : i32
    %c0_i32_0 = arith.constant 0 : i32
    %c0_i32_1 = arith.constant 0 : i32
    return %c0_i32, %c0_i32_0 : i32, i32
  }
  func.func @transform_6(%arg0: i32) -> (i32, i32) {
    %c0_i32 = arith.constant 0 : i32
    %c0_i32_0 = arith.constant 0 : i32
    %c0_i32_1 = arith.constant 0 : i32
    return %c0_i32, %c0_i32_0 : i32, i32
  }
  func.func @transform_7(%arg0: i32) -> (i32, i32) {
    %c0_i32 = arith.constant 0 : i32
    %c0_i32_0 = arith.constant 0 : i32
    %c0_i32_1 = arith.constant 0 : i32
    return %c0_i32, %c0_i32_0 : i32, i32
  }
  func.func @transform_8(%arg0: i32) -> (i32, i32) {
    %c0_i32 = arith.constant 0 : i32
    %c0_i32_0 = arith.constant 0 : i32
    %c0_i32_1 = arith.constant 0 : i32
    return %c0_i32, %c0_i32_0 : i32, i32
  }
  func.func @transform_9(%arg0: i32) -> (i32, i32) {
    %c0_i32 = arith.constant 0 : i32
    %c0_i32_0 = arith.constant 0 : i32
    %c0_i32_1 = arith.constant 0 : i32
    return %c0_i32, %c0_i32_0 : i32, i32
  }
  func.func @transform_10(%arg0: i32) -> (i32, i32) {
    %c0_i32 = arith.constant 0 : i32
    %c0_i32_0 = arith.constant 0 : i32
    %c0_i32_1 = arith.constant 0 : i32
    return %c0_i32, %c0_i32_0 : i32, i32
  }
}

</mosaic_0001>

<llo_original>
// kernel: tpu_custom_call.1
$region0: #{tpu_custom_call.1}
  #allocation0 [shape = 'u32[]', space=smem, size = 0x4, offset = 0x4, fixed_abs, tag = 'smem constant byte address 0x4 - core index']
  #allocation1 [shape = 'u32[144,128]{1,0:T(1,128)}', space=vmem, size = 0x12000, scoped, tag = 'internal scratch']
  %s0 = inlined_call_operand.hbm [shape: f32[16,512], index: 0, kind: input, shape index: {}]
  %s1 = inlined_call_operand.vmem [shape: f32[1,16], index: 1, kind: input, shape index: {}]
  %s2 = inlined_call_operand.hbm [shape: f32[4,16,16], index: 2, kind: input, shape index: {}]
  %s3 = inlined_call_operand.vmem [shape: f32[1,512], index: 3, kind: input, shape index: {}]
  %s4 = inlined_call_operand.hbm [shape: f32[1,512], index: 4, kind: input, shape index: {}]
  %s5 = inlined_call_operand.hbm [shape: s8[512,2048], index: 5, kind: input, shape index: {}]
  %s6 = inlined_call_operand.vmem [shape: f32[1,2048], index: 6, kind: input, shape index: {}]
  %s7 = inlined_call_operand.vmem [shape: f32[1,512], index: 7, kind: input, shape index: {}]
  %s8 = inlined_call_operand.hbm [shape: s8[512,512], index: 8, kind: input, shape index: {}]
  %s9 = inlined_call_operand.vmem [shape: f32[1,512], index: 9, kind: input, shape index: {}]
  %s10 = inlined_call_operand.hbm [shape: f32[16,512], index: 10, kind: output, shape index: {}]
  %s11 = sld [smem:[#allocation0]]
  $region70: #{tpu_custom_call.1} parent=0
    _
  %s13 = ssub.s32 1, %s11
  %s14 = scalar_select 0, %s13, %s11
  $region1: #{tpu_custom_call.1} parent=0
    #allocation2 [shape = 'u8[32768]{0}', space=vmem, size = 0x8000, scoped, tag = 'input window, operand 0, single buffered']
    #allocation3 [shape = 's32[1]{0}', space=sflag, size = 0x4, scoped, tag = 'scoped memory for tpu_custom_call.1']
    #allocation4 [shape = 's32[1]{0}', space=sflag, size = 0x4, scoped, tag = 'scoped memory for tpu_custom_call.1']
    #allocation5 [shape = 'u8[32768]{0}', space=vmem, size = 0x8000, scoped, tag = 'input window, operand 2, single buffered']
    #allocation6 [shape = 's32[1]{0}', space=sflag, size = 0x4, scoped, tag = 'scoped memory for tpu_custom_call.1']
    #allocation7 [shape = 'u8[2048]{0}', space=vmem, size = 0x800, scoped, tag = 'input window, operand 4, single buffered']
    #allocation8 [shape = 'u8[1048576]{0}', space=vmem, size = 0x100000, scoped, tag = 'input window, operand 5, single buffered']
    #allocation9 [shape = 's32[1]{0}', space=sflag, size = 0x4, scoped, tag = 'scoped memory for tpu_custom_call.1']
    #allocation10 [shape = 'u8[262144]{0}', space=vmem, size = 0x40000, scoped, tag = 'input window, operand 8, single buffered']
    #allocation11 [shape = 'u8[32768]{0}', space=vmem, size = 0x8000, scoped, tag = 'output window, operand 0, single buffered']
    %15 = vsyncpa [#allocation3], 0
    %16 = vsyncpa [#allocation6], 0
    %17 = vsyncpa [#allocation9], 0
    %18 = vsyncpa [#allocation4], 0
    // Predicated region
    $region2: #{tpu_custom_call.1} parent=1 // pred_check
      _
    $region3: #{tpu_custom_call.1} parent=1 // pred_check_branch
      %20 = sbr.rel (0) target = $region5
    $region4: #{tpu_custom_call.1} parent=1 // pred_region
      %s22 = ssub.s32 1024, 1024
      %23 = vsyncadd [#allocation3], %s22
      %s24 = sshll.u32 [#allocation2], 4
      %s25 = int_to_ptr.vmem [resolvable:$true] %s24
      %30 = dma.hbm_to_vmem [thread:$0]  %s0, 1024, %s25, [#allocation3], 512, 512, 32
    $region5: #{tpu_custom_call.1} parent=1 // pred_fallthru
      _
    // Predicated region
    $region6: #{tpu_custom_call.1} parent=1 // pred_check
      _
    $region7: #{tpu_custom_call.1} parent=1 // pred_check_branch
      %32 = sbr.rel (0) target = $region9
    $region8: #{tpu_custom_call.1} parent=1 // pred_region
      _
    $region9: #{tpu_custom_call.1} parent=1 // pred_fallthru
      _
    // Predicated region
    $region10: #{tpu_custom_call.1} parent=1 // pred_check
      _
    $region11: #{tpu_custom_call.1} parent=1 // pred_check_branch
      %34 = sbr.rel (0) target = $region13
    $region12: #{tpu_custom_call.1} parent=1 // pred_region
      %s36 = ssub.s32 1024, 1024
      %37 = vsyncadd [#allocation6], %s36
      %s38 = sshll.u32 [#allocation5], 4
      %s39 = int_to_ptr.vmem [resolvable:$true] %s38
      %44 = dma.hbm_to_vmem [thread:$0]  %s2, 1024, %s39, [#allocation6], 128, 128, 8
    $region13: #{tpu_custom_call.1} parent=1 // pred_fallthru
      _
    // Predicated region
    $region14: #{tpu_custom_call.1} parent=1 // pred_check
      _
    $region15: #{tpu_custom_call.1} parent=1 // pred_check_branch
      %46 = sbr.rel (0) target = $region17
    $region16: #{tpu_custom_call.1} parent=1 // pred_region
      _
    $region17: #{tpu_custom_call.1} parent=1 // pred_fallthru
      _
    // Predicated region
    $region18: #{tpu_custom_call.1} parent=1 // pred_check
      _
    $region19: #{tpu_custom_call.1} parent=1 // pred_check_branch
      %48 = sbr.rel (0) target = $region21
    $region20: #{tpu_custom_call.1} parent=1 // pred_region
      %s50 = ssub.s32 64, 64
      %51 = vsyncadd [#allocation6], %s50
      %s53 = sshll.u32 [#allocation7], 4
      %s54 = int_to_ptr.vmem [resolvable:$true] %s53
      %56 = dma.hbm_to_vmem [thread:$0]  %s4, 64, %s54, [#allocation6]
    $region21: #{tpu_custom_call.1} parent=1 // pred_fallthru
      _
    // Predicated region
    $region22: #{tpu_custom_call.1} parent=1 // pred_check
      _
    $region23: #{tpu_custom_call.1} parent=1 // pred_check_branch
      %58 = sbr.rel (0) target = $region25
    $region24: #{tpu_custom_call.1} parent=1 // pred_region
      %s60 = ssub.s32 32768, 32768
      %61 = vsyncadd [#allocation9], %s60
      %s62 = sshll.u32 [#allocation8], 4
      %s63 = int_to_ptr.vmem [resolvable:$true] %s62
      %68 = dma.hbm_to_vmem [thread:$0]  %s5, 32768, %s63, [#allocation9], 2048, 2048, 128
    $region25: #{tpu_custom_call.1} parent=1 // pred_fallthru
      _
    // Predicated region
    $region26: #{tpu_custom_call.1} parent=1 // pred_check
      _
    $region27: #{tpu_custom_call.1} parent=1 // pred_check_branch
      %70 = sbr.rel (0) target = $region29
    $region28: #{tpu_custom_call.1} parent=1 // pred_region
      _
    $region29: #{tpu_custom_call.1} parent=1 // pred_fallthru
      _
    // Predicated region
    $region30: #{tpu_custom_call.1} parent=1 // pred_check
      _
    $region31: #{tpu_custom_call.1} parent=1 // pred_check_branch
      %72 = sbr.rel (0) target = $region33
    $region32: #{tpu_custom_call.1} parent=1 // pred_region
      _
    $region33: #{tpu_custom_call.1} parent=1 // pred_fallthru
      _
    // Predicated region
    $region34: #{tpu_custom_call.1} parent=1 // pred_check
      _
    $region35: #{tpu_custom_call.1} parent=1 // pred_check_branch
      %74 = sbr.rel (0) target = $region37
    $region36: #{tpu_custom_call.1} parent=1 // pred_region
      %s76 = ssub.s32 8192, 8192
      %77 = vsyncadd [#allocation9], %s76
      %s78 = sshll.u32 [#allocation10], 4
      %s79 = int_to_ptr.vmem [resolvable:$true] %s78
      %84 = dma.hbm_to_vmem [thread:$0]  %s8, 8192, %s79, [#allocation9], 512, 512, 32
    $region37: #{tpu_custom_call.1} parent=1 // pred_fallthru
      _
    // Predicated region
    $region38: #{tpu_custom_call.1} parent=1 // pred_check
      _
    $region39: #{tpu_custom_call.1} parent=1 // pred_check_branch
      %86 = sbr.rel (0) target = $region41
    $region40: #{tpu_custom_call.1} parent=1 // pred_region
      _
    $region41: #{tpu_custom_call.1} parent=1 // pred_fallthru
      _
    // Predicated region
    $region42: #{tpu_custom_call.1} parent=1 // pred_check
      _
    $region43: #{tpu_custom_call.1} parent=1 // pred_check_branch
      %88 = sbr.rel (0) target = $region45
    $region44: #{tpu_custom_call.1} parent=1 // pred_region
      %89 = dma.done [#allocation3], 1024
    $region45: #{tpu_custom_call.1} parent=1 // pred_fallthru
      _
    // Predicated region
    $region46: #{tpu_custom_call.1} parent=1 // pred_check
      _
    $region47: #{tpu_custom_call.1} parent=1 // pred_check_branch
      %91 = sbr.rel (0) target = $region49
    $region48: #{tpu_custom_call.1} parent=1 // pred_region
      %92 = dma.done [#allocation6], 1024
    $region49: #{tpu_custom_call.1} parent=1 // pred_fallthru
      _
    // Predicated region
    $region50: #{tpu_custom_call.1} parent=1 // pred_check
      _
    $region51: #{tpu_custom_call.1} parent=1 // pred_check_branch
      %94 = sbr.rel (0) target = $region53
    $region52: #{tpu_custom_call.1} parent=1 // pred_region
      %95 = dma.done [#allocation6], 64
    $region53: #{tpu_custom_call.1} parent=1 // pred_fallthru
      _
    // Predicated region
    $region54: #{tpu_custom_call.1} parent=1 // pred_check
      _
    $region55: #{tpu_custom_call.1} parent=1 // pred_check_branch
      %97 = sbr.rel (0) target = $region57
    $region56: #{tpu_custom_call.1} parent=1 // pred_region
      %98 = dma.done [#allocation9], 32768
    $region57: #{tpu_custom_call.1} parent=1 // pred_fallthru
      _
    // Predicated region
    $region58: #{tpu_custom_call.1} parent=1 // pred_check
      _
    $region59: #{tpu_custom_call.1} parent=1 // pred_check_branch
      %100 = sbr.rel (0) target = $region61
    $region60: #{tpu_custom_call.1} parent=1 // pred_region
      %101 = dma.done [#allocation9], 8192
    $region61: #{tpu_custom_call.1} parent=1 // pred_fallthru
      _
    %v103 = vld [vmem:[#allocation2] sm:$0xff]
    %v104 = vld [vmem:[#allocation2 + $0x8] sm:$0xff]
    %v105 = vld [vmem:[#allocation2 + $0x10] sm:$0xff]
    %v106 = vld [vmem:[#allocation2 + $0x18] sm:$0xff]
    %v107 = vld [vmem:[#allocation2 + $0x20] sm:$0xff]
    %v108 = vld [vmem:[#allocation2 + $0x28] sm:$0xff]
    %v109 = vld [vmem:[#allocation2 + $0x30] sm:$0xff]
    %v110 = vld [vmem:[#allocation2 + $0x38] sm:$0xff]
    %v111 = vadd.f32 %v103, %v104
    %v112 = vadd.f32 %v111, %v105
    %v113 = vadd.f32 %v112, %v106
    %114 = vadd.xlane.f32.xlu0 %v113
    %v115 = vpop.xlane.xlu0 %114
    %v116 = vadd.f32 %v107, %v108
    %v117 = vadd.f32 %v116, %v109
    %v118 = vadd.f32 %v117, %v110
    %119 = vadd.xlane.f32.xlu0 %v118
    %v120 = vpop.xlane.xlu0 %119
    %v121 = vrcp.pop 512.0
    %v122 = vmul.f32 %v115, %v121
    %v123 = vmul.f32 %v120, %v121
    %v124 = vsub.f32 %v103, %v122
    %v125 = vsub.f32 %v104, %v122
    %v126 = vsub.f32 %v105, %v122
    %v127 = vsub.f32 %v106, %v122
    %v128 = vsub.f32 %v107, %v123
    %v129 = vsub.f32 %v108, %v123
    %v130 = vsub.f32 %v109, %v123
    %v131 = vsub.f32 %v110, %v123
    %v132 = vmul.f32 %v124, %v124
    %v133 = vmul.f32 %v125, %v125
    %v134 = vmul.f32 %v126, %v126
    %v135 = vmul.f32 %v127, %v127
    %v136 = vmul.f32 %v128, %v128
    %v137 = vmul.f32 %v129, %v129
    %v138 = vmul.f32 %v130, %v130
    %v139 = vmul.f32 %v131, %v131
    %v140 = vadd.f32 %v132, %v133
    %v141 = vadd.f32 %v140, %v134
    %v142 = vadd.f32 %v141, %v135
    %143 = vadd.xlane.f32.xlu0 %v142
    %v144 = vpop.xlane.xlu0 %143
    %v145 = vadd.f32 %v136, %v137
    %v146 = vadd.f32 %v145, %v138
    %v147 = vadd.f32 %v146, %v139
    %148 = vadd.xlane.f32.xlu0 %v147
    %v149 = vpop.xlane.xlu0 %148
    %v150 = vmul.f32 %v144, %v121
    %v151 = vmul.f32 %v149, %v121
    %v152 = vadd.f32 %v150, 1e-05
    %v153 = vadd.f32 %v151, 1e-05
    %v154 = vrsqrt.pop %v152
    %v155 = vrsqrt.pop %v153
    %v156 = vmul.f32 %v124, %v154
    %v157 = vmul.f32 %v125, %v154
    %v158 = vmul.f32 %v126, %v154
    %v159 = vmul.f32 %v127, %v154
    %v160 = vmul.f32 %v128, %v155
    %v161 = vmul.f32 %v129, %v155
    %v162 = vmul.f32 %v130, %v155
    %v163 = vmul.f32 %v131, %v155
    %v164 = vld [vmem:[%s3] sm:$0xf]
    %v166 = vlaneseq
    %v167 = vshrl.u32 %v166, 7
    %v168 = vsub.s32 0, %v167
    %v169 = vrot.slane %v164, %v168
    %v170 = vlaneseq
    %v171 = vshrl.u32 %v170, 7
    %v172 = vsub.s32 1, %v171
    %v173 = vrot.slane %v164, %v172
    %v174 = vlaneseq
    %v175 = vshrl.u32 %v174, 7
    %v176 = vsub.s32 2, %v175
    %v177 = vrot.slane %v164, %v176
    %v178 = vlaneseq
    %v179 = vshrl.u32 %v178, 7
    %v180 = vsub.s32 3, %v179
    %v181 = vrot.slane %v164, %v180
    %v186 = vmul.f32 %v156, %v169
    %v187 = vmul.f32 %v157, %v173
    %v188 = vmul.f32 %v158, %v177
    %v189 = vmul.f32 %v159, %v181
    %v190 = vmul.f32 %v160, %v169
    %v191 = vmul.f32 %v161, %v173
    %v192 = vmul.f32 %v162, %v177
    %v193 = vmul.f32 %v163, %v181
    %v194 = vld [vmem:[#allocation7] sm:$0xf]
    %v196 = vlaneseq
    %v197 = vshrl.u32 %v196, 7
    %v198 = vsub.s32 0, %v197
    %v199 = vrot.slane %v194, %v198
    %v200 = vlaneseq
    %v201 = vshrl.u32 %v200, 7
    %v202 = vsub.s32 1, %v201
    %v203 = vrot.slane %v194, %v202
    %v204 = vlaneseq
    %v205 = vshrl.u32 %v204, 7
    %v206 = vsub.s32 2, %v205
    %v207 = vrot.slane %v194, %v206
    %v208 = vlaneseq
    %v209 = vshrl.u32 %v208, 7
    %v210 = vsub.s32 3, %v209
    %v211 = vrot.slane %v194, %v210
    %v216 = vadd.f32 %v186, %v199
    %v217 = vadd.f32 %v187, %v203
    %v218 = vadd.f32 %v188, %v207
    %v219 = vadd.f32 %v189, %v211
    %v220 = vadd.f32 %v190, %v199
    %v221 = vadd.f32 %v191, %v203
    %v222 = vadd.f32 %v192, %v207
    %v223 = vadd.f32 %v193, %v211
    %v224 = vpack.c.bf16 %v220, %v216
    %v225 = vpack.c.bf16 %v221, %v217
    %v226 = vpack.c.bf16 %v222, %v218
    %v227 = vpack.c.bf16 %v223, %v219
    %v228 = vld [vmem:[#allocation8] sm:$0xff]
    %v229 = vld [vmem:[#allocation8 + $0x8] sm:$0xff]
    %v230 = vld [vmem:[#allocation8 + $0x10] sm:$0xff]
    %v231 = vld [vmem:[#allocation8 + $0x18] sm:$0xff]
    %v232 = vld [vmem:[#allocation8 + $0x20] sm:$0xff]
    %v233 = vld [vmem:[#allocation8 + $0x28] sm:$0xff]
    %v234 = vld [vmem:[#allocation8 + $0x30] sm:$0xff]
    %v235 = vld [vmem:[#allocation8 + $0x38] sm:$0xff]
    %v236 = vld [vmem:[#allocation8 + $0x40] sm:$0xff]
    %v237 = vld [vmem:[#allocation8 + $0x48] sm:$0xff]
    %v238 = vld [vmem:[#allocation8 + $0x50] sm:$0xff]
    %v239 = vld [vmem:[#allocation8 + $0x58] sm:$0xff]
    %v240 = vld [vmem:[#allocation8 + $0x60] sm:$0xff]
    %v241 = vld [vmem:[#allocation8 + $0x68] sm:$0xff]
    %v242 = vld [vmem:[#allocation8 + $0x70] sm:$0xff]
    %v243 = vld [vmem:[#allocation8 + $0x78] sm:$0xff]
    %v244 = vld [vmem:[#allocation8 + $0x80] sm:$0xff]
    %v245 = vld [vmem:[#allocation8 + $0x88] sm:$0xff]
    %v246 = vld [vmem:[#allocation8 + $0x90] sm:$0xff]
    %v247 = vld [vmem:[#allocation8 + $0x98] sm:$0xff]
    %v248 = vld [vmem:[#allocation8 + $0xa0] sm:$0xff]
    %v249 = vld [vmem:[#allocation8 + $0xa8] sm:$0xff]
    %v250 = vld [vmem:[#allocation8 + $0xb0] sm:$0xff]
    %v251 = vld [vmem:[#allocation8 + $0xb8] sm:$0xff]
    %v252 = vld [vmem:[#allocation8 + $0xc0] sm:$0xff]
    %v253 = vld [vmem:[#allocation8 + $0xc8] sm:$0xff]
    %v254 = vld [vmem:[#allocation8 + $0xd0] sm:$0xff]
    %v255 = vld [vmem:[#allocation8 + $0xd8] sm:$0xff]
    %v256 = vld [vmem:[#allocation8 + $0xe0] sm:$0xff]
    %v257 = vld [vmem:[#allocation8 + $0xe8] sm:$0xff]
    %v258 = vld [vmem:[#allocation8 + $0xf0] sm:$0xff]
    %v259 = vld [vmem:[#allocation8 + $0xf8] sm:$0xff]
    %v260 = vld [vmem:[#allocation8 + $0x100] sm:$0xff]
    %v261 = vld [vmem:[#allocation8 + $0x108] sm:$0xff]
    %v262 = vld [vmem:[#allocation8 + $0x110] sm:$0xff]
    %v263 = vld [vmem:[#allocation8 + $0x118] sm:$0xff]
    %v264 = vld [vmem:[#allocation8 + $0x120] sm:$0xff]
    %v265 = vld [vmem:[#allocation8 + $0x128] sm:$0xff]
    %v266 = vld [vmem:[#allocation8 + $0x130] sm:$0xff]
    %v267 = vld [vmem:[#allocation8 + $0x138] sm:$0xff]
    %v268 = vld [vmem:[#allocation8 + $0x140] sm:$0xff]
    %v269 = vld [vmem:[#allocation8 + $0x148] sm:$0xff]
    %v270 = vld [vmem:[#allocation8 + $0x150] sm:$0xff]
    %v271 = vld [vmem:[#allocation8 + $0x158] sm:$0xff]
    %v272 = vld [vmem:[#allocation8 + $0x160] sm:$0xff]
    %v273 = vld [vmem:[#allocation8 + $0x168] sm:$0xff]
    %v274 = vld [vmem:[#allocation8 + $0x170] sm:$0xff]
    %v275 = vld [vmem:[#allocation8 + $0x178] sm:$0xff]
    %v276 = vld [vmem:[#allocation8 + $0x180] sm:$0xff]
    %v277 = vld [vmem:[#allocation8 + $0x188] sm:$0xff]
    %v278 = vld [vmem:[#allocation8 + $0x190] sm:$0xff]
    %v279 = vld [vmem:[#allocation8 + $0x198] sm:$0xff]
    %v280 = vld [vmem:[#allocation8 + $0x1a0] sm:$0xff]
    %v281 = vld [vmem:[#allocation8 + $0x1a8] sm:$0xff]
    %v282 = vld [vmem:[#allocation8 + $0x1b0] sm:$0xff]
    %v283 = vld [vmem:[#allocation8 + $0x1b8] sm:$0xff]
    %v284 = vld [vmem:[#allocation8 + $0x1c0] sm:$0xff]
    %v285 = vld [vmem:[#allocation8 + $0x1c8] sm:$0xff]
    %v286 = vld [vmem:[#allocation8 + $0x1d0] sm:$0xff]
    %v287 = vld [vmem:[#allocation8 + $0x1d8] sm:$0xff]
    %v288 = vld [vmem:[#allocation8 + $0x1e0] sm:$0xff]
    %v289 = vld [vmem:[#allocation8 + $0x1e8] sm:$0xff]
    %v290 = vld [vmem:[#allocation8 + $0x1f0] sm:$0xff]
    %v291 = vld [vmem:[#allocation8 + $0x1f8] sm:$0xff]
    %v292 = vld [vmem:[#allocation8 + $0x200] sm:$0xff]
    %v293 = vld [vmem:[#allocation8 + $0x208] sm:$0xff]
    %v294 = vld [vmem:[#allocation8 + $0x210] sm:$0xff]
    %v295 = vld [vmem:[#allocation8 + $0x218] sm:$0xff]
    %v296 = vld [vmem:[#allocation8 + $0x220] sm:$0xff]
    %v297 = vld [vmem:[#allocation8 + $0x228] sm:$0xff]
    %v298 = vld [vmem:[#allocation8 + $0x230] sm:$0xff]
    %v299 = vld [vmem:[#allocation8 + $0x238] sm:$0xff]
    %v300 = vld [vmem:[#allocation8 + $0x240] sm:$0xff]
    %v301 = vld [vmem:[#allocation8 + $0x248] sm:$0xff]
    %v302 = vld [vmem:[#allocation8 + $0x250] sm:$0xff]
    %v303 = vld [vmem:[#allocation8 + $0x258] sm:$0xff]
    %v304 = vld [vmem:[#allocation8 + $0x260] sm:$0xff]
    %v305 = vld [vmem:[#allocation8 + $0x268] sm:$0xff]
    %v306 = vld [vmem:[#allocation8 + $0x270] sm:$0xff]
    %v307 = vld [vmem:[#allocation8 + $0x278] sm:$0xff]
    %v308 = vld [vmem:[#allocation8 + $0x280] sm:$0xff]
    %v309 = vld [vmem:[#allocation8 + $0x288] sm:$0xff]
    %v310 = vld [vmem:[#allocation8 + $0x290] sm:$0xff]
    %v311 = vld [vmem:[#allocation8 + $0x298] sm:$0xff]
    %v312 = vld [vmem:[#allocation8 + $0x2a0] sm:$0xff]
    %v313 = vld [vmem:[#allocation8 + $0x2a8] sm:$0xff]
    %v314 = vld [vmem:[#allocation8 + $0x2b0] sm:$0xff]
    %v315 = vld [vmem:[#allocation8 + $0x2b8] sm:$0xff]
    %v316 = vld [vmem:[#allocation8 + $0x2c0] sm:$0xff]
    %v317 = vld [vmem:[#allocation8 + $0x2c8] sm:$0xff]
    %v318 = vld [vmem:[#allocation8 + $0x2d0] sm:$0xff]
    %v319 = vld [vmem:[#allocation8 + $0x2d8] sm:$0xff]
    %v320 = vld [vmem:[#allocation8 + $0x2e0] sm:$0xff]
    %v321 = vld [vmem:[#allocation8 + $0x2e8] sm:$0xff]
    %v322 = vld [vmem:[#allocation8 + $0x2f0] sm:$0xff]
    %v323 = vld [vmem:[#allocation8 + $0x2f8] sm:$0xff]
    %v324 = vld [vmem:[#allocation8 + $0x300] sm:$0xff]
    %v325 = vld [vmem:[#allocation8 + $0x308] sm:$0xff]
    %v326 = vld [vmem:[#allocation8 + $0x310] sm:$0xff]
    %v327 = vld [vmem:[#allocation8 + $0x318] sm:$0xff]
    %v328 = vld [vmem:[#allocation8 + $0x320] sm:$0xff]
    %v329 = vld [vmem:[#allocation8 + $0x328] sm:$0xff]
    %v330 = vld [vmem:[#allocation8 + $0x330] sm:$0xff]
    %v331 = vld [vmem:[#allocation8 + $0x338] sm:$0xff]
    %v332 = vld [vmem:[#allocation8 + $0x340] sm:$0xff]
    %v333 = vld [vmem:[#allocation8 + $0x348] sm:$0xff]
    %v334 = vld [vmem:[#allocation8 + $0x350] sm:$0xff]
    %v335 = vld [vmem:[#allocation8 + $0x358] sm:$0xff]
    %v336 = vld [vmem:[#allocation8 + $0x360] sm:$0xff]
    %v337 = vld [vmem:[#allocation8 + $0x368] sm:$0xff]
    %v338 = vld [vmem:[#allocation8 + $0x370] sm:$0xff]
    %v339 = vld [vmem:[#allocation8 + $0x378] sm:$0xff]
    %v340 = vld [vmem:[#allocation8 + $0x380] sm:$0xff]
    %v341 = vld [vmem:[#allocation8 + $0x388] sm:$0xff]
    %v342 = vld [vmem:[#allocation8 + $0x390] sm:$0xff]
    %v343 = vld [vmem:[#allocation8 + $0x398] sm:$0xff]
    %v344 = vld [vmem:[#allocation8 + $0x3a0] sm:$0xff]
    %v345 = vld [vmem:[#allocation8 + $0x3a8] sm:$0xff]
    %v346 = vld [vmem:[#allocation8 + $0x3b0] sm:$0xff]
    %v347 = vld [vmem:[#allocation8 + $0x3b8] sm:$0xff]
    %v348 = vld [vmem:[#allocation8 + $0x3c0] sm:$0xff]
    %v349 = vld [vmem:[#allocation8 + $0x3c8] sm:$0xff]
    %v350 = vld [vmem:[#allocation8 + $0x3d0] sm:$0xff]
    %v351 = vld [vmem:[#allocation8 + $0x3d8] sm:$0xff]
    %v352 = vld [vmem:[#allocation8 + $0x3e0] sm:$0xff]
    %v353 = vld [vmem:[#allocation8 + $0x3e8] sm:$0xff]
    %v354 = vld [vmem:[#allocation8 + $0x3f0] sm:$0xff]
    %v355 = vld [vmem:[#allocation8 + $0x3f8] sm:$0xff]
    %v356 = vld [vmem:[#allocation8 + $0x400] sm:$0xff]
    %v357 = vld [vmem:[#allocation8 + $0x408] sm:$0xff]
    %v358 = vld [vmem:[#allocation8 + $0x410] sm:$0xff]
    %v359 = vld [vmem:[#allocation8 + $0x418] sm:$0xff]
    %v360 = vld [vmem:[#allocation8 + $0x420] sm:$0xff]
    %v361 = vld [vmem:[#allocation8 + $0x428] sm:$0xff]
    %v362 = vld [vmem:[#allocation8 + $0x430] sm:$0xff]
    %v363 = vld [vmem:[#allocation8 + $0x438] sm:$0xff]
    %v364 = vld [vmem:[#allocation8 + $0x440] sm:$0xff]
    %v365 = vld [vmem:[#allocation8 + $0x448] sm:$0xff]
    %v366 = vld [vmem:[#allocation8 + $0x450] sm:$0xff]
    %v367 = vld [vmem:[#allocation8 + $0x458] sm:$0xff]
    %v368 = vld [vmem:[#allocation8 + $0x460] sm:$0xff]
    %v369 = vld [vmem:[#allocation8 + $0x468] sm:$0xff]
    %v370 = vld [vmem:[#allocation8 + $0x470] sm:$0xff]
    %v371 = vld [vmem:[#allocation8 + $0x478] sm:$0xff]
    %v372 = vld [vmem:[#allocation8 + $0x480] sm:$0xff]
    %v373 = vld [vmem:[#allocation8 + $0x488] sm:$0xff]
    %v374 = vld [vmem:[#allocation8 + $0x490] sm:$0xff]
    %v375 = vld [vmem:[#allocation8 + $0x498] sm:$0xff]
    %v376 = vld [vmem:[#allocation8 + $0x4a0] sm:$0xff]
    %v377 = vld [vmem:[#allocation8 + $0x4a8] sm:$0xff]
    %v378 = vld [vmem:[#allocation8 + $0x4b0] sm:$0xff]
    %v379 = vld [vmem:[#allocation8 + $0x4b8] sm:$0xff]
    %v380 = vld [vmem:[#allocation8 + $0x4c0] sm:$0xff]
    %v381 = vld [vmem:[#allocation8 + $0x4c8] sm:$0xff]
    %v382 = vld [vmem:[#allocation8 + $0x4d0] sm:$0xff]
    %v383 = vld [vmem:[#allocation8 + $0x4d8] sm:$0xff]
    %v384 = vld [vmem:[#allocation8 + $0x4e0] sm:$0xff]
    %v385 = vld [vmem:[#allocation8 + $0x4e8] sm:$0xff]
    %v386 = vld [vmem:[#allocation8 + $0x4f0] sm:$0xff]
    %v387 = vld [vmem:[#allocation8 + $0x4f8] sm:$0xff]
    %v388 = vld [vmem:[#allocation8 + $0x500] sm:$0xff]
    %v389 = vld [vmem:[#allocation8 + $0x508] sm:$0xff]
    %v390 = vld [vmem:[#allocation8 + $0x510] sm:$0xff]
    %v391 = vld [vmem:[#allocation8 + $0x518] sm:$0xff]
    %v392 = vld [vmem:[#allocation8 + $0x520] sm:$0xff]
    %v393 = vld [vmem:[#allocation8 + $0x528] sm:$0xff]
    %v394 = vld [vmem:[#allocation8 + $0x530] sm:$0xff]
    %v395 = vld [vmem:[#allocation8 + $0x538] sm:$0xff]
    %v396 = vld [vmem:[#allocation8 + $0x540] sm:$0xff]
    %v397 = vld [vmem:[#allocation8 + $0x548] sm:$0xff]
    %v398 = vld [vmem:[#allocation8 + $0x550] sm:$0xff]
    %v399 = vld [vmem:[#allocation8 + $0x558] sm:$0xff]
    %v400 = vld [vmem:[#allocation8 + $0x560] sm:$0xff]
    %v401 = vld [vmem:[#allocation8 + $0x568] sm:$0xff]
    %v402 = vld [vmem:[#allocation8 + $0x570] sm:$0xff]
    %v403 = vld [vmem:[#allocation8 + $0x578] sm:$0xff]
    %v404 = vld [vmem:[#allocation8 + $0x580] sm:$0xff]
    %v405 = vld [vmem:[#allocation8 + $0x588] sm:$0xff]
    %v406 = vld [vmem:[#allocation8 + $0x590] sm:$0xff]
    %v407 = vld [vmem:[#allocation8 + $0x598] sm:$0xff]
    %v408 = vld [vmem:[#allocation8 + $0x5a0] sm:$0xff]
    %v409 = vld [vmem:[#allocation8 + $0x5a8] sm:$0xff]
    %v410 = vld [vmem:[#allocation8 + $0x5b0] sm:$0xff]
    %v411 = vld [vmem:[#allocation8 + $0x5b8] sm:$0xff]
    %v412 = vld [vmem:[#allocation8 + $0x5c0] sm:$0xff]
    %v413 = vld [vmem:[#allocation8 + $0x5c8] sm:$0xff]
    %v414 = vld [vmem:[#allocation8 + $0x5d0] sm:$0xff]
    %v415 = vld [vmem:[#allocation8 + $0x5d8] sm:$0xff]
    %v416 = vld [vmem:[#allocation8 + $0x5e0] sm:$0xff]
    %v417 = vld [vmem:[#allocation8 + $0x5e8] sm:$0xff]
    %v418 = vld [vmem:[#allocation8 + $0x5f0] sm:$0xff]
    %v419 = vld [vmem:[#allocation8 + $0x5f8] sm:$0xff]
    %v420 = vld [vmem:[#allocation8 + $0x600] sm:$0xff]
    %v421 = vld [vmem:[#allocation8 + $0x608] sm:$0xff]
    %v422 = vld [vmem:[#allocation8 + $0x610] sm:$0xff]
    %v423 = vld [vmem:[#allocation8 + $0x618] sm:$0xff]
    %v424 = vld [vmem:[#allocation8 + $0x620] sm:$0xff]
    %v425 = vld [vmem:[#allocation8 + $0x628] sm:$0xff]
    %v426 = vld [vmem:[#allocation8 + $0x630] sm:$0xff]
    %v427 = vld [vmem:[#allocation8 + $0x638] sm:$0xff]
    %v428 = vld [vmem:[#allocation8 + $0x640] sm:$0xff]
    %v429 = vld [vmem:[#allocation8 + $0x648] sm:$0xff]
    %v430 = vld [vmem:[#allocation8 + $0x650] sm:$0xff]
    %v431 = vld [vmem:[#allocation8 + $0x658] sm:$0xff]
    %v432 = vld [vmem:[#allocation8 + $0x660] sm:$0xff]
    %v433 = vld [vmem:[#allocation8 + $0x668] sm:$0xff]
    %v434 = vld [vmem:[#allocation8 + $0x670] sm:$0xff]
    %v435 = vld [vmem:[#allocation8 + $0x678] sm:$0xff]
    %v436 = vld [vmem:[#allocation8 + $0x680] sm:$0xff]
    %v437 = vld [vmem:[#allocation8 + $0x688] sm:$0xff]
    %v438 = vld [vmem:[#allocation8 + $0x690] sm:$0xff]
    %v439 = vld [vmem:[#allocation8 + $0x698] sm:$0xff]
    %v440 = vld [vmem:[#allocation8 + $0x6a0] sm:$0xff]
    %v441 = vld [vmem:[#allocation8 + $0x6a8] sm:$0xff]
    %v442 = vld [vmem:[#allocation8 + $0x6b0] sm:$0xff]
    %v443 = vld [vmem:[#allocation8 + $0x6b8] sm:$0xff]
    %v444 = vld [vmem:[#allocation8 + $0x6c0] sm:$0xff]
    %v445 = vld [vmem:[#allocation8 + $0x6c8] sm:$0xff]
    %v446 = vld [vmem:[#allocation8 + $0x6d0] sm:$0xff]
    %v447 = vld [vmem:[#allocation8 + $0x6d8] sm:$0xff]
    %v448 = vld [vmem:[#allocation8 + $0x6e0] sm:$0xff]
    %v449 = vld [vmem:[#allocation8 + $0x6e8] sm:$0xff]
    %v450 = vld [vmem:[#allocation8 + $0x6f0] sm:$0xff]
    %v451 = vld [vmem:[#allocation8 + $0x6f8] sm:$0xff]
    %v452 = vld [vmem:[#allocation8 + $0x700] sm:$0xff]
    %v453 = vld [vmem:[#allocation8 + $0x708] sm:$0xff]
    %v454 = vld [vmem:[#allocation8 + $0x710] sm:$0xff]
    %v455 = vld [vmem:[#allocation8 + $0x718] sm:$0xff]
    %v456 = vld [vmem:[#allocation8 + $0x720] sm:$0xff]
    %v457 = vld [vmem:[#allocation8 + $0x728] sm:$0xff]
    %v458 = vld [vmem:[#allocation8 + $0x730] sm:$0xff]
    %v459 = vld [vmem:[#allocation8 + $0x738] sm:$0xff]
    %v460 = vld [vmem:[#allocation8 + $0x740] sm:$0xff]
    %v461 = vld [vmem:[#allocation8 + $0x748] sm:$0xff]
    %v462 = vld [vmem:[#allocation8 + $0x750] sm:$0xff]
    %v463 = vld [vmem:[#allocation8 + $0x758] sm:$0xff]
    %v464 = vld [vmem:[#allocation8 + $0x760] sm:$0xff]
    %v465 = vld [vmem:[#allocation8 + $0x768] sm:$0xff]
    %v466 = vld [vmem:[#allocation8 + $0x770] sm:$0xff]
    %v467 = vld [vmem:[#allocation8 + $0x778] sm:$0xff]
    %v468 = vld [vmem:[#allocation8 + $0x780] sm:$0xff]
    %v469 = vld [vmem:[#allocation8 + $0x788] sm:$0xff]
    %v470 = vld [vmem:[#allocation8 + $0x790] sm:$0xff]
    %v471 = vld [vmem:[#allocation8 + $0x798] sm:$0xff]
    %v472 = vld [vmem:[#allocation8 + $0x7a0] sm:$0xff]
    %v473 = vld [vmem:[#allocation8 + $0x7a8] sm:$0xff]
    %v474 = vld [vmem:[#allocation8 + $0x7b0] sm:$0xff]
    %v475 = vld [vmem:[#allocation8 + $0x7b8] sm:$0xff]
    %v476 = vld [vmem:[#allocation8 + $0x7c0] sm:$0xff]
    %v477 = vld [vmem:[#allocation8 + $0x7c8] sm:$0xff]
    %v478 = vld [vmem:[#allocation8 + $0x7d0] sm:$0xff]
    %v479 = vld [vmem:[#allocation8 + $0x7d8] sm:$0xff]
    %v480 = vld [vmem:[#allocation8 + $0x7e0] sm:$0xff]
    %v481 = vld [vmem:[#allocation8 + $0x7e8] sm:$0xff]
    %v482 = vld [vmem:[#allocation8 + $0x7f0] sm:$0xff]
    %v483 = vld [vmem:[#allocation8 + $0x7f8] sm:$0xff]
    %v484 = vunpack.c.l.s8.bf16 %v228
    %v485 = vunpack.c.l.s8.bf16 %v229
    %v486 = vunpack.c.l.s8.bf16 %v230
    %v487 = vunpack.c.l.s8.bf16 %v231
    %v488 = vunpack.c.l.s8.bf16 %v232
    %v489 = vunpack.c.l.s8.bf16 %v233
    %v490 = vunpack.c.l.s8.bf16 %v234
    %v491 = vunpack.c.l.s8.bf16 %v235
    %v492 = vunpack.c.l.s8.bf16 %v236
    %v493 = vunpack.c.l.s8.bf16 %v237
    %v494 = vunpack.c.l.s8.bf16 %v238
    %v495 = vunpack.c.l.s8.bf16 %v239
    %v496 = vunpack.c.l.s8.bf16 %v240
    %v497 = vunpack.c.l.s8.bf16 %v241
    %v498 = vunpack.c.l.s8.bf16 %v242
    %v499 = vunpack.c.l.s8.bf16 %v243
    %v500 = vunpack.c.h.s8.bf16 %v228
    %v501 = vunpack.c.h.s8.bf16 %v229
    %v502 = vunpack.c.h.s8.bf16 %v230
    %v503 = vunpack.c.h.s8.bf16 %v231
    %v504 = vunpack.c.h.s8.bf16 %v232
    %v505 = vunpack.c.h.s8.bf16 %v233
    %v506 = vunpack.c.h.s8.bf16 %v234
    %v507 = vunpack.c.h.s8.bf16 %v235
    %v508 = vunpack.c.h.s8.bf16 %v236
    %v509 = vunpack.c.h.s8.bf16 %v237
    %v510 = vunpack.c.h.s8.bf16 %v238
    %v511 = vunpack.c.h.s8.bf16 %v239
    %v512 = vunpack.c.h.s8.bf16 %v240
    %v513 = vunpack.c.h.s8.bf16 %v241
    %v514 = vunpack.c.h.s8.bf16 %v242
    %v515 = vunpack.c.h.s8.bf16 %v243
    %v516 = vunpack.c.l.s8.bf16 %v244
    %v517 = vunpack.c.l.s8.bf16 %v245
    %v518 = vunpack.c.l.s8.bf16 %v246
    %v519 = vunpack.c.l.s8.bf16 %v247
    %v520 = vunpack.c.l.s8.bf16 %v248
    %v521 = vunpack.c.l.s8.bf16 %v249
    %v522 = vunpack.c.l.s8.bf16 %v250
    %v523 = vunpack.c.l.s8.bf16 %v251
    %v524 = vunpack.c.l.s8.bf16 %v252
    %v525 = vunpack.c.l.s8.bf16 %v253
    %v526 = vunpack.c.l.s8.bf16 %v254
    %v527 = vunpack.c.l.s8.bf16 %v255
    %v528 = vunpack.c.l.s8.bf16 %v256
    %v529 = vunpack.c.l.s8.bf16 %v257
    %v530 = vunpack.c.l.s8.bf16 %v258
    %v531 = vunpack.c.l.s8.bf16 %v259
    %v532 = vunpack.c.h.s8.bf16 %v244
    %v533 = vunpack.c.h.s8.bf16 %v245
    %v534 = vunpack.c.h.s8.bf16 %v246
    %v535 = vunpack.c.h.s8.bf16 %v247
    %v536 = vunpack.c.h.s8.bf16 %v248
    %v537 = vunpack.c.h.s8.bf16 %v249
    %v538 = vunpack.c.h.s8.bf16 %v250
    %v539 = vunpack.c.h.s8.bf16 %v251
    %v540 = vunpack.c.h.s8.bf16 %v252
    %v541 = vunpack.c.h.s8.bf16 %v253
    %v542 = vunpack.c.h.s8.bf16 %v254
    %v543 = vunpack.c.h.s8.bf16 %v255
    %v544 = vunpack.c.h.s8.bf16 %v256
    %v545 = vunpack.c.h.s8.bf16 %v257
    %v546 = vunpack.c.h.s8.bf16 %v258
    %v547 = vunpack.c.h.s8.bf16 %v259
    %v548 = vunpack.c.l.s8.bf16 %v260
    %v549 = vunpack.c.l.s8.bf16 %v261
    %v550 = vunpack.c.l.s8.bf16 %v262
    %v551 = vunpack.c.l.s8.bf16 %v263
    %v552 = vunpack.c.l.s8.bf16 %v264
    %v553 = vunpack.c.l.s8.bf16 %v265
    %v554 = vunpack.c.l.s8.bf16 %v266
    %v555 = vunpack.c.l.s8.bf16 %v267
    %v556 = vunpack.c.l.s8.bf16 %v268
    %v557 = vunpack.c.l.s8.bf16 %v269
    %v558 = vunpack.c.l.s8.bf16 %v270
    %v559 = vunpack.c.l.s8.bf16 %v271
    %v560 = vunpack.c.l.s8.bf16 %v272
    %v561 = vunpack.c.l.s8.bf16 %v273
    %v562 = vunpack.c.l.s8.bf16 %v274
    %v563 = vunpack.c.l.s8.bf16 %v275
    %v564 = vunpack.c.h.s8.bf16 %v260
    %v565 = vunpack.c.h.s8.bf16 %v261
    %v566 = vunpack.c.h.s8.bf16 %v262
    %v567 = vunpack.c.h.s8.bf16 %v263
    %v568 = vunpack.c.h.s8.bf16 %v264
    %v569 = vunpack.c.h.s8.bf16 %v265
    %v570 = vunpack.c.h.s8.bf16 %v266
    %v571 = vunpack.c.h.s8.bf16 %v267
    %v572 = vunpack.c.h.s8.bf16 %v268
    %v573 = vunpack.c.h.s8.bf16 %v269
    %v574 = vunpack.c.h.s8.bf16 %v270
    %v575 = vunpack.c.h.s8.bf16 %v271
    %v576 = vunpack.c.h.s8.bf16 %v272
    %v577 = vunpack.c.h.s8.bf16 %v273
    %v578 = vunpack.c.h.s8.bf16 %v274
    %v579 = vunpack.c.h.s8.bf16 %v275
    %v580 = vunpack.c.l.s8.bf16 %v276
    %v581 = vunpack.c.l.s8.bf16 %v277
    %v582 = vunpack.c.l.s8.bf16 %v278
    %v583 = vunpack.c.l.s8.bf16 %v279
    %v584 = vunpack.c.l.s8.bf16 %v280
    %v585 = vunpack.c.l.s8.bf16 %v281
    %v586 = vunpack.c.l.s8.bf16 %v282
    %v587 = vunpack.c.l.s8.bf16 %v283
    %v588 = vunpack.c.l.s8.bf16 %v284
    %v589 = vunpack.c.l.s8.bf16 %v285
    %v590 = vunpack.c.l.s8.bf16 %v286
    %v591 = vunpack.c.l.s8.bf16 %v287
    %v592 = vunpack.c.l.s8.bf16 %v288
    %v593 = vunpack.c.l.s8.bf16 %v289
    %v594 = vunpack.c.l.s8.bf16 %v290
    %v595 = vunpack.c.l.s8.bf16 %v291
    %v596 = vunpack.c.h.s8.bf16 %v276
    %v597 = vunpack.c.h.s8.bf16 %v277
    %v598 = vunpack.c.h.s8.bf16 %v278
    %v599 = vunpack.c.h.s8.bf16 %v279
    %v600 = vunpack.c.h.s8.bf16 %v280
    %v601 = vunpack.c.h.s8.bf16 %v281
    %v602 = vunpack.c.h.s8.bf16 %v282
    %v603 = vunpack.c.h.s8.bf16 %v283
    %v604 = vunpack.c.h.s8.bf16 %v284
    %v605 = vunpack.c.h.s8.bf16 %v285
    %v606 = vunpack.c.h.s8.bf16 %v286
    %v607 = vunpack.c.h.s8.bf16 %v287
    %v608 = vunpack.c.h.s8.bf16 %v288
    %v609 = vunpack.c.h.s8.bf16 %v289
    %v610 = vunpack.c.h.s8.bf16 %v290
    %v611 = vunpack.c.h.s8.bf16 %v291
    %v612 = vunpack.c.l.s8.bf16 %v292
    %v613 = vunpack.c.l.s8.bf16 %v293
    %v614 = vunpack.c.l.s8.bf16 %v294
    %v615 = vunpack.c.l.s8.bf16 %v295
    %v616 = vunpack.c.l.s8.bf16 %v296
    %v617 = vunpack.c.l.s8.bf16 %v297
    %v618 = vunpack.c.l.s8.bf16 %v298
    %v619 = vunpack.c.l.s8.bf16 %v299
    %v620 = vunpack.c.l.s8.bf16 %v300
    %v621 = vunpack.c.l.s8.bf16 %v301
    %v622 = vunpack.c.l.s8.bf16 %v302
    %v623 = vunpack.c.l.s8.bf16 %v303
    %v624 = vunpack.c.l.s8.bf16 %v304
    %v625 = vunpack.c.l.s8.bf16 %v305
    %v626 = vunpack.c.l.s8.bf16 %v306
    %v627 = vunpack.c.l.s8.bf16 %v307
    %v628 = vunpack.c.h.s8.bf16 %v292
    %v629 = vunpack.c.h.s8.bf16 %v293
    %v630 = vunpack.c.h.s8.bf16 %v294
    %v631 = vunpack.c.h.s8.bf16 %v295
    %v632 = vunpack.c.h.s8.bf16 %v296
    %v633 = vunpack.c.h.s8.bf16 %v297
    %v634 = vunpack.c.h.s8.bf16 %v298
    %v635 = vunpack.c.h.s8.bf16 %v299
    %v636 = vunpack.c.h.s8.bf16 %v300
    %v637 = vunpack.c.h.s8.bf16 %v301
    %v638 = vunpack.c.h.s8.bf16 %v302
    %v639 = vunpack.c.h.s8.bf16 %v303
    %v640 = vunpack.c.h.s8.bf16 %v304
    %v641 = vunpack.c.h.s8.bf16 %v305
    %v642 = vunpack.c.h.s8.bf16 %v306
    %v643 = vunpack.c.h.s8.bf16 %v307
    %v644 = vunpack.c.l.s8.bf16 %v308
    %v645 = vunpack.c.l.s8.bf16 %v309
    %v646 = vunpack.c.l.s8.bf16 %v310
    %v647 = vunpack.c.l.s8.bf16 %v311
    %v648 = vunpack.c.l.s8.bf16 %v312
    %v649 = vunpack.c.l.s8.bf16 %v313
    %v650 = vunpack.c.l.s8.bf16 %v314
    %v651 = vunpack.c.l.s8.bf16 %v315
    %v652 = vunpack.c.l.s8.bf16 %v316
    %v653 = vunpack.c.l.s8.bf16 %v317
    %v654 = vunpack.c.l.s8.bf16 %v318
    %v655 = vunpack.c.l.s8.bf16 %v319
    %v656 = vunpack.c.l.s8.bf16 %v320
    %v657 = vunpack.c.l.s8.bf16 %v321
    %v658 = vunpack.c.l.s8.bf16 %v322
    %v659 = vunpack.c.l.s8.bf16 %v323
    %v660 = vunpack.c.h.s8.bf16 %v308
    %v661 = vunpack.c.h.s8.bf16 %v309
    %v662 = vunpack.c.h.s8.bf16 %v310
    %v663 = vunpack.c.h.s8.bf16 %v311
    %v664 = vunpack.c.h.s8.bf16 %v312
    %v665 = vunpack.c.h.s8.bf16 %v313
    %v666 = vunpack.c.h.s8.bf16 %v314
    %v667 = vunpack.c.h.s8.bf16 %v315
    %v668 = vunpack.c.h.s8.bf16 %v316
    %v669 = vunpack.c.h.s8.bf16 %v317
    %v670 = vunpack.c.h.s8.bf16 %v318
    %v671 = vunpack.c.h.s8.bf16 %v319
    %v672 = vunpack.c.h.s8.bf16 %v320
    %v673 = vunpack.c.h.s8.bf16 %v321
    %v674 = vunpack.c.h.s8.bf16 %v322
    %v675 = vunpack.c.h.s8.bf16 %v323
    %v676 = vunpack.c.l.s8.bf16 %v324
    %v677 = vunpack.c.l.s8.bf16 %v325
    %v678 = vunpack.c.l.s8.bf16 %v326
    %v679 = vunpack.c.l.s8.bf16 %v327
    %v680 = vunpack.c.l.s8.bf16 %v328
    %v681 = vunpack.c.l.s8.bf16 %v329
    %v682 = vunpack.c.l.s8.bf16 %v330
    %v683 = vunpack.c.l.s8.bf16 %v331
    %v684 = vunpack.c.l.s8.bf16 %v332
    %v685 = vunpack.c.l.s8.bf16 %v333
    %v686 = vunpack.c.l.s8.bf16 %v334
    %v687 = vunpack.c.l.s8.bf16 %v335
    %v688 = vunpack.c.l.s8.bf16 %v336
    %v689 = vunpack.c.l.s8.bf16 %v337
    %v690 = vunpack.c.l.s8.bf16 %v338
    %v691 = vunpack.c.l.s8.bf16 %v339
    %v692 = vunpack.c.h.s8.bf16 %v324
    %v693 = vunpack.c.h.s8.bf16 %v325
    %v694 = vunpack.c.h.s8.bf16 %v326
    %v695 = vunpack.c.h.s8.bf16 %v327
    %v696 = vunpack.c.h.s8.bf16 %v328
    %v697 = vunpack.c.h.s8.bf16 %v329
    %v698 = vunpack.c.h.s8.bf16 %v330
    %v699 = vunpack.c.h.s8.bf16 %v331
    %v700 = vunpack.c.h.s8.bf16 %v332
    %v701 = vunpack.c.h.s8.bf16 %v333
    %v702 = vunpack.c.h.s8.bf16 %v334
    %v703 = vunpack.c.h.s8.bf16 %v335
    %v704 = vunpack.c.h.s8.bf16 %v336
    %v705 = vunpack.c.h.s8.bf16 %v337
    %v706 = vunpack.c.h.s8.bf16 %v338
    %v707 = vunpack.c.h.s8.bf16 %v339
    %v708 = vunpack.c.l.s8.bf16 %v340
    %v709 = vunpack.c.l.s8.bf16 %v341
    %v710 = vunpack.c.l.s8.bf16 %v342
    %v711 = vunpack.c.l.s8.bf16 %v343
    %v712 = vunpack.c.l.s8.bf16 %v344
    %v713 = vunpack.c.l.s8.bf16 %v345
    %v714 = vunpack.c.l.s8.bf16 %v346
    %v715 = vunpack.c.l.s8.bf16 %v347
    %v716 = vunpack.c.l.s8.bf16 %v348
    %v717 = vunpack.c.l.s8.bf16 %v349
    %v718 = vunpack.c.l.s8.bf16 %v350
    %v719 = vunpack.c.l.s8.bf16 %v351
    %v720 = vunpack.c.l.s8.bf16 %v352
    %v721 = vunpack.c.l.s8.bf16 %v353
    %v722 = vunpack.c.l.s8.bf16 %v354
    %v723 = vunpack.c.l.s8.bf16 %v355
    %v724 = vunpack.c.h.s8.bf16 %v340
    %v725 = vunpack.c.h.s8.bf16 %v341
    %v726 = vunpack.c.h.s8.bf16 %v342
    %v727 = vunpack.c.h.s8.bf16 %v343
    %v728 = vunpack.c.h.s8.bf16 %v344
    %v729 = vunpack.c.h.s8.bf16 %v345
    %v730 = vunpack.c.h.s8.bf16 %v346
    %v731 = vunpack.c.h.s8.bf16 %v347
    %v732 = vunpack.c.h.s8.bf16 %v348
    %v733 = vunpack.c.h.s8.bf16 %v349
    %v734 = vunpack.c.h.s8.bf16 %v350
    %v735 = vunpack.c.h.s8.bf16 %v351
    %v736 = vunpack.c.h.s8.bf16 %v352
    %v737 = vunpack.c.h.s8.bf16 %v353
    %v738 = vunpack.c.h.s8.bf16 %v354
    %v739 = vunpack.c.h.s8.bf16 %v355
    %v740 = vunpack.c.l.s8.bf16 %v356
    %v741 = vunpack.c.l.s8.bf16 %v357
    %v742 = vunpack.c.l.s8.bf16 %v358
    %v743 = vunpack.c.l.s8.bf16 %v359
    %v744 = vunpack.c.l.s8.bf16 %v360
    %v745 = vunpack.c.l.s8.bf16 %v361
    %v746 = vunpack.c.l.s8.bf16 %v362
    %v747 = vunpack.c.l.s8.bf16 %v363
    %v748 = vunpack.c.l.s8.bf16 %v364
    %v749 = vunpack.c.l.s8.bf16 %v365
    %v750 = vunpack.c.l.s8.bf16 %v366
    %v751 = vunpack.c.l.s8.bf16 %v367
    %v752 = vunpack.c.l.s8.bf16 %v368
    %v753 = vunpack.c.l.s8.bf16 %v369
    %v754 = vunpack.c.l.s8.bf16 %v370
    %v755 = vunpack.c.l.s8.bf16 %v371
    %v756 = vunpack.c.h.s8.bf16 %v356
    %v757 = vunpack.c.h.s8.bf16 %v357
    %v758 = vunpack.c.h.s8.bf16 %v358
    %v759 = vunpack.c.h.s8.bf16 %v359
    %v760 = vunpack.c.h.s8.bf16 %v360
    %v761 = vunpack.c.h.s8.bf16 %v361
    %v762 = vunpack.c.h.s8.bf16 %v362
    %v763 = vunpack.c.h.s8.bf16 %v363
    %v764 = vunpack.c.h.s8.bf16 %v364
    %v765 = vunpack.c.h.s8.bf16 %v365
    %v766 = vunpack.c.h.s8.bf16 %v366
    %v767 = vunpack.c.h.s8.bf16 %v367
    %v768 = vunpack.c.h.s8.bf16 %v368
    %v769 = vunpack.c.h.s8.bf16 %v369
    %v770 = vunpack.c.h.s8.bf16 %v370
    %v771 = vunpack.c.h.s8.bf16 %v371
    %v772 = vunpack.c.l.s8.bf16 %v372
    %v773 = vunpack.c.l.s8.bf16 %v373
    %v774 = vunpack.c.l.s8.bf16 %v374
    %v775 = vunpack.c.l.s8.bf16 %v375
    %v776 = vunpack.c.l.s8.bf16 %v376
    %v777 = vunpack.c.l.s8.bf16 %v377
    %v778 = vunpack.c.l.s8.bf16 %v378
    %v779 = vunpack.c.l.s8.bf16 %v379
    %v780 = vunpack.c.l.s8.bf16 %v380
    %v781 = vunpack.c.l.s8.bf16 %v381
    %v782 = vunpack.c.l.s8.bf16 %v382
    %v783 = vunpack.c.l.s8.bf16 %v383
    %v784 = vunpack.c.l.s8.bf16 %v384
    %v785 = vunpack.c.l.s8.bf16 %v385
    %v786 = vunpack.c.l.s8.bf16 %v386
    %v787 = vunpack.c.l.s8.bf16 %v387
    %v788 = vunpack.c.h.s8.bf16 %v372
    %v789 = vunpack.c.h.s8.bf16 %v373
    %v790 = vunpack.c.h.s8.bf16 %v374
    %v791 = vunpack.c.h.s8.bf16 %v375
    %v792 = vunpack.c.h.s8.bf16 %v376
    %v793 = vunpack.c.h.s8.bf16 %v377
    %v794 = vunpack.c.h.s8.bf16 %v378
    %v795 = vunpack.c.h.s8.bf16 %v379
    %v796 = vunpack.c.h.s8.bf16 %v380
    %v797 = vunpack.c.h.s8.bf16 %v381
    %v798 = vunpack.c.h.s8.bf16 %v382
    %v799 = vunpack.c.h.s8.bf16 %v383
    %v800 = vunpack.c.h.s8.bf16 %v384
    %v801 = vunpack.c.h.s8.bf16 %v385
    %v802 = vunpack.c.h.s8.bf16 %v386
    %v803 = vunpack.c.h.s8.bf16 %v387
    %v804 = vunpack.c.l.s8.bf16 %v388
    %v805 = vunpack.c.l.s8.bf16 %v389
    %v806 = vunpack.c.l.s8.bf16 %v390
    %v807 = vunpack.c.l.s8.bf16 %v391
    %v808 = vunpack.c.l.s8.bf16 %v392
    %v809 = vunpack.c.l.s8.bf16 %v393
    %v810 = vunpack.c.l.s8.bf16 %v394
    %v811 = vunpack.c.l.s8.bf16 %v395
    %v812 = vunpack.c.l.s8.bf16 %v396
    %v813 = vunpack.c.l.s8.bf16 %v397
    %v814 = vunpack.c.l.s8.bf16 %v398
    %v815 = vunpack.c.l.s8.bf16 %v399
    %v816 = vunpack.c.l.s8.bf16 %v400
    %v817 = vunpack.c.l.s8.bf16 %v401
    %v818 = vunpack.c.l.s8.bf16 %v402
    %v819 = vunpack.c.l.s8.bf16 %v403
    %v820 = vunpack.c.h.s8.bf16 %v388
    %v821 = vunpack.c.h.s8.bf16 %v389
    %v822 = vunpack.c.h.s8.bf16 %v390
    %v823 = vunpack.c.h.s8.bf16 %v391
    %v824 = vunpack.c.h.s8.bf16 %v392
    %v825 = vunpack.c.h.s8.bf16 %v393
    %v826 = vunpack.c.h.s8.bf16 %v394
    %v827 = vunpack.c.h.s8.bf16 %v395
    %v828 = vunpack.c.h.s8.bf16 %v396
    %v829 = vunpack.c.h.s8.bf16 %v397
    %v830 = vunpack.c.h.s8.bf16 %v398
    %v831 = vunpack.c.h.s8.bf16 %v399
    %v832 = vunpack.c.h.s8.bf16 %v400
    %v833 = vunpack.c.h.s8.bf16 %v401
    %v834 = vunpack.c.h.s8.bf16 %v402
    %v835 = vunpack.c.h.s8.bf16 %v403
    %v836 = vunpack.c.l.s8.bf16 %v404
    %v837 = vunpack.c.l.s8.bf16 %v405
    %v838 = vunpack.c.l.s8.bf16 %v406
    %v839 = vunpack.c.l.s8.bf16 %v407
    %v840 = vunpack.c.l.s8.bf16 %v408
    %v841 = vunpack.c.l.s8.bf16 %v409
    %v842 = vunpack.c.l.s8.bf16 %v410
    %v843 = vunpack.c.l.s8.bf16 %v411
    %v844 = vunpack.c.l.s8.bf16 %v412
    %v845 = vunpack.c.l.s8.bf16 %v413
    %v846 = vunpack.c.l.s8.bf16 %v414
    %v847 = vunpack.c.l.s8.bf16 %v415
    %v848 = vunpack.c.l.s8.bf16 %v416
    %v849 = vunpack.c.l.s8.bf16 %v417
    %v850 = vunpack.c.l.s8.bf16 %v418
    %v851 = vunpack.c.l.s8.bf16 %v419
    %v852 = vunpack.c.h.s8.bf16 %v404
    %v853 = vunpack.c.h.s8.bf16 %v405
    %v854 = vunpack.c.h.s8.bf16 %v406
    %v855 = vunpack.c.h.s8.bf16 %v407
    %v856 = vunpack.c.h.s8.bf16 %v408
    %v857 = vunpack.c.h.s8.bf16 %v409
    %v858 = vunpack.c.h.s8.bf16 %v410
    %v859 = vunpack.c.h.s8.bf16 %v411
    %v860 = vunpack.c.h.s8.bf16 %v412
    %v861 = vunpack.c.h.s8.bf16 %v413
    %v862 = vunpack.c.h.s8.bf16 %v414
    %v863 = vunpack.c.h.s8.bf16 %v415
    %v864 = vunpack.c.h.s8.bf16 %v416
    %v865 = vunpack.c.h.s8.bf16 %v417
    %v866 = vunpack.c.h.s8.bf16 %v418
    %v867 = vunpack.c.h.s8.bf16 %v419
    %v868 = vunpack.c.l.s8.bf16 %v420
    %v869 = vunpack.c.l.s8.bf16 %v421
    %v870 = vunpack.c.l.s8.bf16 %v422
    %v871 = vunpack.c.l.s8.bf16 %v423
    %v872 = vunpack.c.l.s8.bf16 %v424
    %v873 = vunpack.c.l.s8.bf16 %v425
    %v874 = vunpack.c.l.s8.bf16 %v426
    %v875 = vunpack.c.l.s8.bf16 %v427
    %v876 = vunpack.c.l.s8.bf16 %v428
    %v877 = vunpack.c.l.s8.bf16 %v429
    %v878 = vunpack.c.l.s8.bf16 %v430
    %v879 = vunpack.c.l.s8.bf16 %v431
    %v880 = vunpack.c.l.s8.bf16 %v432
    %v881 = vunpack.c.l.s8.bf16 %v433
    %v882 = vunpack.c.l.s8.bf16 %v434
    %v883 = vunpack.c.l.s8.bf16 %v435
    %v884 = vunpack.c.h.s8.bf16 %v420
    %v885 = vunpack.c.h.s8.bf16 %v421
    %v886 = vunpack.c.h.s8.bf16 %v422
    %v887 = vunpack.c.h.s8.bf16 %v423
    %v888 = vunpack.c.h.s8.bf16 %v424
    %v889 = vunpack.c.h.s8.bf16 %v425
    %v890 = vunpack.c.h.s8.bf16 %v426
    %v891 = vunpack.c.h.s8.bf16 %v427
    %v892 = vunpack.c.h.s8.bf16 %v428
    %v893 = vunpack.c.h.s8.bf16 %v429
    %v894 = vunpack.c.h.s8.bf16 %v430
    %v895 = vunpack.c.h.s8.bf16 %v431
    %v896 = vunpack.c.h.s8.bf16 %v432
    %v897 = vunpack.c.h.s8.bf16 %v433
    %v898 = vunpack.c.h.s8.bf16 %v434
    %v899 = vunpack.c.h.s8.bf16 %v435
    %v900 = vunpack.c.l.s8.bf16 %v436
    %v901 = vunpack.c.l.s8.bf16 %v437
    %v902 = vunpack.c.l.s8.bf16 %v438
    %v903 = vunpack.c.l.s8.bf16 %v439
    %v904 = vunpack.c.l.s8.bf16 %v440
    %v905 = vunpack.c.l.s8.bf16 %v441
    %v906 = vunpack.c.l.s8.bf16 %v442
    %v907 = vunpack.c.l.s8.bf16 %v443
    %v908 = vunpack.c.l.s8.bf16 %v444
    %v909 = vunpack.c.l.s8.bf16 %v445
    %v910 = vunpack.c.l.s8.bf16 %v446
    %v911 = vunpack.c.l.s8.bf16 %v447
    %v912 = vunpack.c.l.s8.bf16 %v448
    %v913 = vunpack.c.l.s8.bf16 %v449
    %v914 = vunpack.c.l.s8.bf16 %v450
    %v915 = vunpack.c.l.s8.bf16 %v451
    %v916 = vunpack.c.h.s8.bf16 %v436
    %v917 = vunpack.c.h.s8.bf16 %v437
    %v918 = vunpack.c.h.s8.bf16 %v438
    %v919 = vunpack.c.h.s8.bf16 %v439
    %v920 = vunpack.c.h.s8.bf16 %v440
    %v921 = vunpack.c.h.s8.bf16 %v441
    %v922 = vunpack.c.h.s8.bf16 %v442
    %v923 = vunpack.c.h.s8.bf16 %v443
    %v924 = vunpack.c.h.s8.bf16 %v444
    %v925 = vunpack.c.h.s8.bf16 %v445
    %v926 = vunpack.c.h.s8.bf16 %v446
    %v927 = vunpack.c.h.s8.bf16 %v447
    %v928 = vunpack.c.h.s8.bf16 %v448
    %v929 = vunpack.c.h.s8.bf16 %v449
    %v930 = vunpack.c.h.s8.bf16 %v450
    %v931 = vunpack.c.h.s8.bf16 %v451
    %v932 = vunpack.c.l.s8.bf16 %v452
    %v933 = vunpack.c.l.s8.bf16 %v453
    %v934 = vunpack.c.l.s8.bf16 %v454
    %v935 = vunpack.c.l.s8.bf16 %v455
    %v936 = vunpack.c.l.s8.bf16 %v456
    %v937 = vunpack.c.l.s8.bf16 %v457
    %v938 = vunpack.c.l.s8.bf16 %v458
    %v939 = vunpack.c.l.s8.bf16 %v459
    %v940 = vunpack.c.l.s8.bf16 %v460
    %v941 = vunpack.c.l.s8.bf16 %v461
    %v942 = vunpack.c.l.s8.bf16 %v462
    %v943 = vunpack.c.l.s8.bf16 %v463
    %v944 = vunpack.c.l.s8.bf16 %v464
    %v945 = vunpack.c.l.s8.bf16 %v465
    %v946 = vunpack.c.l.s8.bf16 %v466
    %v947 = vunpack.c.l.s8.bf16 %v467
    %v948 = vunpack.c.h.s8.bf16 %v452
    %v949 = vunpack.c.h.s8.bf16 %v453
    %v950 = vunpack.c.h.s8.bf16 %v454
    %v951 = vunpack.c.h.s8.bf16 %v455
    %v952 = vunpack.c.h.s8.bf16 %v456
    %v953 = vunpack.c.h.s8.bf16 %v457
    %v954 = vunpack.c.h.s8.bf16 %v458
    %v955 = vunpack.c.h.s8.bf16 %v459
    %v956 = vunpack.c.h.s8.bf16 %v460
    %v957 = vunpack.c.h.s8.bf16 %v461
    %v958 = vunpack.c.h.s8.bf16 %v462
    %v959 = vunpack.c.h.s8.bf16 %v463
    %v960 = vunpack.c.h.s8.bf16 %v464
    %v961 = vunpack.c.h.s8.bf16 %v465
    %v962 = vunpack.c.h.s8.bf16 %v466
    %v963 = vunpack.c.h.s8.bf16 %v467
    %v964 = vunpack.c.l.s8.bf16 %v468
    %v965 = vunpack.c.l.s8.bf16 %v469
    %v966 = vunpack.c.l.s8.bf16 %v470
    %v967 = vunpack.c.l.s8.bf16 %v471
    %v968 = vunpack.c.l.s8.bf16 %v472
    %v969 = vunpack.c.l.s8.bf16 %v473
    %v970 = vunpack.c.l.s8.bf16 %v474
    %v971 = vunpack.c.l.s8.bf16 %v475
    %v972 = vunpack.c.l.s8.bf16 %v476
    %v973 = vunpack.c.l.s8.bf16 %v477
    %v974 = vunpack.c.l.s8.bf16 %v478
    %v975 = vunpack.c.l.s8.bf16 %v479
    %v976 = vunpack.c.l.s8.bf16 %v480
    %v977 = vunpack.c.l.s8.bf16 %v481
    %v978 = vunpack.c.l.s8.bf16 %v482
    %v979 = vunpack.c.l.s8.bf16 %v483
    %v980 = vunpack.c.h.s8.bf16 %v468
    %v981 = vunpack.c.h.s8.bf16 %v469
    %v982 = vunpack.c.h.s8.bf16 %v470
    %v983 = vunpack.c.h.s8.bf16 %v471
    %v984 = vunpack.c.h.s8.bf16 %v472
    %v985 = vunpack.c.h.s8.bf16 %v473
    %v986 = vunpack.c.h.s8.bf16 %v474
    %v987 = vunpack.c.h.s8.bf16 %v475
    %v988 = vunpack.c.h.s8.bf16 %v476
    %v989 = vunpack.c.h.s8.bf16 %v477
    %v990 = vunpack.c.h.s8.bf16 %v478
    %v991 = vunpack.c.h.s8.bf16 %v479
    %v992 = vunpack.c.h.s8.bf16 %v480
    %v993 = vunpack.c.h.s8.bf16 %v481
    %v994 = vunpack.c.h.s8.bf16 %v482
    %v995 = vunpack.c.h.s8.bf16 %v483
    %996 = vmatprep.subr.bf16.mxu0 %v485
    %997 = vmatpush1.bf16.msra.mxu0 %v484
    %998 = vmatprep.subr.bf16.mxu0 %v501
    %999 = vmatpush1.bf16.msra.mxu0 %v500
    %1000 = vmatprep.subr.bf16.mxu0 %v517
    %1001 = vmatpush1.bf16.msra.mxu0 %v516
    %1002 = vmatprep.subr.bf16.mxu0 %v533
    %1003 = vmatpush1.bf16.msra.mxu0 %v532
    %1004 = vmatprep.subr.bf16.mxu0 %v549
    %1005 = vmatpush1.bf16.msra.mxu0 %v548
    %1006 = vmatprep.subr.bf16.mxu0 %v565
    %1007 = vmatpush1.bf16.msra.mxu0 %v564
    %1008 = vmatprep.subr.bf16.mxu0 %v581
    %1009 = vmatpush1.bf16.msra.mxu0 %v580
    %1010 = vmatprep.subr.bf16.mxu0 %v597
    %1011 = vmatpush1.bf16.msra.mxu0 %v596
    %1012 = vmatprep.subr.bf16.mxu0 %v613
    %1013 = vmatpush1.bf16.msra.mxu0 %v612
    %1014 = vmatprep.subr.bf16.mxu0 %v629
    %1015 = vmatpush1.bf16.msra.mxu0 %v628
    %1016 = vmatprep.subr.bf16.mxu0 %v645
    %1017 = vmatpush1.bf16.msra.mxu0 %v644
    %1018 = vmatprep.subr.bf16.mxu0 %v661
    %1019 = vmatpush1.bf16.msra.mxu0 %v660
    %1020 = vmatprep.subr.bf16.mxu0 %v677
    %1021 = vmatpush1.bf16.msra.mxu0 %v676
    %1022 = vmatprep.subr.bf16.mxu0 %v693
    %1023 = vmatpush1.bf16.msra.mxu0 %v692
    %1024 = vmatprep.subr.bf16.mxu0 %v709
    %1025 = vmatpush1.bf16.msra.mxu0 %v708
    %1026 = vmatprep.subr.bf16.mxu0 %v725
    %1027 = vmatpush1.bf16.msra.mxu0 %v724
    %1028 = vmatprep.mubr.bf16.mxu0 %v225
    %1029 = vmatmul.mubr.bf16.gmra.mrb[0].mxu0 %v224
    %v1030 = vpop.f32.mrb[0].mxu0
    %v1031 = vadd.f32 0.0, %v1030
    %v1032 = vpop.f32.mrb[0].mxu0
    %v1033 = vadd.f32 0.0, %v1032
    %v1034 = vpop.f32.mrb[0].mxu0
    %v1035 = vadd.f32 0.0, %v1034
    %v1036 = vpop.f32.mrb[0].mxu0
    %v1037 = vadd.f32 0.0, %v1036
    %1038 = vdwg.mxu0
    %1039 = vmatprep.subr.bf16.mxu0 %v741
    %1040 = vmatpush1.bf16.msra.mxu0 %v740
    %1041 = vmatprep.subr.bf16.mxu0 %v757
    %1042 = vmatpush1.bf16.msra.mxu0 %v756
    %1043 = vmatprep.subr.bf16.mxu0 %v773
    %1044 = vmatpush1.bf16.msra.mxu0 %v772
    %1045 = vmatprep.subr.bf16.mxu0 %v789
    %1046 = vmatpush1.bf16.msra.mxu0 %v788
    %1047 = vmatprep.subr.bf16.mxu0 %v805
    %1048 = vmatpush1.bf16.msra.mxu0 %v804
    %1049 = vmatprep.subr.bf16.mxu0 %v821
    %1050 = vmatpush1.bf16.msra.mxu0 %v820
    %1051 = vmatprep.subr.bf16.mxu0 %v837
    %1052 = vmatpush1.bf16.msra.mxu0 %v836
    %1053 = vmatprep.subr.bf16.mxu0 %v853
    %1054 = vmatpush1.bf16.msra.mxu0 %v852
    %1055 = vmatprep.subr.bf16.mxu0 %v869
    %1056 = vmatpush1.bf16.msra.mxu0 %v868
    %1057 = vmatprep.subr.bf16.mxu0 %v885
    %1058 = vmatpush1.bf16.msra.mxu0 %v884
    %1059 = vmatprep.subr.bf16.mxu0 %v901
    %1060 = vmatpush1.bf16.msra.mxu0 %v900
    %1061 = vmatprep.subr.bf16.mxu0 %v917
    %1062 = vmatpush1.bf16.msra.mxu0 %v916
    %1063 = vmatprep.subr.bf16.mxu0 %v933
    %1064 = vmatpush1.bf16.msra.mxu0 %v932
    %1065 = vmatprep.subr.bf16.mxu0 %v949
    %1066 = vmatpush1.bf16.msra.mxu0 %v948
    %1067 = vmatprep.subr.bf16.mxu0 %v965
    %1068 = vmatpush1.bf16.msra.mxu0 %v964
    %1069 = vmatprep.subr.bf16.mxu0 %v981
    %1070 = vmatpush1.bf16.msra.mxu0 %v980
    %1071 = vmatprep.mubr.bf16.mxu0 %v227
    %1072 = vmatmul.mubr.bf16.gmra.mrb[0].mxu0 %v226
    %v1073 = vpop.f32.mrb[0].mxu0
    %v1074 = vadd.f32 %v1031, %v1073
    %v1075 = vpop.f32.mrb[0].mxu0
    %v1076 = vadd.f32 %v1033, %v1075
    %v1077 = vpop.f32.mrb[0].mxu0
    %v1078 = vadd.f32 %v1035, %v1077
    %v1079 = vpop.f32.mrb[0].mxu0
    %v1080 = vadd.f32 %v1037, %v1079
    %1081 = vdwg.mxu0
    %1082 = vmatprep.subr.bf16.mxu0 %v487
    %1083 = vmatpush1.bf16.msra.mxu0 %v486
    %1084 = vmatprep.subr.bf16.mxu0 %v503
    %1085 = vmatpush1.bf16.msra.mxu0 %v502
    %1086 = vmatprep.subr.bf16.mxu0 %v519
    %1087 = vmatpush1.bf16.msra.mxu0 %v518
    %1088 = vmatprep.subr.bf16.mxu0 %v535
    %1089 = vmatpush1.bf16.msra.mxu0 %v534
    %1090 = vmatprep.subr.bf16.mxu0 %v551
    %1091 = vmatpush1.bf16.msra.mxu0 %v550
    %1092 = vmatprep.subr.bf16.mxu0 %v567
    %1093 = vmatpush1.bf16.msra.mxu0 %v566
    %1094 = vmatprep.subr.bf16.mxu0 %v583
    %1095 = vmatpush1.bf16.msra.mxu0 %v582
    %1096 = vmatprep.subr.bf16.mxu0 %v599
    %1097 = vmatpush1.bf16.msra.mxu0 %v598
    %1098 = vmatprep.subr.bf16.mxu0 %v615
    %1099 = vmatpush1.bf16.msra.mxu0 %v614
    %1100 = vmatprep.subr.bf16.mxu0 %v631
    %1101 = vmatpush1.bf16.msra.mxu0 %v630
    %1102 = vmatprep.subr.bf16.mxu0 %v647
    %1103 = vmatpush1.bf16.msra.mxu0 %v646
    %1104 = vmatprep.subr.bf16.mxu0 %v663
    %1105 = vmatpush1.bf16.msra.mxu0 %v662
    %1106 = vmatprep.subr.bf16.mxu0 %v679
    %1107 = vmatpush1.bf16.msra.mxu0 %v678
    %1108 = vmatprep.subr.bf16.mxu0 %v695
    %1109 = vmatpush1.bf16.msra.mxu0 %v694
    %1110 = vmatprep.subr.bf16.mxu0 %v711
    %1111 = vmatpush1.bf16.msra.mxu0 %v710
    %1112 = vmatprep.subr.bf16.mxu0 %v727
    %1113 = vmatpush1.bf16.msra.mxu0 %v726
    %1114 = vmatprep.mubr.bf16.mxu0 %v225
    %1115 = vmatmul.mubr.bf16.gmra.mrb[0].mxu0 %v224
    %v1116 = vpop.f32.mrb[0].mxu0
    %v1117 = vadd.f32 0.0, %v1116
    %v1118 = vpop.f32.mrb[0].mxu0
    %v1119 = vadd.f32 0.0, %v1118
    %v1120 = vpop.f32.mrb[0].mxu0
    %v1121 = vadd.f32 0.0, %v1120
    %v1122 = vpop.f32.mrb[0].mxu0
    %v1123 = vadd.f32 0.0, %v1122
    %1124 = vdwg.mxu0
    %1125 = vmatprep.subr.bf16.mxu0 %v743
    %1126 = vmatpush1.bf16.msra.mxu0 %v742
    %1127 = vmatprep.subr.bf16.mxu0 %v759
    %1128 = vmatpush1.bf16.msra.mxu0 %v758
    %1129 = vmatprep.subr.bf16.mxu0 %v775
    %1130 = vmatpush1.bf16.msra.mxu0 %v774
    %1131 = vmatprep.subr.bf16.mxu0 %v791
    %1132 = vmatpush1.bf16.msra.mxu0 %v790
    %1133 = vmatprep.subr.bf16.mxu0 %v807
    %1134 = vmatpush1.bf16.msra.mxu0 %v806
    %1135 = vmatprep.subr.bf16.mxu0 %v823
    %1136 = vmatpush1.bf16.msra.mxu0 %v822
    %1137 = vmatprep.subr.bf16.mxu0 %v839
    %1138 = vmatpush1.bf16.msra.mxu0 %v838
    %1139 = vmatprep.subr.bf16.mxu0 %v855
    %1140 = vmatpush1.bf16.msra.mxu0 %v854
    %1141 = vmatprep.subr.bf16.mxu0 %v871
    %1142 = vmatpush1.bf16.msra.mxu0 %v870
    %1143 = vmatprep.subr.bf16.mxu0 %v887
    %1144 = vmatpush1.bf16.msra.mxu0 %v886
    %1145 = vmatprep.subr.bf16.mxu0 %v903
    %1146 = vmatpush1.bf16.msra.mxu0 %v902
    %1147 = vmatprep.subr.bf16.mxu0 %v919
    %1148 = vmatpush1.bf16.msra.mxu0 %v918
    %1149 = vmatprep.subr.bf16.mxu0 %v935
    %1150 = vmatpush1.bf16.msra.mxu0 %v934
    %1151 = vmatprep.subr.bf16.mxu0 %v951
    %1152 = vmatpush1.bf16.msra.mxu0 %v950
    %1153 = vmatprep.subr.bf16.mxu0 %v967
    %1154 = vmatpush1.bf16.msra.mxu0 %v966
    %1155 = vmatprep.subr.bf16.mxu0 %v983
    %1156 = vmatpush1.bf16.msra.mxu0 %v982
    %1157 = vmatprep.mubr.bf16.mxu0 %v227
    %1158 = vmatmul.mubr.bf16.gmra.mrb[0].mxu0 %v226
    %v1159 = vpop.f32.mrb[0].mxu0
    %v1160 = vadd.f32 %v1117, %v1159
    %v1161 = vpop.f32.mrb[0].mxu0
    %v1162 = vadd.f32 %v1119, %v1161
    %v1163 = vpop.f32.mrb[0].mxu0
    %v1164 = vadd.f32 %v1121, %v1163
    %v1165 = vpop.f32.mrb[0].mxu0
    %v1166 = vadd.f32 %v1123, %v1165
    %1167 = vdwg.mxu0
    %1168 = vmatprep.subr.bf16.mxu0 %v489
    %1169 = vmatpush1.bf16.msra.mxu0 %v488
    %1170 = vmatprep.subr.bf16.mxu0 %v505
    %1171 = vmatpush1.bf16.msra.mxu0 %v504
    %1172 = vmatprep.subr.bf16.mxu0 %v521
    %1173 = vmatpush1.bf16.msra.mxu0 %v520
    %1174 = vmatprep.subr.bf16.mxu0 %v537
    %1175 = vmatpush1.bf16.msra.mxu0 %v536
    %1176 = vmatprep.subr.bf16.mxu0 %v553
    %1177 = vmatpush1.bf16.msra.mxu0 %v552
    %1178 = vmatprep.subr.bf16.mxu0 %v569
    %1179 = vmatpush1.bf16.msra.mxu0 %v568
    %1180 = vmatprep.subr.bf16.mxu0 %v585
    %1181 = vmatpush1.bf16.msra.mxu0 %v584
    %1182 = vmatprep.subr.bf16.mxu0 %v601
    %1183 = vmatpush1.bf16.msra.mxu0 %v600
    %1184 = vmatprep.subr.bf16.mxu0 %v617
    %1185 = vmatpush1.bf16.msra.mxu0 %v616
    %1186 = vmatprep.subr.bf16.mxu0 %v633
    %1187 = vmatpush1.bf16.msra.mxu0 %v632
    %1188 = vmatprep.subr.bf16.mxu0 %v649
    %1189 = vmatpush1.bf16.msra.mxu0 %v648
    %1190 = vmatprep.subr.bf16.mxu0 %v665
    %1191 = vmatpush1.bf16.msra.mxu0 %v664
    %1192 = vmatprep.subr.bf16.mxu0 %v681
    %1193 = vmatpush1.bf16.msra.mxu0 %v680
    %1194 = vmatprep.subr.bf16.mxu0 %v697
    %1195 = vmatpush1.bf16.msra.mxu0 %v696
    %1196 = vmatprep.subr.bf16.mxu0 %v713
    %1197 = vmatpush1.bf16.msra.mxu0 %v712
    %1198 = vmatprep.subr.bf16.mxu0 %v729
    %1199 = vmatpush1.bf16.msra.mxu0 %v728
    %1200 = vmatprep.mubr.bf16.mxu0 %v225
    %1201 = vmatmul.mubr.bf16.gmra.mrb[0].mxu0 %v224
    %v1202 = vpop.f32.mrb[0].mxu0
    %v1203 = vadd.f32 0.0, %v1202
    %v1204 = vpop.f32.mrb[0].mxu0
    %v1205 = vadd.f32 0.0, %v1204
    %v1206 = vpop.f32.mrb[0].mxu0
    %v1207 = vadd.f32 0.0, %v1206
    %v1208 = vpop.f32.mrb[0].mxu0
    %v1209 = vadd.f32 0.0, %v1208
    %1210 = vdwg.mxu0
    %1211 = vmatprep.subr.bf16.mxu0 %v745
    %1212 = vmatpush1.bf16.msra.mxu0 %v744
    %1213 = vmatprep.subr.bf16.mxu0 %v761
    %1214 = vmatpush1.bf16.msra.mxu0 %v760
    %1215 = vmatprep.subr.bf16.mxu0 %v777
    %1216 = vmatpush1.bf16.msra.mxu0 %v776
    %1217 = vmatprep.subr.bf16.mxu0 %v793
    %1218 = vmatpush1.bf16.msra.mxu0 %v792
    %1219 = vmatprep.subr.bf16.mxu0 %v809
    %1220 = vmatpush1.bf16.msra.mxu0 %v808
    %1221 = vmatprep.subr.bf16.mxu0 %v825
    %1222 = vmatpush1.bf16.msra.mxu0 %v824
    %1223 = vmatprep.subr.bf16.mxu0 %v841
    %1224 = vmatpush1.bf16.msra.mxu0 %v840
    %1225 = vmatprep.subr.bf16.mxu0 %v857
    %1226 = vmatpush1.bf16.msra.mxu0 %v856
    %1227 = vmatprep.subr.bf16.mxu0 %v873
    %1228 = vmatpush1.bf16.msra.mxu0 %v872
    %1229 = vmatprep.subr.bf16.mxu0 %v889
    %1230 = vmatpush1.bf16.msra.mxu0 %v888
    %1231 = vmatprep.subr.bf16.mxu0 %v905
    %1232 = vmatpush1.bf16.msra.mxu0 %v904
    %1233 = vmatprep.subr.bf16.mxu0 %v921
    %1234 = vmatpush1.bf16.msra.mxu0 %v920
    %1235 = vmatprep.subr.bf16.mxu0 %v937
    %1236 = vmatpush1.bf16.msra.mxu0 %v936
    %1237 = vmatprep.subr.bf16.mxu0 %v953
    %1238 = vmatpush1.bf16.msra.mxu0 %v952
    %1239 = vmatprep.subr.bf16.mxu0 %v969
    %1240 = vmatpush1.bf16.msra.mxu0 %v968
    %1241 = vmatprep.subr.bf16.mxu0 %v985
    %1242 = vmatpush1.bf16.msra.mxu0 %v984
    %1243 = vmatprep.mubr.bf16.mxu0 %v227
    %1244 = vmatmul.mubr.bf16.gmra.mrb[0].mxu0 %v226
    %v1245 = vpop.f32.mrb[0].mxu0
    %v1246 = vadd.f32 %v1203, %v1245
    %v1247 = vpop.f32.mrb[0].mxu0
    %v1248 = vadd.f32 %v1205, %v1247
    %v1249 = vpop.f32.mrb[0].mxu0
    %v1250 = vadd.f32 %v1207, %v1249
    %v1251 = vpop.f32.mrb[0].mxu0
    %v1252 = vadd.f32 %v1209, %v1251
    %1253 = vdwg.mxu0
    %1254 = vmatprep.subr.bf16.mxu0 %v491
    %1255 = vmatpush1.bf16.msra.mxu0 %v490
    %1256 = vmatprep.subr.bf16.mxu0 %v507
    %1257 = vmatpush1.bf16.msra.mxu0 %v506
    %1258 = vmatprep.subr.bf16.mxu0 %v523
    %1259 = vmatpush1.bf16.msra.mxu0 %v522
    %1260 = vmatprep.subr.bf16.mxu0 %v539
    %1261 = vmatpush1.bf16.msra.mxu0 %v538
    %1262 = vmatprep.subr.bf16.mxu0 %v555
    %1263 = vmatpush1.bf16.msra.mxu0 %v554
    %1264 = vmatprep.subr.bf16.mxu0 %v571
    %1265 = vmatpush1.bf16.msra.mxu0 %v570
    %1266 = vmatprep.subr.bf16.mxu0 %v587
    %1267 = vmatpush1.bf16.msra.mxu0 %v586
    %1268 = vmatprep.subr.bf16.mxu0 %v603
    %1269 = vmatpush1.bf16.msra.mxu0 %v602
    %1270 = vmatprep.subr.bf16.mxu0 %v619
    %1271 = vmatpush1.bf16.msra.mxu0 %v618
    %1272 = vmatprep.subr.bf16.mxu0 %v635
    %1273 = vmatpush1.bf16.msra.mxu0 %v634
    %1274 = vmatprep.subr.bf16.mxu0 %v651
    %1275 = vmatpush1.bf16.msra.mxu0 %v650
    %1276 = vmatprep.subr.bf16.mxu0 %v667
    %1277 = vmatpush1.bf16.msra.mxu0 %v666
    %1278 = vmatprep.subr.bf16.mxu0 %v683
    %1279 = vmatpush1.bf16.msra.mxu0 %v682
    %1280 = vmatprep.subr.bf16.mxu0 %v699
    %1281 = vmatpush1.bf16.msra.mxu0 %v698
    %1282 = vmatprep.subr.bf16.mxu0 %v715
    %1283 = vmatpush1.bf16.msra.mxu0 %v714
    %1284 = vmatprep.subr.bf16.mxu0 %v731
    %1285 = vmatpush1.bf16.msra.mxu0 %v730
    %1286 = vmatprep.mubr.bf16.mxu0 %v225
    %1287 = vmatmul.mubr.bf16.gmra.mrb[0].mxu0 %v224
    %v1288 = vpop.f32.mrb[0].mxu0
    %v1289 = vadd.f32 0.0, %v1288
    %v1290 = vpop.f32.mrb[0].mxu0
    %v1291 = vadd.f32 0.0, %v1290
    %v1292 = vpop.f32.mrb[0].mxu0
    %v1293 = vadd.f32 0.0, %v1292
    %v1294 = vpop.f32.mrb[0].mxu0
    %v1295 = vadd.f32 0.0, %v1294
    %1296 = vdwg.mxu0
    %1297 = vmatprep.subr.bf16.mxu0 %v747
    %1298 = vmatpush1.bf16.msra.mxu0 %v746
    %1299 = vmatprep.subr.bf16.mxu0 %v763
    %1300 = vmatpush1.bf16.msra.mxu0 %v762
    %1301 = vmatprep.subr.bf16.mxu0 %v779
    %1302 = vmatpush1.bf16.msra.mxu0 %v778
    %1303 = vmatprep.subr.bf16.mxu0 %v795
    %1304 = vmatpush1.bf16.msra.mxu0 %v794
    %1305 = vmatprep.subr.bf16.mxu0 %v811
    %1306 = vmatpush1.bf16.msra.mxu0 %v810
    %1307 = vmatprep.subr.bf16.mxu0 %v827
    %1308 = vmatpush1.bf16.msra.mxu0 %v826
    %1309 = vmatprep.subr.bf16.mxu0 %v843
    %1310 = vmatpush1.bf16.msra.mxu0 %v842
    %1311 = vmatprep.subr.bf16.mxu0 %v859
    %1312 = vmatpush1.bf16.msra.mxu0 %v858
    %1313 = vmatprep.subr.bf16.mxu0 %v875
    %1314 = vmatpush1.bf16.msra.mxu0 %v874
    %1315 = vmatprep.subr.bf16.mxu0 %v891
    %1316 = vmatpush1.bf16.msra.mxu0 %v890
    %1317 = vmatprep.subr.bf16.mxu0 %v907
    %1318 = vmatpush1.bf16.msra.mxu0 %v906
    %1319 = vmatprep.subr.bf16.mxu0 %v923
    %1320 = vmatpush1.bf16.msra.mxu0 %v922
    %1321 = vmatprep.subr.bf16.mxu0 %v939
    %1322 = vmatpush1.bf16.msra.mxu0 %v938
    %1323 = vmatprep.subr.bf16.mxu0 %v955
    %1324 = vmatpush1.bf16.msra.mxu0 %v954
    %1325 = vmatprep.subr.bf16.mxu0 %v971
    %1326 = vmatpush1.bf16.msra.mxu0 %v970
    %1327 = vmatprep.subr.bf16.mxu0 %v987
    %1328 = vmatpush1.bf16.msra.mxu0 %v986
    %1329 = vmatprep.mubr.bf16.mxu0 %v227
    %1330 = vmatmul.mubr.bf16.gmra.mrb[0].mxu0 %v226
    %v1331 = vpop.f32.mrb[0].mxu0
    %v1332 = vadd.f32 %v1289, %v1331
    %v1333 = vpop.f32.mrb[0].mxu0
    %v1334 = vadd.f32 %v1291, %v1333
    %v1335 = vpop.f32.mrb[0].mxu0
    %v1336 = vadd.f32 %v1293, %v1335
    %v1337 = vpop.f32.mrb[0].mxu0
    %v1338 = vadd.f32 %v1295, %v1337
    %1339 = vdwg.mxu0
    %1340 = vmatprep.subr.bf16.mxu0 %v493
    %1341 = vmatpush1.bf16.msra.mxu0 %v492
    %1342 = vmatprep.subr.bf16.mxu0 %v509
    %1343 = vmatpush1.bf16.msra.mxu0 %v508
    %1344 = vmatprep.subr.bf16.mxu0 %v525
    %1345 = vmatpush1.bf16.msra.mxu0 %v524
    %1346 = vmatprep.subr.bf16.mxu0 %v541
    %1347 = vmatpush1.bf16.msra.mxu0 %v540
    %1348 = vmatprep.subr.bf16.mxu0 %v557
    %1349 = vmatpush1.bf16.msra.mxu0 %v556
    %1350 = vmatprep.subr.bf16.mxu0 %v573
    %1351 = vmatpush1.bf16.msra.mxu0 %v572
    %1352 = vmatprep.subr.bf16.mxu0 %v589
    %1353 = vmatpush1.bf16.msra.mxu0 %v588
    %1354 = vmatprep.subr.bf16.mxu0 %v605
    %1355 = vmatpush1.bf16.msra.mxu0 %v604
    %1356 = vmatprep.subr.bf16.mxu0 %v621
    %1357 = vmatpush1.bf16.msra.mxu0 %v620
    %1358 = vmatprep.subr.bf16.mxu0 %v637
    %1359 = vmatpush1.bf16.msra.mxu0 %v636
    %1360 = vmatprep.subr.bf16.mxu0 %v653
    %1361 = vmatpush1.bf16.msra.mxu0 %v652
    %1362 = vmatprep.subr.bf16.mxu0 %v669
    %1363 = vmatpush1.bf16.msra.mxu0 %v668
    %1364 = vmatprep.subr.bf16.mxu0 %v685
    %1365 = vmatpush1.bf16.msra.mxu0 %v684
    %1366 = vmatprep.subr.bf16.mxu0 %v701
    %1367 = vmatpush1.bf16.msra.mxu0 %v700
    %1368 = vmatprep.subr.bf16.mxu0 %v717
    %1369 = vmatpush1.bf16.msra.mxu0 %v716
    %1370 = vmatprep.subr.bf16.mxu0 %v733
    %1371 = vmatpush1.bf16.msra.mxu0 %v732
    %1372 = vmatprep.mubr.bf16.mxu0 %v225
    %1373 = vmatmul.mubr.bf16.gmra.mrb[0].mxu0 %v224
    %v1374 = vpop.f32.mrb[0].mxu0
    %v1375 = vadd.f32 0.0, %v1374
    %v1376 = vpop.f32.mrb[0].mxu0
    %v1377 = vadd.f32 0.0, %v1376
    %v1378 = vpop.f32.mrb[0].mxu0
    %v1379 = vadd.f32 0.0, %v1378
    %v1380 = vpop.f32.mrb[0].mxu0
    %v1381 = vadd.f32 0.0, %v1380
    %1382 = vdwg.mxu0
    %1383 = vmatprep.subr.bf16.mxu0 %v749
    %1384 = vmatpush1.bf16.msra.mxu0 %v748
    %1385 = vmatprep.subr.bf16.mxu0 %v765
    %1386 = vmatpush1.bf16.msra.mxu0 %v764
    %1387 = vmatprep.subr.bf16.mxu0 %v781
    %1388 = vmatpush1.bf16.msra.mxu0 %v780
    %1389 = vmatprep.subr.bf16.mxu0 %v797
    %1390 = vmatpush1.bf16.msra.mxu0 %v796
    %1391 = vmatprep.subr.bf16.mxu0 %v813
    %1392 = vmatpush1.bf16.msra.mxu0 %v812
    %1393 = vmatprep.subr.bf16.mxu0 %v829
    %1394 = vmatpush1.bf16.msra.mxu0 %v828
    %1395 = vmatprep.subr.bf16.mxu0 %v845
    %1396 = vmatpush1.bf16.msra.mxu0 %v844
    %1397 = vmatprep.subr.bf16.mxu0 %v861
    %1398 = vmatpush1.bf16.msra.mxu0 %v860
    %1399 = vmatprep.subr.bf16.mxu0 %v877
    %1400 = vmatpush1.bf16.msra.mxu0 %v876
    %1401 = vmatprep.subr.bf16.mxu0 %v893
    %1402 = vmatpush1.bf16.msra.mxu0 %v892
    %1403 = vmatprep.subr.bf16.mxu0 %v909
    %1404 = vmatpush1.bf16.msra.mxu0 %v908
    %1405 = vmatprep.subr.bf16.mxu0 %v925
    %1406 = vmatpush1.bf16.msra.mxu0 %v924
    %1407 = vmatprep.subr.bf16.mxu0 %v941
    %1408 = vmatpush1.bf16.msra.mxu0 %v940
    %1409 = vmatprep.subr.bf16.mxu0 %v957
    %1410 = vmatpush1.bf16.msra.mxu0 %v956
    %1411 = vmatprep.subr.bf16.mxu0 %v973
    %1412 = vmatpush1.bf16.msra.mxu0 %v972
    %1413 = vmatprep.subr.bf16.mxu0 %v989
    %1414 = vmatpush1.bf16.msra.mxu0 %v988
    %1415 = vmatprep.mubr.bf16.mxu0 %v227
    %1416 = vmatmul.mubr.bf16.gmra.mrb[0].mxu0 %v226
    %v1417 = vpop.f32.mrb[0].mxu0
    %v1418 = vadd.f32 %v1375, %v1417
    %v1419 = vpop.f32.mrb[0].mxu0
    %v1420 = vadd.f32 %v1377, %v1419
    %v1421 = vpop.f32.mrb[0].mxu0
    %v1422 = vadd.f32 %v1379, %v1421
    %v1423 = vpop.f32.mrb[0].mxu0
    %v1424 = vadd.f32 %v1381, %v1423
    %1425 = vdwg.mxu0
    %1426 = vmatprep.subr.bf16.mxu0 %v495
    %1427 = vmatpush1.bf16.msra.mxu0 %v494
    %1428 = vmatprep.subr.bf16.mxu0 %v511
    %1429 = vmatpush1.bf16.msra.mxu0 %v510
    %1430 = vmatprep.subr.bf16.mxu0 %v527
    %1431 = vmatpush1.bf16.msra.mxu0 %v526
    %1432 = vmatprep.subr.bf16.mxu0 %v543
    %1433 = vmatpush1.bf16.msra.mxu0 %v542
    %1434 = vmatprep.subr.bf16.mxu0 %v559
    %1435 = vmatpush1.bf16.msra.mxu0 %v558
    %1436 = vmatprep.subr.bf16.mxu0 %v575
    %1437 = vmatpush1.bf16.msra.mxu0 %v574
    %1438 = vmatprep.subr.bf16.mxu0 %v591
    %1439 = vmatpush1.bf16.msra.mxu0 %v590
    %1440 = vmatprep.subr.bf16.mxu0 %v607
    %1441 = vmatpush1.bf16.msra.mxu0 %v606
    %1442 = vmatprep.subr.bf16.mxu0 %v623
    %1443 = vmatpush1.bf16.msra.mxu0 %v622
    %1444 = vmatprep.subr.bf16.mxu0 %v639
    %1445 = vmatpush1.bf16.msra.mxu0 %v638
    %1446 = vmatprep.subr.bf16.mxu0 %v655
    %1447 = vmatpush1.bf16.msra.mxu0 %v654
    %1448 = vmatprep.subr.bf16.mxu0 %v671
    %1449 = vmatpush1.bf16.msra.mxu0 %v670
    %1450 = vmatprep.subr.bf16.mxu0 %v687
    %1451 = vmatpush1.bf16.msra.mxu0 %v686
    %1452 = vmatprep.subr.bf16.mxu0 %v703
    %1453 = vmatpush1.bf16.msra.mxu0 %v702
    %1454 = vmatprep.subr.bf16.mxu0 %v719
    %1455 = vmatpush1.bf16.msra.mxu0 %v718
    %1456 = vmatprep.subr.bf16.mxu0 %v735
    %1457 = vmatpush1.bf16.msra.mxu0 %v734
    %1458 = vmatprep.mubr.bf16.mxu0 %v225
    %1459 = vmatmul.mubr.bf16.gmra.mrb[0].mxu0 %v224
    %v1460 = vpop.f32.mrb[0].mxu0
    %v1461 = vadd.f32 0.0, %v1460
    %v1462 = vpop.f32.mrb[0].mxu0
    %v1463 = vadd.f32 0.0, %v1462
    %v1464 = vpop.f32.mrb[0].mxu0
    %v1465 = vadd.f32 0.0, %v1464
    %v1466 = vpop.f32.mrb[0].mxu0
    %v1467 = vadd.f32 0.0, %v1466
    %1468 = vdwg.mxu0
    %1469 = vmatprep.subr.bf16.mxu0 %v751
    %1470 = vmatpush1.bf16.msra.mxu0 %v750
    %1471 = vmatprep.subr.bf16.mxu0 %v767
    %1472 = vmatpush1.bf16.msra.mxu0 %v766
    %1473 = vmatprep.subr.bf16.mxu0 %v783
    %1474 = vmatpush1.bf16.msra.mxu0 %v782
    %1475 = vmatprep.subr.bf16.mxu0 %v799
    %1476 = vmatpush1.bf16.msra.mxu0 %v798
    %1477 = vmatprep.subr.bf16.mxu0 %v815
    %1478 = vmatpush1.bf16.msra.mxu0 %v814
    %1479 = vmatprep.subr.bf16.mxu0 %v831
    %1480 = vmatpush1.bf16.msra.mxu0 %v830
    %1481 = vmatprep.subr.bf16.mxu0 %v847
    %1482 = vmatpush1.bf16.msra.mxu0 %v846
    %1483 = vmatprep.subr.bf16.mxu0 %v863
    %1484 = vmatpush1.bf16.msra.mxu0 %v862
    %1485 = vmatprep.subr.bf16.mxu0 %v879
    %1486 = vmatpush1.bf16.msra.mxu0 %v878
    %1487 = vmatprep.subr.bf16.mxu0 %v895
    %1488 = vmatpush1.bf16.msra.mxu0 %v894
    %1489 = vmatprep.subr.bf16.mxu0 %v911
    %1490 = vmatpush1.bf16.msra.mxu0 %v910
    %1491 = vmatprep.subr.bf16.mxu0 %v927
    %1492 = vmatpush1.bf16.msra.mxu0 %v926
    %1493 = vmatprep.subr.bf16.mxu0 %v943
    %1494 = vmatpush1.bf16.msra.mxu0 %v942
    %1495 = vmatprep.subr.bf16.mxu0 %v959
    %1496 = vmatpush1.bf16.msra.mxu0 %v958
    %1497 = vmatprep.subr.bf16.mxu0 %v975
    %1498 = vmatpush1.bf16.msra.mxu0 %v974
    %1499 = vmatprep.subr.bf16.mxu0 %v991
    %1500 = vmatpush1.bf16.msra.mxu0 %v990
    %1501 = vmatprep.mubr.bf16.mxu0 %v227
    %1502 = vmatmul.mubr.bf16.gmra.mrb[0].mxu0 %v226
    %v1503 = vpop.f32.mrb[0].mxu0
    %v1504 = vadd.f32 %v1461, %v1503
    %v1505 = vpop.f32.mrb[0].mxu0
    %v1506 = vadd.f32 %v1463, %v1505
    %v1507 = vpop.f32.mrb[0].mxu0
    %v1508 = vadd.f32 %v1465, %v1507
    %v1509 = vpop.f32.mrb[0].mxu0
    %v1510 = vadd.f32 %v1467, %v1509
    %1511 = vdwg.mxu0
    %1512 = vmatprep.subr.bf16.mxu0 %v497
    %1513 = vmatpush1.bf16.msra.mxu0 %v496
    %1514 = vmatprep.subr.bf16.mxu0 %v513
    %1515 = vmatpush1.bf16.msra.mxu0 %v512
    %1516 = vmatprep.subr.bf16.mxu0 %v529
    %1517 = vmatpush1.bf16.msra.mxu0 %v528
    %1518 = vmatprep.subr.bf16.mxu0 %v545
    %1519 = vmatpush1.bf16.msra.mxu0 %v544
    %1520 = vmatprep.subr.bf16.mxu0 %v561
    %1521 = vmatpush1.bf16.msra.mxu0 %v560
    %1522 = vmatprep.subr.bf16.mxu0 %v577
    %1523 = vmatpush1.bf16.msra.mxu0 %v576
    %1524 = vmatprep.subr.bf16.mxu0 %v593
    %1525 = vmatpush1.bf16.msra.mxu0 %v592
    %1526 = vmatprep.subr.bf16.mxu0 %v609
    %1527 = vmatpush1.bf16.msra.mxu0 %v608
    %1528 = vmatprep.subr.bf16.mxu0 %v625
    %1529 = vmatpush1.bf16.msra.mxu0 %v624
    %1530 = vmatprep.subr.bf16.mxu0 %v641
    %1531 = vmatpush1.bf16.msra.mxu0 %v640
    %1532 = vmatprep.subr.bf16.mxu0 %v657
    %1533 = vmatpush1.bf16.msra.mxu0 %v656
    %1534 = vmatprep.subr.bf16.mxu0 %v673
    %1535 = vmatpush1.bf16.msra.mxu0 %v672
    %1536 = vmatprep.subr.bf16.mxu0 %v689
    %1537 = vmatpush1.bf16.msra.mxu0 %v688
    %1538 = vmatprep.subr.bf16.mxu0 %v705
    %1539 = vmatpush1.bf16.msra.mxu0 %v704
    %1540 = vmatprep.subr.bf16.mxu0 %v721
    %1541 = vmatpush1.bf16.msra.mxu0 %v720
    %1542 = vmatprep.subr.bf16.mxu0 %v737
    %1543 = vmatpush1.bf16.msra.mxu0 %v736
    %1544 = vmatprep.mubr.bf16.mxu0 %v225
    %1545 = vmatmul.mubr.bf16.gmra.mrb[0].mxu0 %v224
    %v1546 = vpop.f32.mrb[0].mxu0
    %v1547 = vadd.f32 0.0, %v1546
    %v1548 = vpop.f32.mrb[0].mxu0
    %v1549 = vadd.f32 0.0, %v1548
    %v1550 = vpop.f32.mrb[0].mxu0
    %v1551 = vadd.f32 0.0, %v1550
    %v1552 = vpop.f32.mrb[0].mxu0
    %v1553 = vadd.f32 0.0, %v1552
    %1554 = vdwg.mxu0
    %1555 = vmatprep.subr.bf16.mxu0 %v753
    %1556 = vmatpush1.bf16.msra.mxu0 %v752
    %1557 = vmatprep.subr.bf16.mxu0 %v769
    %1558 = vmatpush1.bf16.msra.mxu0 %v768
    %1559 = vmatprep.subr.bf16.mxu0 %v785
    %1560 = vmatpush1.bf16.msra.mxu0 %v784
    %1561 = vmatprep.subr.bf16.mxu0 %v801
    %1562 = vmatpush1.bf16.msra.mxu0 %v800
    %1563 = vmatprep.subr.bf16.mxu0 %v817
    %1564 = vmatpush1.bf16.msra.mxu0 %v816
    %1565 = vmatprep.subr.bf16.mxu0 %v833
    %1566 = vmatpush1.bf16.msra.mxu0 %v832
    %1567 = vmatprep.subr.bf16.mxu0 %v849
    %1568 = vmatpush1.bf16.msra.mxu0 %v848
    %1569 = vmatprep.subr.bf16.mxu0 %v865
    %1570 = vmatpush1.bf16.msra.mxu0 %v864
    %1571 = vmatprep.subr.bf16.mxu0 %v881
    %1572 = vmatpush1.bf16.msra.mxu0 %v880
    %1573 = vmatprep.subr.bf16.mxu0 %v897
    %1574 = vmatpush1.bf16.msra.mxu0 %v896
    %1575 = vmatprep.subr.bf16.mxu0 %v913
    %1576 = vmatpush1.bf16.msra.mxu0 %v912
    %1577 = vmatprep.subr.bf16.mxu0 %v929
    %1578 = vmatpush1.bf16.msra.mxu0 %v928
    %1579 = vmatprep.subr.bf16.mxu0 %v945
    %1580 = vmatpush1.bf16.msra.mxu0 %v944
    %1581 = vmatprep.subr.bf16.mxu0 %v961
    %1582 = vmatpush1.bf16.msra.mxu0 %v960
    %1583 = vmatprep.subr.bf16.mxu0 %v977
    %1584 = vmatpush1.bf16.msra.mxu0 %v976
    %1585 = vmatprep.subr.bf16.mxu0 %v993
    %1586 = vmatpush1.bf16.msra.mxu0 %v992
    %1587 = vmatprep.mubr.bf16.mxu0 %v227
    %1588 = vmatmul.mubr.bf16.gmra.mrb[0].mxu0 %v226
    %v1589 = vpop.f32.mrb[0].mxu0
    %v1590 = vadd.f32 %v1547, %v1589
    %v1591 = vpop.f32.mrb[0].mxu0
    %v1592 = vadd.f32 %v1549, %v1591
    %v1593 = vpop.f32.mrb[0].mxu0
    %v1594 = vadd.f32 %v1551, %v1593
    %v1595 = vpop.f32.mrb[0].mxu0
    %v1596 = vadd.f32 %v1553, %v1595
    %1597 = vdwg.mxu0
    %1598 = vmatprep.subr.bf16.mxu0 %v499
    %1599 = vmatpush1.bf16.msra.mxu0 %v498
    %1600 = vmatprep.subr.bf16.mxu0 %v515
    %1601 = vmatpush1.bf16.msra.mxu0 %v514
    %1602 = vmatprep.subr.bf16.mxu0 %v531
    %1603 = vmatpush1.bf16.msra.mxu0 %v530
    %1604 = vmatprep.subr.bf16.mxu0 %v547
    %1605 = vmatpush1.bf16.msra.mxu0 %v546
    %1606 = vmatprep.subr.bf16.mxu0 %v563
    %1607 = vmatpush1.bf16.msra.mxu0 %v562
    %1608 = vmatprep.subr.bf16.mxu0 %v579
    %1609 = vmatpush1.bf16.msra.mxu0 %v578
    %1610 = vmatprep.subr.bf16.mxu0 %v595
    %1611 = vmatpush1.bf16.msra.mxu0 %v594
    %1612 = vmatprep.subr.bf16.mxu0 %v611
    %1613 = vmatpush1.bf16.msra.mxu0 %v610
    %1614 = vmatprep.subr.bf16.mxu0 %v627
    %1615 = vmatpush1.bf16.msra.mxu0 %v626
    %1616 = vmatprep.subr.bf16.mxu0 %v643
    %1617 = vmatpush1.bf16.msra.mxu0 %v642
    %1618 = vmatprep.subr.bf16.mxu0 %v659
    %1619 = vmatpush1.bf16.msra.mxu0 %v658
    %1620 = vmatprep.subr.bf16.mxu0 %v675
    %1621 = vmatpush1.bf16.msra.mxu0 %v674
    %1622 = vmatprep.subr.bf16.mxu0 %v691
    %1623 = vmatpush1.bf16.msra.mxu0 %v690
    %1624 = vmatprep.subr.bf16.mxu0 %v707
    %1625 = vmatpush1.bf16.msra.mxu0 %v706
    %1626 = vmatprep.subr.bf16.mxu0 %v723
    %1627 = vmatpush1.bf16.msra.mxu0 %v722
    %1628 = vmatprep.subr.bf16.mxu0 %v739
    %1629 = vmatpush1.bf16.msra.mxu0 %v738
    %1630 = vmatprep.mubr.bf16.mxu0 %v225
    %1631 = vmatmul.mubr.bf16.gmra.mrb[0].mxu0 %v224
    %v1632 = vpop.f32.mrb[0].mxu0
    %v1633 = vadd.f32 0.0, %v1632
    %v1634 = vpop.f32.mrb[0].mxu0
    %v1635 = vadd.f32 0.0, %v1634
    %v1636 = vpop.f32.mrb[0].mxu0
    %v1637 = vadd.f32 0.0, %v1636
    %v1638 = vpop.f32.mrb[0].mxu0
    %v1639 = vadd.f32 0.0, %v1638
    %1640 = vdwg.mxu0
    %1641 = vmatprep.subr.bf16.mxu0 %v755
    %1642 = vmatpush1.bf16.msra.mxu0 %v754
    %1643 = vmatprep.subr.bf16.mxu0 %v771
    %1644 = vmatpush1.bf16.msra.mxu0 %v770
    %1645 = vmatprep.subr.bf16.mxu0 %v787
    %1646 = vmatpush1.bf16.msra.mxu0 %v786
    %1647 = vmatprep.subr.bf16.mxu0 %v803
    %1648 = vmatpush1.bf16.msra.mxu0 %v802
    %1649 = vmatprep.subr.bf16.mxu0 %v819
    %1650 = vmatpush1.bf16.msra.mxu0 %v818
    %1651 = vmatprep.subr.bf16.mxu0 %v835
    %1652 = vmatpush1.bf16.msra.mxu0 %v834
    %1653 = vmatprep.subr.bf16.mxu0 %v851
    %1654 = vmatpush1.bf16.msra.mxu0 %v850
    %1655 = vmatprep.subr.bf16.mxu0 %v867
    %1656 = vmatpush1.bf16.msra.mxu0 %v866
    %1657 = vmatprep.subr.bf16.mxu0 %v883
    %1658 = vmatpush1.bf16.msra.mxu0 %v882
    %1659 = vmatprep.subr.bf16.mxu0 %v899
    %1660 = vmatpush1.bf16.msra.mxu0 %v898
    %1661 = vmatprep.subr.bf16.mxu0 %v915
    %1662 = vmatpush1.bf16.msra.mxu0 %v914
    %1663 = vmatprep.subr.bf16.mxu0 %v931
    %1664 = vmatpush1.bf16.msra.mxu0 %v930
    %1665 = vmatprep.subr.bf16.mxu0 %v947
    %1666 = vmatpush1.bf16.msra.mxu0 %v946
    %1667 = vmatprep.subr.bf16.mxu0 %v963
    %1668 = vmatpush1.bf16.msra.mxu0 %v962
    %1669 = vmatprep.subr.bf16.mxu0 %v979
    %1670 = vmatpush1.bf16.msra.mxu0 %v978
    %1671 = vmatprep.subr.bf16.mxu0 %v995
    %1672 = vmatpush1.bf16.msra.mxu0 %v994
    %1673 = vmatprep.mubr.bf16.mxu0 %v227
    %1674 = vmatmul.mubr.bf16.gmra.mrb[0].mxu0 %v226
    %v1675 = vpop.f32.mrb[0].mxu0
    %v1676 = vadd.f32 %v1633, %v1675
    %v1677 = vpop.f32.mrb[0].mxu0
    %v1678 = vadd.f32 %v1635, %v1677
    %v1679 = vpop.f32.mrb[0].mxu0
    %v1680 = vadd.f32 %v1637, %v1679
    %v1681 = vpop.f32.mrb[0].mxu0
    %v1682 = vadd.f32 %v1639, %v1681
    %1683 = vdwg.mxu0
    %v1684 = vld [vmem:[%s6] sm:$0xff]
    %v1685 = vld [vmem:[%s6 + $0x8] sm:$0xff]
    %v1688 = vlaneseq
    %v1689 = vshrl.u32 %v1688, 7
    %v1690 = vsub.s32 0, %v1689
    %v1691 = vrot.slane %v1684, %v1690
    %v1692 = vlaneseq
    %v1693 = vshrl.u32 %v1692, 7
    %v1694 = vsub.s32 1, %v1693
    %v1695 = vrot.slane %v1684, %v1694
    %v1696 = vlaneseq
    %v1697 = vshrl.u32 %v1696, 7
    %v1698 = vsub.s32 2, %v1697
    %v1699 = vrot.slane %v1684, %v1698
    %v1700 = vlaneseq
    %v1701 = vshrl.u32 %v1700, 7
    %v1702 = vsub.s32 3, %v1701
    %v1703 = vrot.slane %v1684, %v1702
    %v1704 = vlaneseq
    %v1705 = vshrl.u32 %v1704, 7
    %v1706 = vsub.s32 4, %v1705
    %v1707 = vrot.slane %v1684, %v1706
    %v1708 = vlaneseq
    %v1709 = vshrl.u32 %v1708, 7
    %v1710 = vsub.s32 5, %v1709
    %v1711 = vrot.slane %v1684, %v1710
    %v1712 = vlaneseq
    %v1713 = vshrl.u32 %v1712, 7
    %v1714 = vsub.s32 6, %v1713
    %v1715 = vrot.slane %v1684, %v1714
    %v1716 = vlaneseq
    %v1717 = vshrl.u32 %v1716, 7
    %v1718 = vsub.s32 7, %v1717
    %v1719 = vrot.slane %v1684, %v1718
    %v1720 = vlaneseq
    %v1721 = vshrl.u32 %v1720, 7
    %v1722 = vsub.s32 0, %v1721
    %v1723 = vrot.slane %v1685, %v1722
    %v1724 = vlaneseq
    %v1725 = vshrl.u32 %v1724, 7
    %v1726 = vsub.s32 1, %v1725
    %v1727 = vrot.slane %v1685, %v1726
    %v1728 = vlaneseq
    %v1729 = vshrl.u32 %v1728, 7
    %v1730 = vsub.s32 2, %v1729
    %v1731 = vrot.slane %v1685, %v1730
    %v1732 = vlaneseq
    %v1733 = vshrl.u32 %v1732, 7
    %v1734 = vsub.s32 3, %v1733
    %v1735 = vrot.slane %v1685, %v1734
    %v1736 = vlaneseq
    %v1737 = vshrl.u32 %v1736, 7
    %v1738 = vsub.s32 4, %v1737
    %v1739 = vrot.slane %v1685, %v1738
    %v1740 = vlaneseq
    %v1741 = vshrl.u32 %v1740, 7
    %v1742 = vsub.s32 5, %v1741
    %v1743 = vrot.slane %v1685, %v1742
    %v1744 = vlaneseq
    %v1745 = vshrl.u32 %v1744, 7
    %v1746 = vsub.s32 6, %v1745
    %v1747 = vrot.slane %v1685, %v1746
    %v1748 = vlaneseq
    %v1749 = vshrl.u32 %v1748, 7
    %v1750 = vsub.s32 7, %v1749
    %v1751 = vrot.slane %v1685, %v1750
    %v1768 = vmul.f32 %v1074, %v1691
    %v1769 = vmul.f32 %v1076, %v1695
    %v1770 = vmul.f32 %v1160, %v1699
    %v1771 = vmul.f32 %v1162, %v1703
    %v1772 = vmul.f32 %v1246, %v1707
    %v1773 = vmul.f32 %v1248, %v1711
    %v1774 = vmul.f32 %v1332, %v1715
    %v1775 = vmul.f32 %v1334, %v1719
    %v1776 = vmul.f32 %v1418, %v1723
    %v1777 = vmul.f32 %v1420, %v1727
    %v1778 = vmul.f32 %v1504, %v1731
    %v1779 = vmul.f32 %v1506, %v1735
    %v1780 = vmul.f32 %v1590, %v1739
    %v1781 = vmul.f32 %v1592, %v1743
    %v1782 = vmul.f32 %v1676, %v1747
    %v1783 = vmul.f32 %v1678, %v1751
    %v1784 = vmul.f32 %v1078, %v1691
    %v1785 = vmul.f32 %v1080, %v1695
    %v1786 = vmul.f32 %v1164, %v1699
    %v1787 = vmul.f32 %v1166, %v1703
    %v1788 = vmul.f32 %v1250, %v1707
    %v1789 = vmul.f32 %v1252, %v1711
    %v1790 = vmul.f32 %v1336, %v1715
    %v1791 = vmul.f32 %v1338, %v1719
    %v1792 = vmul.f32 %v1422, %v1723
    %v1793 = vmul.f32 %v1424, %v1727
    %v1794 = vmul.f32 %v1508, %v1731
    %v1795 = vmul.f32 %v1510, %v1735
    %v1796 = vmul.f32 %v1594, %v1739
    %v1797 = vmul.f32 %v1596, %v1743
    %v1798 = vmul.f32 %v1680, %v1747
    %v1799 = vmul.f32 %v1682, %v1751
    %v1800 = vld [vmem:[%s7] sm:$0xf]
    %v1802 = vlaneseq
    %v1803 = vshrl.u32 %v1802, 7
    %v1804 = vsub.s32 0, %v1803
    %v1805 = vrot.slane %v1800, %v1804
    %v1806 = vlaneseq
    %v1807 = vshrl.u32 %v1806, 7
    %v1808 = vsub.s32 1, %v1807
    %v1809 = vrot.slane %v1800, %v1808
    %v1810 = vlaneseq
    %v1811 = vshrl.u32 %v1810, 7
    %v1812 = vsub.s32 2, %v1811
    %v1813 = vrot.slane %v1800, %v1812
    %v1814 = vlaneseq
    %v1815 = vshrl.u32 %v1814, 7
    %v1816 = vsub.s32 3, %v1815
    %v1817 = vrot.slane %v1800, %v1816
    %v1822 = vadd.f32 %v1768, %v1805
    %v1823 = vadd.f32 %v1769, %v1809
    %v1824 = vadd.f32 %v1770, %v1813
    %v1825 = vadd.f32 %v1771, %v1817
    %v1826 = vadd.f32 %v1784, %v1805
    %v1827 = vadd.f32 %v1785, %v1809
    %v1828 = vadd.f32 %v1786, %v1813
    %v1829 = vadd.f32 %v1787, %v1817
    %v1830 = vld [vmem:[%s1] sm:$0x1]
    %vm1831 = vcmp.gt.f32.partialorder %v1830, 0.5
    %v1832 = vsel %vm1831, 0.0, -1e+09
    %v1833 = vld [vmem:[#allocation5] sm:$0xff]
    %v1834 = vld [vmem:[#allocation5 + $0x8] sm:$0xff]
    %1835 = vmatprep.subr.mxu0 0.0
    %1836 = vmatpush1.xpose.msra.mxu0 %v1772
    %1837 = vmatprep.subr.mxu0 0.0
    %1838 = vmatpush1.xpose.msra.mxu0 %v1788
    %1839 = vmatprep.subr.mxu0 0.0
    %1840 = vmatpush1.xpose.msra.mxu0 0.0
    %1841 = vmatprep.subr.mxu0 0.0
    %1842 = vmatpush1.xpose.msra.mxu0 0.0
    %1843 = vmatprep.subr.mxu0 0.0
    %1844 = vmatpush1.xpose.msra.mxu0 0.0
    %1845 = vmatprep.subr.mxu0 0.0
    %1846 = vmatpush1.xpose.msra.mxu0 0.0
    %1847 = vmatprep.subr.mxu0 0.0
    %1848 = vmatpush1.xpose.msra.mxu0 0.0
    %1849 = vmatprep.subr.mxu0 0.0
    %1850 = vmatpush1.xpose.msra.mxu0 0.0
    %1851 = vmatprep.subr.mxu0 0.0
    %1852 = vmatpush1.xpose.msra.mxu0 0.0
    %1853 = vmatprep.subr.mxu0 0.0
    %1854 = vmatpush1.xpose.msra.mxu0 0.0
    %1855 = vmatprep.subr.mxu0 0.0
    %1856 = vmatpush1.xpose.msra.mxu0 0.0
    %1857 = vmatprep.subr.mxu0 0.0
    %1858 = vmatpush1.xpose.msra.mxu0 0.0
    %1859 = vmatprep.subr.mxu0 0.0
    %1860 = vmatpush1.xpose.msra.mxu0 0.0
    %1861 = vmatprep.subr.mxu0 0.0
    %1862 = vmatpush1.xpose.msra.mxu0 0.0
    %1863 = vmatprep.subr.mxu0 0.0
    %1864 = vmatpush1.xpose.msra.mxu0 0.0
    %1865 = vmatprep.subr.mxu0 0.0
    %1866 = vmatpush1.xpose.msra.mxu0 0.0
    %1867 = vmatprep.subr.mxu0 0.0
    %1868 = vmatpush1.xpose.msra.mxu0 0.0
    %1869 = vmatprep.subr.mxu0 0.0
    %1870 = vmatpush1.xpose.msra.mxu0 0.0
    %1871 = vmatprep.subr.mxu0 0.0
    %1872 = vmatpush1.xpose.msra.mxu0 0.0
    %1873 = vmatprep.subr.mxu0 0.0
    %1874 = vmatpush1.xpose.msra.mxu0 0.0
    %1875 = vmatprep.subr.mxu0 0.0
    %1876 = vmatpush1.xpose.msra.mxu0 0.0
    %1877 = vmatprep.subr.mxu0 0.0
    %1878 = vmatpush1.xpose.msra.mxu0 0.0
    %1879 = vmatprep.subr.mxu0 0.0
    %1880 = vmatpush1.xpose.msra.mxu0 0.0
    %1881 = vmatprep.subr.mxu0 0.0
    %1882 = vmatpush1.xpose.msra.mxu0 0.0
    %1883 = vmatprep.subr.mxu0 0.0
    %1884 = vmatpush1.xpose.msra.mxu0 0.0
    %1885 = vmatprep.subr.mxu0 0.0
    %1886 = vmatpush1.xpose.msra.mxu0 0.0
    %1887 = vmatprep.subr.mxu0 0.0
    %1888 = vmatpush1.xpose.msra.mxu0 0.0
    %1889 = vmatprep.subr.mxu0 0.0
    %1890 = vmatpush1.xpose.msra.mxu0 0.0
    %1891 = vmatprep.subr.mxu0 0.0
    %1892 = vmatpush1.xpose.msra.mxu0 0.0
    %1893 = vmatprep.subr.mxu0 0.0
    %1894 = vmatpush1.xpose.msra.mxu0 0.0
    %1895 = vmatprep.subr.mxu0 0.0
    %1896 = vmatpush1.xpose.msra.mxu0 0.0
    %1897 = vmatprep.subr.mxu0 0.0
    %1898 = vmatpush1.xpose.msra.mxu0 0.0
    %1899 = vmatprep.mubr.f32.mxu0 0.0
    %1900 = vmatmul.mubr.f32.gmra.mrb[0].mxu0 %v1822
    %v1901 = vpop.f32.mrb[0].mxu0
    %v1902 = vadd.f32 %v1833, %v1901
    %v1903 = vpop.f32.mrb[0].mxu0
    %1904 = vmatprep.mubr.f32.mxu0 0.0
    %1905 = vmatmul.mubr.f32.gmra.mrb[0].mxu0 %v1826
    %v1906 = vpop.f32.mrb[0].mxu0
    %v1907 = vadd.f32 %v1834, %v1906
    %v1908 = vpop.f32.mrb[0].mxu0
    %1909 = vdwg.mxu0
    %v1911 = vlaneseq
    %v1912 = vshrl.u32 %v1911, 7
    %v1913 = vsub.s32 0, %v1912
    %v1914 = vrot.slane %v1832, %v1913
    %v1916 = vadd.f32 %v1902, %v1914
    %v1917 = vadd.f32 %v1907, %v1914
    %vm1918 = vcmask 130048
    %v1919 = vsel %vm1918, %v1916, -inf
    %1920 = vmax.xlane.f32.xlu0 %v1919
    %v1921 = vpop.xlane.xlu0 %1920
    %v1922 = vsel %vm1918, %v1917, -inf
    %1923 = vmax.xlane.f32.xlu0 %v1922
    %v1924 = vpop.xlane.xlu0 %1923
    %v1925 = vsub.f32 %v1916, %v1921
    %v1926 = vsub.f32 %v1917, %v1924
    %v1927 = vmul.f32 %v1925, 1.442695
    %v1928 = vpow.pop %v1927
    %v1929 = vmul.f32 %v1926, 1.442695
    %v1930 = vpow.pop %v1929
    %v1931 = vsel %vm1918, %v1928, 0.0
    %1932 = vadd.xlane.f32.xlu0 %v1931
    %v1933 = vpop.xlane.xlu0 %1932
    %v1934 = vsel %vm1918, %v1930, 0.0
    %1935 = vadd.xlane.f32.xlu0 %v1934
    %v1936 = vpop.xlane.xlu0 %1935
    %v1937 = vrcp.pop %v1933
    %v1938 = vrcp.pop %v1936
    %v1939 = vmul.f32 %v1928, %v1937
    %v1940 = vmul.f32 %v1930, %v1938
    %v1941 = vpack.c.bf16 %v1940, %v1939
    %v1942 = vpack.c.bf16 %v1792, %v1776
    %v1944 = vsel %vm1918, %v1941, 0
    %1946 = vmatprep.subr.bf16.mxu0 0
    %1947 = vmatpush1.bf16.msra.mxu0 %v1942
    %1948 = vmatprep.subr.bf16.mxu0 0
    %1949 = vmatpush1.bf16.msra.mxu0 0
    %1950 = vmatprep.subr.bf16.mxu0 0
    %1951 = vmatpush1.bf16.msra.mxu0 0
    %1952 = vmatprep.subr.bf16.mxu0 0
    %1953 = vmatpush1.bf16.msra.mxu0 0
    %1954 = vmatprep.subr.bf16.mxu0 0
    %1955 = vmatpush1.bf16.msra.mxu0 0
    %1956 = vmatprep.subr.bf16.mxu0 0
    %1957 = vmatpush1.bf16.msra.mxu0 0
    %1958 = vmatprep.subr.bf16.mxu0 0
    %1959 = vmatpush1.bf16.msra.mxu0 0
    %1960 = vmatprep.subr.bf16.mxu0 0
    %1961 = vmatpush1.bf16.msra.mxu0 0
    %1962 = vmatprep.subr.bf16.mxu0 0
    %1963 = vmatpush1.bf16.msra.mxu0 0
    %1964 = vmatprep.subr.bf16.mxu0 0
    %1965 = vmatpush1.bf16.msra.mxu0 0
    %1966 = vmatprep.subr.bf16.mxu0 0
    %1967 = vmatpush1.bf16.msra.mxu0 0
    %1968 = vmatprep.subr.bf16.mxu0 0
    %1969 = vmatpush1.bf16.msra.mxu0 0
    %1970 = vmatprep.subr.bf16.mxu0 0
    %1971 = vmatpush1.bf16.msra.mxu0 0
    %1972 = vmatprep.subr.bf16.mxu0 0
    %1973 = vmatpush1.bf16.msra.mxu0 0
    %1974 = vmatprep.subr.bf16.mxu0 0
    %1975 = vmatpush1.bf16.msra.mxu0 0
    %1976 = vmatprep.subr.bf16.mxu0 0
    %1977 = vmatpush1.bf16.msra.mxu0 0
    %1978 = vmatprep.mubr.bf16.mxu0 0
    %1979 = vmatmul.mubr.bf16.gmra.mrb[0].mxu0 %v1944
    %v1980 = vpop.f32.mrb[0].mxu0
    %v1981 = vadd.f32 0.0, %v1980
    %v1982 = vpop.f32.mrb[0].mxu0
    %v1983 = vpop.f32.mrb[0].mxu0
    %v1984 = vadd.f32 0.0, %v1983
    %v1985 = vpop.f32.mrb[0].mxu0
    %1986 = vdwg.mxu0
    %v1987 = vxor.u32 %v1780, 2147483648
    %v1988 = vxor.u32 %v1796, 2147483648
    %v1989 = vmul.f32 %v1987, 1.442695
    %v1990 = vpow.pop %v1989
    %v1991 = vmul.f32 %v1988, 1.442695
    %v1992 = vpow.pop %v1991
    %v1993 = vadd.f32 %v1990, 1.0
    %v1994 = vadd.f32 %v1992, 1.0
    %v1995 = vrcp.pop %v1993
    %v1996 = vmul.f32 1.0, %v1995
    %v1997 = vrcp.pop %v1994
    %v1998 = vmul.f32 1.0, %v1997
    %v1999 = vmul.f32 %v1981, %v1996
    %v2000 = vmul.f32 %v1984, %v1998
    %s2001 = scalar_lea.vmem [#allocation5], 16
    %v2002 = vld [vmem:[%s2001] sm:$0xff]
    %v2003 = vld [vmem:[%s2001 + $0x8] sm:$0xff]
    %2004 = vmatprep.subr.mxu0 0.0
    %2005 = vmatpush1.xpose.msra.mxu0 %v1773
    %2006 = vmatprep.subr.mxu0 0.0
    %2007 = vmatpush1.xpose.msra.mxu0 %v1789
    %2008 = vmatprep.subr.mxu0 0.0
    %2009 = vmatpush1.xpose.msra.mxu0 0.0
    %2010 = vmatprep.subr.mxu0 0.0
    %2011 = vmatpush1.xpose.msra.mxu0 0.0
    %2012 = vmatprep.subr.mxu0 0.0
    %2013 = vmatpush1.xpose.msra.mxu0 0.0
    %2014 = vmatprep.subr.mxu0 0.0
    %2015 = vmatpush1.xpose.msra.mxu0 0.0
    %2016 = vmatprep.subr.mxu0 0.0
    %2017 = vmatpush1.xpose.msra.mxu0 0.0
    %2018 = vmatprep.subr.mxu0 0.0
    %2019 = vmatpush1.xpose.msra.mxu0 0.0
    %2020 = vmatprep.subr.mxu0 0.0
    %2021 = vmatpush1.xpose.msra.mxu0 0.0
    %2022 = vmatprep.subr.mxu0 0.0
    %2023 = vmatpush1.xpose.msra.mxu0 0.0
    %2024 = vmatprep.subr.mxu0 0.0
    %2025 = vmatpush1.xpose.msra.mxu0 0.0
    %2026 = vmatprep.subr.mxu0 0.0
    %2027 = vmatpush1.xpose.msra.mxu0 0.0
    %2028 = vmatprep.subr.mxu0 0.0
    %2029 = vmatpush1.xpose.msra.mxu0 0.0
    %2030 = vmatprep.subr.mxu0 0.0
    %2031 = vmatpush1.xpose.msra.mxu0 0.0
    %2032 = vmatprep.subr.mxu0 0.0
    %2033 = vmatpush1.xpose.msra.mxu0 0.0
    %2034 = vmatprep.subr.mxu0 0.0
    %2035 = vmatpush1.xpose.msra.mxu0 0.0
    %2036 = vmatprep.subr.mxu0 0.0
    %2037 = vmatpush1.xpose.msra.mxu0 0.0
    %2038 = vmatprep.subr.mxu0 0.0
    %2039 = vmatpush1.xpose.msra.mxu0 0.0
    %2040 = vmatprep.subr.mxu0 0.0
    %2041 = vmatpush1.xpose.msra.mxu0 0.0
    %2042 = vmatprep.subr.mxu0 0.0
    %2043 = vmatpush1.xpose.msra.mxu0 0.0
    %2044 = vmatprep.subr.mxu0 0.0
    %2045 = vmatpush1.xpose.msra.mxu0 0.0
    %2046 = vmatprep.subr.mxu0 0.0
    %2047 = vmatpush1.xpose.msra.mxu0 0.0
    %2048 = vmatprep.subr.mxu0 0.0
    %2049 = vmatpush1.xpose.msra.mxu0 0.0
    %2050 = vmatprep.subr.mxu0 0.0
    %2051 = vmatpush1.xpose.msra.mxu0 0.0
    %2052 = vmatprep.subr.mxu0 0.0
    %2053 = vmatpush1.xpose.msra.mxu0 0.0
    %2054 = vmatprep.subr.mxu0 0.0
    %2055 = vmatpush1.xpose.msra.mxu0 0.0
    %2056 = vmatprep.subr.mxu0 0.0
    %2057 = vmatpush1.xpose.msra.mxu0 0.0
    %2058 = vmatprep.subr.mxu0 0.0
    %2059 = vmatpush1.xpose.msra.mxu0 0.0
    %2060 = vmatprep.subr.mxu0 0.0
    %2061 = vmatpush1.xpose.msra.mxu0 0.0
    %2062 = vmatprep.subr.mxu0 0.0
    %2063 = vmatpush1.xpose.msra.mxu0 0.0
    %2064 = vmatprep.subr.mxu0 0.0
    %2065 = vmatpush1.xpose.msra.mxu0 0.0
    %2066 = vmatprep.subr.mxu0 0.0
    %2067 = vmatpush1.xpose.msra.mxu0 0.0
    %2068 = vmatprep.mubr.f32.mxu0 0.0
    %2069 = vmatmul.mubr.f32.gmra.mrb[0].mxu0 %v1823
    %v2070 = vpop.f32.mrb[0].mxu0
    %v2071 = vadd.f32 %v2002, %v2070
    %v2072 = vpop.f32.mrb[0].mxu0
    %2073 = vmatprep.mubr.f32.mxu0 0.0
    %2074 = vmatmul.mubr.f32.gmra.mrb[0].mxu0 %v1827
    %v2075 = vpop.f32.mrb[0].mxu0
    %v2076 = vadd.f32 %v2003, %v2075
    %v2077 = vpop.f32.mrb[0].mxu0
    %2078 = vdwg.mxu0
    %v2079 = vadd.f32 %v2071, %v1914
    %v2080 = vadd.f32 %v2076, %v1914
    %v2081 = vsel %vm1918, %v2079, -inf
    %2082 = vmax.xlane.f32.xlu0 %v2081
    %v2083 = vpop.xlane.xlu0 %2082
    %v2084 = vsel %vm1918, %v2080, -inf
    %2085 = vmax.xlane.f32.xlu0 %v2084
    %v2086 = vpop.xlane.xlu0 %2085
    %v2087 = vsub.f32 %v2079, %v2083
    %v2088 = vsub.f32 %v2080, %v2086
    %v2089 = vmul.f32 %v2087, 1.442695
    %v2090 = vpow.pop %v2089
    %v2091 = vmul.f32 %v2088, 1.442695
    %v2092 = vpow.pop %v2091
    %v2093 = vsel %vm1918, %v2090, 0.0
    %2094 = vadd.xlane.f32.xlu0 %v2093
    %v2095 = vpop.xlane.xlu0 %2094
    %v2096 = vsel %vm1918, %v2092, 0.0
    %2097 = vadd.xlane.f32.xlu0 %v2096
    %v2098 = vpop.xlane.xlu0 %2097
    %v2099 = vrcp.pop %v2095
    %v2100 = vrcp.pop %v2098
    %v2101 = vmul.f32 %v2090, %v2099
    %v2102 = vmul.f32 %v2092, %v2100
    %v2103 = vpack.c.bf16 %v2102, %v2101
    %v2104 = vpack.c.bf16 %v1793, %v1777
    %v2106 = vsel %vm1918, %v2103, 0
    %2108 = vmatprep.subr.bf16.mxu0 0
    %2109 = vmatpush1.bf16.msra.mxu0 %v2104
    %2110 = vmatprep.subr.bf16.mxu0 0
    %2111 = vmatpush1.bf16.msra.mxu0 0
    %2112 = vmatprep.subr.bf16.mxu0 0
    %2113 = vmatpush1.bf16.msra.mxu0 0
    %2114 = vmatprep.subr.bf16.mxu0 0
    %2115 = vmatpush1.bf16.msra.mxu0 0
    %2116 = vmatprep.subr.bf16.mxu0 0
    %2117 = vmatpush1.bf16.msra.mxu0 0
    %2118 = vmatprep.subr.bf16.mxu0 0
    %2119 = vmatpush1.bf16.msra.mxu0 0
    %2120 = vmatprep.subr.bf16.mxu0 0
    %2121 = vmatpush1.bf16.msra.mxu0 0
    %2122 = vmatprep.subr.bf16.mxu0 0
    %2123 = vmatpush1.bf16.msra.mxu0 0
    %2124 = vmatprep.subr.bf16.mxu0 0
    %2125 = vmatpush1.bf16.msra.mxu0 0
    %2126 = vmatprep.subr.bf16.mxu0 0
    %2127 = vmatpush1.bf16.msra.mxu0 0
    %2128 = vmatprep.subr.bf16.mxu0 0
    %2129 = vmatpush1.bf16.msra.mxu0 0
    %2130 = vmatprep.subr.bf16.mxu0 0
    %2131 = vmatpush1.bf16.msra.mxu0 0
    %2132 = vmatprep.subr.bf16.mxu0 0
    %2133 = vmatpush1.bf16.msra.mxu0 0
    %2134 = vmatprep.subr.bf16.mxu0 0
    %2135 = vmatpush1.bf16.msra.mxu0 0
    %2136 = vmatprep.subr.bf16.mxu0 0
    %2137 = vmatpush1.bf16.msra.mxu0 0
    %2138 = vmatprep.subr.bf16.mxu0 0
    %2139 = vmatpush1.bf16.msra.mxu0 0
    %2140 = vmatprep.mubr.bf16.mxu0 0
    %2141 = vmatmul.mubr.bf16.gmra.mrb[0].mxu0 %v2106
    %v2142 = vpop.f32.mrb[0].mxu0
    %v2143 = vadd.f32 0.0, %v2142
    %v2144 = vpop.f32.mrb[0].mxu0
    %v2145 = vpop.f32.mrb[0].mxu0
    %v2146 = vadd.f32 0.0, %v2145
    %v2147 = vpop.f32.mrb[0].mxu0
    %2148 = vdwg.mxu0
    %v2149 = vxor.u32 %v1781, 2147483648
    %v2150 = vxor.u32 %v1797, 2147483648
    %v2151 = vmul.f32 %v2149, 1.442695
    %v2152 = vpow.pop %v2151
    %v2153 = vmul.f32 %v2150, 1.442695
    %v2154 = vpow.pop %v2153
    %v2155 = vadd.f32 %v2152, 1.0
    %v2156 = vadd.f32 %v2154, 1.0
    %v2157 = vrcp.pop %v2155
    %v2158 = vmul.f32 1.0, %v2157
    %v2159 = vrcp.pop %v2156
    %v2160 = vmul.f32 1.0, %v2159
    %v2161 = vmul.f32 %v2143, %v2158
    %v2162 = vmul.f32 %v2146, %v2160
    %s2163 = scalar_lea.vmem [#allocation5], 32
    %v2164 = vld [vmem:[%s2163] sm:$0xff]
    %v2165 = vld [vmem:[%s2163 + $0x8] sm:$0xff]
    %2166 = vmatprep.subr.mxu0 0.0
    %2167 = vmatpush1.xpose.msra.mxu0 %v1774
    %2168 = vmatprep.subr.mxu0 0.0
    %2169 = vmatpush1.xpose.msra.mxu0 %v1790
    %2170 = vmatprep.subr.mxu0 0.0
    %2171 = vmatpush1.xpose.msra.mxu0 0.0
    %2172 = vmatprep.subr.mxu0 0.0
    %2173 = vmatpush1.xpose.msra.mxu0 0.0
    %2174 = vmatprep.subr.mxu0 0.0
    %2175 = vmatpush1.xpose.msra.mxu0 0.0
    %2176 = vmatprep.subr.mxu0 0.0
    %2177 = vmatpush1.xpose.msra.mxu0 0.0
    %2178 = vmatprep.subr.mxu0 0.0
    %2179 = vmatpush1.xpose.msra.mxu0 0.0
    %2180 = vmatprep.subr.mxu0 0.0
    %2181 = vmatpush1.xpose.msra.mxu0 0.0
    %2182 = vmatprep.subr.mxu0 0.0
    %2183 = vmatpush1.xpose.msra.mxu0 0.0
    %2184 = vmatprep.subr.mxu0 0.0
    %2185 = vmatpush1.xpose.msra.mxu0 0.0
    %2186 = vmatprep.subr.mxu0 0.0
    %2187 = vmatpush1.xpose.msra.mxu0 0.0
    %2188 = vmatprep.subr.mxu0 0.0
    %2189 = vmatpush1.xpose.msra.mxu0 0.0
    %2190 = vmatprep.subr.mxu0 0.0
    %2191 = vmatpush1.xpose.msra.mxu0 0.0
    %2192 = vmatprep.subr.mxu0 0.0
    %2193 = vmatpush1.xpose.msra.mxu0 0.0
    %2194 = vmatprep.subr.mxu0 0.0
    %2195 = vmatpush1.xpose.msra.mxu0 0.0
    %2196 = vmatprep.subr.mxu0 0.0
    %2197 = vmatpush1.xpose.msra.mxu0 0.0
    %2198 = vmatprep.subr.mxu0 0.0
    %2199 = vmatpush1.xpose.msra.mxu0 0.0
    %2200 = vmatprep.subr.mxu0 0.0
    %2201 = vmatpush1.xpose.msra.mxu0 0.0
    %2202 = vmatprep.subr.mxu0 0.0
    %2203 = vmatpush1.xpose.msra.mxu0 0.0
    %2204 = vmatprep.subr.mxu0 0.0
    %2205 = vmatpush1.xpose.msra.mxu0 0.0
    %2206 = vmatprep.subr.mxu0 0.0
    %2207 = vmatpush1.xpose.msra.mxu0 0.0
    %2208 = vmatprep.subr.mxu0 0.0
    %2209 = vmatpush1.xpose.msra.mxu0 0.0
    %2210 = vmatprep.subr.mxu0 0.0
    %2211 = vmatpush1.xpose.msra.mxu0 0.0
    %2212 = vmatprep.subr.mxu0 0.0
    %2213 = vmatpush1.xpose.msra.mxu0 0.0
    %2214 = vmatprep.subr.mxu0 0.0
    %2215 = vmatpush1.xpose.msra.mxu0 0.0
    %2216 = vmatprep.subr.mxu0 0.0
    %2217 = vmatpush1.xpose.msra.mxu0 0.0
    %2218 = vmatprep.subr.mxu0 0.0
    %2219 = vmatpush1.xpose.msra.mxu0 0.0
    %2220 = vmatprep.subr.mxu0 0.0
    %2221 = vmatpush1.xpose.msra.mxu0 0.0
    %2222 = vmatprep.subr.mxu0 0.0
    %2223 = vmatpush1.xpose.msra.mxu0 0.0
    %2224 = vmatprep.subr.mxu0 0.0
    %2225 = vmatpush1.xpose.msra.mxu0 0.0
    %2226 = vmatprep.subr.mxu0 0.0
    %2227 = vmatpush1.xpose.msra.mxu0 0.0
    %2228 = vmatprep.subr.mxu0 0.0
    %2229 = vmatpush1.xpose.msra.mxu0 0.0
    %2230 = vmatprep.mubr.f32.mxu0 0.0
    %2231 = vmatmul.mubr.f32.gmra.mrb[0].mxu0 %v1824
    %v2232 = vpop.f32.mrb[0].mxu0
    %v2233 = vadd.f32 %v2164, %v2232
    %v2234 = vpop.f32.mrb[0].mxu0
    %2235 = vmatprep.mubr.f32.mxu0 0.0
    %2236 = vmatmul.mubr.f32.gmra.mrb[0].mxu0 %v1828
    %v2237 = vpop.f32.mrb[0].mxu0
    %v2238 = vadd.f32 %v2165, %v2237
    %v2239 = vpop.f32.mrb[0].mxu0
    %2240 = vdwg.mxu0
    %v2241 = vadd.f32 %v2233, %v1914
    %v2242 = vadd.f32 %v2238, %v1914
    %v2243 = vsel %vm1918, %v2241, -inf
    %2244 = vmax.xlane.f32.xlu0 %v2243
    %v2245 = vpop.xlane.xlu0 %2244
    %v2246 = vsel %vm1918, %v2242, -inf
    %2247 = vmax.xlane.f32.xlu0 %v2246
    %v2248 = vpop.xlane.xlu0 %2247
    %v2249 = vsub.f32 %v2241, %v2245
    %v2250 = vsub.f32 %v2242, %v2248
    %v2251 = vmul.f32 %v2249, 1.442695
    %v2252 = vpow.pop %v2251
    %v2253 = vmul.f32 %v2250, 1.442695
    %v2254 = vpow.pop %v2253
    %v2255 = vsel %vm1918, %v2252, 0.0
    %2256 = vadd.xlane.f32.xlu0 %v2255
    %v2257 = vpop.xlane.xlu0 %2256
    %v2258 = vsel %vm1918, %v2254, 0.0
    %2259 = vadd.xlane.f32.xlu0 %v2258
    %v2260 = vpop.xlane.xlu0 %2259
    %v2261 = vrcp.pop %v2257
    %v2262 = vrcp.pop %v2260
    %v2263 = vmul.f32 %v2252, %v2261
    %v2264 = vmul.f32 %v2254, %v2262
    %v2265 = vpack.c.bf16 %v2264, %v2263
    %v2266 = vpack.c.bf16 %v1794, %v1778
    %v2268 = vsel %vm1918, %v2265, 0
    %2270 = vmatprep.subr.bf16.mxu0 0
    %2271 = vmatpush1.bf16.msra.mxu0 %v2266
    %2272 = vmatprep.subr.bf16.mxu0 0
    %2273 = vmatpush1.bf16.msra.mxu0 0
    %2274 = vmatprep.subr.bf16.mxu0 0
    %2275 = vmatpush1.bf16.msra.mxu0 0
    %2276 = vmatprep.subr.bf16.mxu0 0
    %2277 = vmatpush1.bf16.msra.mxu0 0
    %2278 = vmatprep.subr.bf16.mxu0 0
    %2279 = vmatpush1.bf16.msra.mxu0 0
    %2280 = vmatprep.subr.bf16.mxu0 0
    %2281 = vmatpush1.bf16.msra.mxu0 0
    %2282 = vmatprep.subr.bf16.mxu0 0
    %2283 = vmatpush1.bf16.msra.mxu0 0
    %2284 = vmatprep.subr.bf16.mxu0 0
    %2285 = vmatpush1.bf16.msra.mxu0 0
    %2286 = vmatprep.subr.bf16.mxu0 0
    %2287 = vmatpush1.bf16.msra.mxu0 0
    %2288 = vmatprep.subr.bf16.mxu0 0
    %2289 = vmatpush1.bf16.msra.mxu0 0
    %2290 = vmatprep.subr.bf16.mxu0 0
    %2291 = vmatpush1.bf16.msra.mxu0 0
    %2292 = vmatprep.subr.bf16.mxu0 0
    %2293 = vmatpush1.bf16.msra.mxu0 0
    %2294 = vmatprep.subr.bf16.mxu0 0
    %2295 = vmatpush1.bf16.msra.mxu0 0
    %2296 = vmatprep.subr.bf16.mxu0 0
    %2297 = vmatpush1.bf16.msra.mxu0 0
    %2298 = vmatprep.subr.bf16.mxu0 0
    %2299 = vmatpush1.bf16.msra.mxu0 0
    %2300 = vmatprep.subr.bf16.mxu0 0
    %2301 = vmatpush1.bf16.msra.mxu0 0
    %2302 = vmatprep.mubr.bf16.mxu0 0
    %2303 = vmatmul.mubr.bf16.gmra.mrb[0].mxu0 %v2268
    %v2304 = vpop.f32.mrb[0].mxu0
    %v2305 = vadd.f32 0.0, %v2304
    %v2306 = vpop.f32.mrb[0].mxu0
    %v2307 = vpop.f32.mrb[0].mxu0
    %v2308 = vadd.f32 0.0, %v2307
    %v2309 = vpop.f32.mrb[0].mxu0
    %2310 = vdwg.mxu0
    %v2311 = vxor.u32 %v1782, 2147483648
    %v2312 = vxor.u32 %v1798, 2147483648
    %v2313 = vmul.f32 %v2311, 1.442695
    %v2314 = vpow.pop %v2313
    %v2315 = vmul.f32 %v2312, 1.442695
    %v2316 = vpow.pop %v2315
    %v2317 = vadd.f32 %v2314, 1.0
    %v2318 = vadd.f32 %v2316, 1.0
    %v2319 = vrcp.pop %v2317
    %v2320 = vmul.f32 1.0, %v2319
    %v2321 = vrcp.pop %v2318
    %v2322 = vmul.f32 1.0, %v2321
    %v2323 = vmul.f32 %v2305, %v2320
    %v2324 = vmul.f32 %v2308, %v2322
    %s2325 = scalar_lea.vmem [#allocation5], 48
    %v2326 = vld [vmem:[%s2325] sm:$0xff]
    %v2327 = vld [vmem:[%s2325 + $0x8] sm:$0xff]
    %2328 = vmatprep.subr.mxu0 0.0
    %2329 = vmatpush1.xpose.msra.mxu0 %v1775
    %2330 = vmatprep.subr.mxu0 0.0
    %2331 = vmatpush1.xpose.msra.mxu0 %v1791
    %2332 = vmatprep.subr.mxu0 0.0
    %2333 = vmatpush1.xpose.msra.mxu0 0.0
    %2334 = vmatprep.subr.mxu0 0.0
    %2335 = vmatpush1.xpose.msra.mxu0 0.0
    %2336 = vmatprep.subr.mxu0 0.0
    %2337 = vmatpush1.xpose.msra.mxu0 0.0
    %2338 = vmatprep.subr.mxu0 0.0
    %2339 = vmatpush1.xpose.msra.mxu0 0.0
    %2340 = vmatprep.subr.mxu0 0.0
    %2341 = vmatpush1.xpose.msra.mxu0 0.0
    %2342 = vmatprep.subr.mxu0 0.0
    %2343 = vmatpush1.xpose.msra.mxu0 0.0
    %2344 = vmatprep.subr.mxu0 0.0
    %2345 = vmatpush1.xpose.msra.mxu0 0.0
    %2346 = vmatprep.subr.mxu0 0.0
    %2347 = vmatpush1.xpose.msra.mxu0 0.0
    %2348 = vmatprep.subr.mxu0 0.0
    %2349 = vmatpush1.xpose.msra.mxu0 0.0
    %2350 = vmatprep.subr.mxu0 0.0
    %2351 = vmatpush1.xpose.msra.mxu0 0.0
    %2352 = vmatprep.subr.mxu0 0.0
    %2353 = vmatpush1.xpose.msra.mxu0 0.0
    %2354 = vmatprep.subr.mxu0 0.0
    %2355 = vmatpush1.xpose.msra.mxu0 0.0
    %2356 = vmatprep.subr.mxu0 0.0
    %2357 = vmatpush1.xpose.msra.mxu0 0.0
    %2358 = vmatprep.subr.mxu0 0.0
    %2359 = vmatpush1.xpose.msra.mxu0 0.0
    %2360 = vmatprep.subr.mxu0 0.0
    %2361 = vmatpush1.xpose.msra.mxu0 0.0
    %2362 = vmatprep.subr.mxu0 0.0
    %2363 = vmatpush1.xpose.msra.mxu0 0.0
    %2364 = vmatprep.subr.mxu0 0.0
    %2365 = vmatpush1.xpose.msra.mxu0 0.0
    %2366 = vmatprep.subr.mxu0 0.0
    %2367 = vmatpush1.xpose.msra.mxu0 0.0
    %2368 = vmatprep.subr.mxu0 0.0
    %2369 = vmatpush1.xpose.msra.mxu0 0.0
    %2370 = vmatprep.subr.mxu0 0.0
    %2371 = vmatpush1.xpose.msra.mxu0 0.0
    %2372 = vmatprep.subr.mxu0 0.0
    %2373 = vmatpush1.xpose.msra.mxu0 0.0
    %2374 = vmatprep.subr.mxu0 0.0
    %2375 = vmatpush1.xpose.msra.mxu0 0.0
    %2376 = vmatprep.subr.mxu0 0.0
    %2377 = vmatpush1.xpose.msra.mxu0 0.0
    %2378 = vmatprep.subr.mxu0 0.0
    %2379 = vmatpush1.xpose.msra.mxu0 0.0
    %2380 = vmatprep.subr.mxu0 0.0
    %2381 = vmatpush1.xpose.msra.mxu0 0.0
    %2382 = vmatprep.subr.mxu0 0.0
    %2383 = vmatpush1.xpose.msra.mxu0 0.0
    %2384 = vmatprep.subr.mxu0 0.0
    %2385 = vmatpush1.xpose.msra.mxu0 0.0
    %2386 = vmatprep.subr.mxu0 0.0
    %2387 = vmatpush1.xpose.msra.mxu0 0.0
    %2388 = vmatprep.subr.mxu0 0.0
    %2389 = vmatpush1.xpose.msra.mxu0 0.0
    %2390 = vmatprep.subr.mxu0 0.0
    %2391 = vmatpush1.xpose.msra.mxu0 0.0
    %2392 = vmatprep.mubr.f32.mxu0 0.0
    %2393 = vmatmul.mubr.f32.gmra.mrb[0].mxu0 %v1825
    %v2394 = vpop.f32.mrb[0].mxu0
    %v2395 = vadd.f32 %v2326, %v2394
    %v2396 = vpop.f32.mrb[0].mxu0
    %2397 = vmatprep.mubr.f32.mxu0 0.0
    %2398 = vmatmul.mubr.f32.gmra.mrb[0].mxu0 %v1829
    %v2399 = vpop.f32.mrb[0].mxu0
    %v2400 = vadd.f32 %v2327, %v2399
    %v2401 = vpop.f32.mrb[0].mxu0
    %2402 = vdwg.mxu0
    %v2403 = vadd.f32 %v2395, %v1914
    %v2404 = vadd.f32 %v2400, %v1914
    %v2405 = vsel %vm1918, %v2403, -inf
    %2406 = vmax.xlane.f32.xlu0 %v2405
    %v2407 = vpop.xlane.xlu0 %2406
    %v2408 = vsel %vm1918, %v2404, -inf
    %2409 = vmax.xlane.f32.xlu0 %v2408
    %v2410 = vpop.xlane.xlu0 %2409
    %v2411 = vsub.f32 %v2403, %v2407
    %v2412 = vsub.f32 %v2404, %v2410
    %v2413 = vmul.f32 %v2411, 1.442695
    %v2414 = vpow.pop %v2413
    %v2415 = vmul.f32 %v2412, 1.442695
    %v2416 = vpow.pop %v2415
    %v2417 = vsel %vm1918, %v2414, 0.0
    %2418 = vadd.xlane.f32.xlu0 %v2417
    %v2419 = vpop.xlane.xlu0 %2418
    %v2420 = vsel %vm1918, %v2416, 0.0
    %2421 = vadd.xlane.f32.xlu0 %v2420
    %v2422 = vpop.xlane.xlu0 %2421
    %v2423 = vrcp.pop %v2419
    %v2424 = vrcp.pop %v2422
    %v2425 = vmul.f32 %v2414, %v2423
    %v2426 = vmul.f32 %v2416, %v2424
    %v2427 = vpack.c.bf16 %v2426, %v2425
    %v2428 = vpack.c.bf16 %v1795, %v1779
    %v2430 = vsel %vm1918, %v2427, 0
    %2432 = vmatprep.subr.bf16.mxu0 0
    %2433 = vmatpush1.bf16.msra.mxu0 %v2428
    %2434 = vmatprep.subr.bf16.mxu0 0
    %2435 = vmatpush1.bf16.msra.mxu0 0
    %2436 = vmatprep.subr.bf16.mxu0 0
    %2437 = vmatpush1.bf16.msra.mxu0 0
    %2438 = vmatprep.subr.bf16.mxu0 0
    %2439 = vmatpush1.bf16.msra.mxu0 0
    %2440 = vmatprep.subr.bf16.mxu0 0
    %2441 = vmatpush1.bf16.msra.mxu0 0
    %2442 = vmatprep.subr.bf16.mxu0 0
    %2443 = vmatpush1.bf16.msra.mxu0 0
    %2444 = vmatprep.subr.bf16.mxu0 0
    %2445 = vmatpush1.bf16.msra.mxu0 0
    %2446 = vmatprep.subr.bf16.mxu0 0
    %2447 = vmatpush1.bf16.msra.mxu0 0
    %2448 = vmatprep.subr.bf16.mxu0 0
    %2449 = vmatpush1.bf16.msra.mxu0 0
    %2450 = vmatprep.subr.bf16.mxu0 0
    %2451 = vmatpush1.bf16.msra.mxu0 0
    %2452 = vmatprep.subr.bf16.mxu0 0
    %2453 = vmatpush1.bf16.msra.mxu0 0
    %2454 = vmatprep.subr.bf16.mxu0 0
    %2455 = vmatpush1.bf16.msra.mxu0 0
    %2456 = vmatprep.subr.bf16.mxu0 0
    %2457 = vmatpush1.bf16.msra.mxu0 0
    %2458 = vmatprep.subr.bf16.mxu0 0
    %2459 = vmatpush1.bf16.msra.mxu0 0
    %2460 = vmatprep.subr.bf16.mxu0 0
    %2461 = vmatpush1.bf16.msra.mxu0 0
    %2462 = vmatprep.subr.bf16.mxu0 0
    %2463 = vmatpush1.bf16.msra.mxu0 0
    %2464 = vmatprep.mubr.bf16.mxu0 0
    %2465 = vmatmul.mubr.bf16.gmra.mrb[0].mxu0 %v2430
    %v2466 = vpop.f32.mrb[0].mxu0
    %v2467 = vadd.f32 0.0, %v2466
    %v2468 = vpop.f32.mrb[0].mxu0
    %v2469 = vpop.f32.mrb[0].mxu0
    %v2470 = vadd.f32 0.0, %v2469
    %v2471 = vpop.f32.mrb[0].mxu0
    %2472 = vdwg.mxu0
    %v2473 = vxor.u32 %v1783, 2147483648
    %v2474 = vxor.u32 %v1799, 2147483648
    %v2475 = vmul.f32 %v2473, 1.442695
    %v2476 = vpow.pop %v2475
    %v2477 = vmul.f32 %v2474, 1.442695
    %v2478 = vpow.pop %v2477
    %v2479 = vadd.f32 %v2476, 1.0
    %v2480 = vadd.f32 %v2478, 1.0
    %v2481 = vrcp.pop %v2479
    %v2482 = vmul.f32 1.0, %v2481
    %v2483 = vrcp.pop %v2480
    %v2484 = vmul.f32 1.0, %v2483
    %v2485 = vmul.f32 %v2467, %v2482
    %v2486 = vmul.f32 %v2470, %v2484
    %v2487 = vpack.c.bf16 %v2000, %v1999
    %v2488 = vpack.c.bf16 %v2162, %v2161
    %v2489 = vpack.c.bf16 %v2324, %v2323
    %v2490 = vpack.c.bf16 %v2486, %v2485
    %v2491 = vld [vmem:[#allocation10] sm:$0xff]
    %v2492 = vld [vmem:[#allocation10 + $0x8] sm:$0xff]
    %v2493 = vld [vmem:[#allocation10 + $0x10] sm:$0xff]
    %v2494 = vld [vmem:[#allocation10 + $0x18] sm:$0xff]
    %v2495 = vld [vmem:[#allocation10 + $0x20] sm:$0xff]
    %v2496 = vld [vmem:[#allocation10 + $0x28] sm:$0xff]
    %v2497 = vld [vmem:[#allocation10 + $0x30] sm:$0xff]
    %v2498 = vld [vmem:[#allocation10 + $0x38] sm:$0xff]
    %v2499 = vld [vmem:[#allocation10 + $0x40] sm:$0xff]
    %v2500 = vld [vmem:[#allocation10 + $0x48] sm:$0xff]
    %v2501 = vld [vmem:[#allocation10 + $0x50] sm:$0xff]
    %v2502 = vld [vmem:[#allocation10 + $0x58] sm:$0xff]
    %v2503 = vld [vmem:[#allocation10 + $0x60] sm:$0xff]
    %v2504 = vld [vmem:[#allocation10 + $0x68] sm:$0xff]
    %v2505 = vld [vmem:[#allocation10 + $0x70] sm:$0xff]
    %v2506 = vld [vmem:[#allocation10 + $0x78] sm:$0xff]
    %v2507 = vld [vmem:[#allocation10 + $0x80] sm:$0xff]
    %v2508 = vld [vmem:[#allocation10 + $0x88] sm:$0xff]
    %v2509 = vld [vmem:[#allocation10 + $0x90] sm:$0xff]
    %v2510 = vld [vmem:[#allocation10 + $0x98] sm:$0xff]
    %v2511 = vld [vmem:[#allocation10 + $0xa0] sm:$0xff]
    %v2512 = vld [vmem:[#allocation10 + $0xa8] sm:$0xff]
    %v2513 = vld [vmem:[#allocation10 + $0xb0] sm:$0xff]
    %v2514 = vld [vmem:[#allocation10 + $0xb8] sm:$0xff]
    %v2515 = vld [vmem:[#allocation10 + $0xc0] sm:$0xff]
    %v2516 = vld [vmem:[#allocation10 + $0xc8] sm:$0xff]
    %v2517 = vld [vmem:[#allocation10 + $0xd0] sm:$0xff]
    %v2518 = vld [vmem:[#allocation10 + $0xd8] sm:$0xff]
    %v2519 = vld [vmem:[#allocation10 + $0xe0] sm:$0xff]
    %v2520 = vld [vmem:[#allocation10 + $0xe8] sm:$0xff]
    %v2521 = vld [vmem:[#allocation10 + $0xf0] sm:$0xff]
    %v2522 = vld [vmem:[#allocation10 + $0xf8] sm:$0xff]
    %v2523 = vld [vmem:[#allocation10 + $0x100] sm:$0xff]
    %v2524 = vld [vmem:[#allocation10 + $0x108] sm:$0xff]
    %v2525 = vld [vmem:[#allocation10 + $0x110] sm:$0xff]
    %v2526 = vld [vmem:[#allocation10 + $0x118] sm:$0xff]
    %v2527 = vld [vmem:[#allocation10 + $0x120] sm:$0xff]
    %v2528 = vld [vmem:[#allocation10 + $0x128] sm:$0xff]
    %v2529 = vld [vmem:[#allocation10 + $0x130] sm:$0xff]
    %v2530 = vld [vmem:[#allocation10 + $0x138] sm:$0xff]
    %v2531 = vld [vmem:[#allocation10 + $0x140] sm:$0xff]
    %v2532 = vld [vmem:[#allocation10 + $0x148] sm:$0xff]
    %v2533 = vld [vmem:[#allocation10 + $0x150] sm:$0xff]
    %v2534 = vld [vmem:[#allocation10 + $0x158] sm:$0xff]
    %v2535 = vld [vmem:[#allocation10 + $0x160] sm:$0xff]
    %v2536 = vld [vmem:[#allocation10 + $0x168] sm:$0xff]
    %v2537 = vld [vmem:[#allocation10 + $0x170] sm:$0xff]
    %v2538 = vld [vmem:[#allocation10 + $0x178] sm:$0xff]
    %v2539 = vld [vmem:[#allocation10 + $0x180] sm:$0xff]
    %v2540 = vld [vmem:[#allocation10 + $0x188] sm:$0xff]
    %v2541 = vld [vmem:[#allocation10 + $0x190] sm:$0xff]
    %v2542 = vld [vmem:[#allocation10 + $0x198] sm:$0xff]
    %v2543 = vld [vmem:[#allocation10 + $0x1a0] sm:$0xff]
    %v2544 = vld [vmem:[#allocation10 + $0x1a8] sm:$0xff]
    %v2545 = vld [vmem:[#allocation10 + $0x1b0] sm:$0xff]
    %v2546 = vld [vmem:[#allocation10 + $0x1b8] sm:$0xff]
    %v2547 = vld [vmem:[#allocation10 + $0x1c0] sm:$0xff]
    %v2548 = vld [vmem:[#allocation10 + $0x1c8] sm:$0xff]
    %v2549 = vld [vmem:[#allocation10 + $0x1d0] sm:$0xff]
    %v2550 = vld [vmem:[#allocation10 + $0x1d8] sm:$0xff]
    %v2551 = vld [vmem:[#allocation10 + $0x1e0] sm:$0xff]
    %v2552 = vld [vmem:[#allocation10 + $0x1e8] sm:$0xff]
    %v2553 = vld [vmem:[#allocation10 + $0x1f0] sm:$0xff]
    %v2554 = vld [vmem:[#allocation10 + $0x1f8] sm:$0xff]
    %v2555 = vunpack.c.l.s8.bf16 %v2491
    %v2556 = vunpack.c.l.s8.bf16 %v2492
    %v2557 = vunpack.c.l.s8.bf16 %v2493
    %v2558 = vunpack.c.l.s8.bf16 %v2494
    %v2559 = vunpack.c.h.s8.bf16 %v2491
    %v2560 = vunpack.c.h.s8.bf16 %v2492
    %v2561 = vunpack.c.h.s8.bf16 %v2493
    %v2562 = vunpack.c.h.s8.bf16 %v2494
    %v2563 = vunpack.c.l.s8.bf16 %v2495
    %v2564 = vunpack.c.l.s8.bf16 %v2496
    %v2565 = vunpack.c.l.s8.bf16 %v2497
    %v2566 = vunpack.c.l.s8.bf16 %v2498
    %v2567 = vunpack.c.h.s8.bf16 %v2495
    %v2568 = vunpack.c.h.s8.bf16 %v2496
    %v2569 = vunpack.c.h.s8.bf16 %v2497
    %v2570 = vunpack.c.h.s8.bf16 %v2498
    %v2571 = vunpack.c.l.s8.bf16 %v2499
    %v2572 = vunpack.c.l.s8.bf16 %v2500
    %v2573 = vunpack.c.l.s8.bf16 %v2501
    %v2574 = vunpack.c.l.s8.bf16 %v2502
    %v2575 = vunpack.c.h.s8.bf16 %v2499
    %v2576 = vunpack.c.h.s8.bf16 %v2500
    %v2577 = vunpack.c.h.s8.bf16 %v2501
    %v2578 = vunpack.c.h.s8.bf16 %v2502
    %v2579 = vunpack.c.l.s8.bf16 %v2503
    %v2580 = vunpack.c.l.s8.bf16 %v2504
    %v2581 = vunpack.c.l.s8.bf16 %v2505
    %v2582 = vunpack.c.l.s8.bf16 %v2506
    %v2583 = vunpack.c.h.s8.bf16 %v2503
    %v2584 = vunpack.c.h.s8.bf16 %v2504
    %v2585 = vunpack.c.h.s8.bf16 %v2505
    %v2586 = vunpack.c.h.s8.bf16 %v2506
    %v2587 = vunpack.c.l.s8.bf16 %v2507
    %v2588 = vunpack.c.l.s8.bf16 %v2508
    %v2589 = vunpack.c.l.s8.bf16 %v2509
    %v2590 = vunpack.c.l.s8.bf16 %v2510
    %v2591 = vunpack.c.h.s8.bf16 %v2507
    %v2592 = vunpack.c.h.s8.bf16 %v2508
    %v2593 = vunpack.c.h.s8.bf16 %v2509
    %v2594 = vunpack.c.h.s8.bf16 %v2510
    %v2595 = vunpack.c.l.s8.bf16 %v2511
    %v2596 = vunpack.c.l.s8.bf16 %v2512
    %v2597 = vunpack.c.l.s8.bf16 %v2513
    %v2598 = vunpack.c.l.s8.bf16 %v2514
    %v2599 = vunpack.c.h.s8.bf16 %v2511
    %v2600 = vunpack.c.h.s8.bf16 %v2512
    %v2601 = vunpack.c.h.s8.bf16 %v2513
    %v2602 = vunpack.c.h.s8.bf16 %v2514
    %v2603 = vunpack.c.l.s8.bf16 %v2515
    %v2604 = vunpack.c.l.s8.bf16 %v2516
    %v2605 = vunpack.c.l.s8.bf16 %v2517
    %v2606 = vunpack.c.l.s8.bf16 %v2518
    %v2607 = vunpack.c.h.s8.bf16 %v2515
    %v2608 = vunpack.c.h.s8.bf16 %v2516
    %v2609 = vunpack.c.h.s8.bf16 %v2517
    %v2610 = vunpack.c.h.s8.bf16 %v2518
    %v2611 = vunpack.c.l.s8.bf16 %v2519
    %v2612 = vunpack.c.l.s8.bf16 %v2520
    %v2613 = vunpack.c.l.s8.bf16 %v2521
    %v2614 = vunpack.c.l.s8.bf16 %v2522
    %v2615 = vunpack.c.h.s8.bf16 %v2519
    %v2616 = vunpack.c.h.s8.bf16 %v2520
    %v2617 = vunpack.c.h.s8.bf16 %v2521
    %v2618 = vunpack.c.h.s8.bf16 %v2522
    %v2619 = vunpack.c.l.s8.bf16 %v2523
    %v2620 = vunpack.c.l.s8.bf16 %v2524
    %v2621 = vunpack.c.l.s8.bf16 %v2525
    %v2622 = vunpack.c.l.s8.bf16 %v2526
    %v2623 = vunpack.c.h.s8.bf16 %v2523
    %v2624 = vunpack.c.h.s8.bf16 %v2524
    %v2625 = vunpack.c.h.s8.bf16 %v2525
    %v2626 = vunpack.c.h.s8.bf16 %v2526
    %v2627 = vunpack.c.l.s8.bf16 %v2527
    %v2628 = vunpack.c.l.s8.bf16 %v2528
    %v2629 = vunpack.c.l.s8.bf16 %v2529
    %v2630 = vunpack.c.l.s8.bf16 %v2530
    %v2631 = vunpack.c.h.s8.bf16 %v2527
    %v2632 = vunpack.c.h.s8.bf16 %v2528
    %v2633 = vunpack.c.h.s8.bf16 %v2529
    %v2634 = vunpack.c.h.s8.bf16 %v2530
    %v2635 = vunpack.c.l.s8.bf16 %v2531
    %v2636 = vunpack.c.l.s8.bf16 %v2532
    %v2637 = vunpack.c.l.s8.bf16 %v2533
    %v2638 = vunpack.c.l.s8.bf16 %v2534
    %v2639 = vunpack.c.h.s8.bf16 %v2531
    %v2640 = vunpack.c.h.s8.bf16 %v2532
    %v2641 = vunpack.c.h.s8.bf16 %v2533
    %v2642 = vunpack.c.h.s8.bf16 %v2534
    %v2643 = vunpack.c.l.s8.bf16 %v2535
    %v2644 = vunpack.c.l.s8.bf16 %v2536
    %v2645 = vunpack.c.l.s8.bf16 %v2537
    %v2646 = vunpack.c.l.s8.bf16 %v2538
    %v2647 = vunpack.c.h.s8.bf16 %v2535
    %v2648 = vunpack.c.h.s8.bf16 %v2536
    %v2649 = vunpack.c.h.s8.bf16 %v2537
    %v2650 = vunpack.c.h.s8.bf16 %v2538
    %v2651 = vunpack.c.l.s8.bf16 %v2539
    %v2652 = vunpack.c.l.s8.bf16 %v2540
    %v2653 = vunpack.c.l.s8.bf16 %v2541
    %v2654 = vunpack.c.l.s8.bf16 %v2542
    %v2655 = vunpack.c.h.s8.bf16 %v2539
    %v2656 = vunpack.c.h.s8.bf16 %v2540
    %v2657 = vunpack.c.h.s8.bf16 %v2541
    %v2658 = vunpack.c.h.s8.bf16 %v2542
    %v2659 = vunpack.c.l.s8.bf16 %v2543
    %v2660 = vunpack.c.l.s8.bf16 %v2544
    %v2661 = vunpack.c.l.s8.bf16 %v2545
    %v2662 = vunpack.c.l.s8.bf16 %v2546
    %v2663 = vunpack.c.h.s8.bf16 %v2543
    %v2664 = vunpack.c.h.s8.bf16 %v2544
    %v2665 = vunpack.c.h.s8.bf16 %v2545
    %v2666 = vunpack.c.h.s8.bf16 %v2546
    %v2667 = vunpack.c.l.s8.bf16 %v2547
    %v2668 = vunpack.c.l.s8.bf16 %v2548
    %v2669 = vunpack.c.l.s8.bf16 %v2549
    %v2670 = vunpack.c.l.s8.bf16 %v2550
    %v2671 = vunpack.c.h.s8.bf16 %v2547
    %v2672 = vunpack.c.h.s8.bf16 %v2548
    %v2673 = vunpack.c.h.s8.bf16 %v2549
    %v2674 = vunpack.c.h.s8.bf16 %v2550
    %v2675 = vunpack.c.l.s8.bf16 %v2551
    %v2676 = vunpack.c.l.s8.bf16 %v2552
    %v2677 = vunpack.c.l.s8.bf16 %v2553
    %v2678 = vunpack.c.l.s8.bf16 %v2554
    %v2679 = vunpack.c.h.s8.bf16 %v2551
    %v2680 = vunpack.c.h.s8.bf16 %v2552
    %v2681 = vunpack.c.h.s8.bf16 %v2553
    %v2682 = vunpack.c.h.s8.bf16 %v2554
    %2683 = vmatprep.subr.bf16.mxu0 %v2556
    %2684 = vmatpush1.bf16.msra.mxu0 %v2555
    %2685 = vmatprep.subr.bf16.mxu0 %v2560
    %2686 = vmatpush1.bf16.msra.mxu0 %v2559
    %2687 = vmatprep.subr.bf16.mxu0 %v2564
    %2688 = vmatpush1.bf16.msra.mxu0 %v2563
    %2689 = vmatprep.subr.bf16.mxu0 %v2568
    %2690 = vmatpush1.bf16.msra.mxu0 %v2567
    %2691 = vmatprep.subr.bf16.mxu0 %v2572
    %2692 = vmatpush1.bf16.msra.mxu0 %v2571
    %2693 = vmatprep.subr.bf16.mxu0 %v2576
    %2694 = vmatpush1.bf16.msra.mxu0 %v2575
    %2695 = vmatprep.subr.bf16.mxu0 %v2580
    %2696 = vmatpush1.bf16.msra.mxu0 %v2579
    %2697 = vmatprep.subr.bf16.mxu0 %v2584
    %2698 = vmatpush1.bf16.msra.mxu0 %v2583
    %2699 = vmatprep.subr.bf16.mxu0 %v2588
    %2700 = vmatpush1.bf16.msra.mxu0 %v2587
    %2701 = vmatprep.subr.bf16.mxu0 %v2592
    %2702 = vmatpush1.bf16.msra.mxu0 %v2591
    %2703 = vmatprep.subr.bf16.mxu0 %v2596
    %2704 = vmatpush1.bf16.msra.mxu0 %v2595
    %2705 = vmatprep.subr.bf16.mxu0 %v2600
    %2706 = vmatpush1.bf16.msra.mxu0 %v2599
    %2707 = vmatprep.subr.bf16.mxu0 %v2604
    %2708 = vmatpush1.bf16.msra.mxu0 %v2603
    %2709 = vmatprep.subr.bf16.mxu0 %v2608
    %2710 = vmatpush1.bf16.msra.mxu0 %v2607
    %2711 = vmatprep.subr.bf16.mxu0 %v2612
    %2712 = vmatpush1.bf16.msra.mxu0 %v2611
    %2713 = vmatprep.subr.bf16.mxu0 %v2616
    %2714 = vmatpush1.bf16.msra.mxu0 %v2615
    %2715 = vmatprep.mubr.bf16.mxu0 %v2488
    %2716 = vmatmul.mubr.bf16.gmra.mrb[0].mxu0 %v2487
    %v2717 = vpop.f32.mrb[0].mxu0
    %v2718 = vadd.f32 0.0, %v2717
    %v2719 = vpop.f32.mrb[0].mxu0
    %v2720 = vadd.f32 0.0, %v2719
    %v2721 = vpop.f32.mrb[0].mxu0
    %v2722 = vadd.f32 0.0, %v2721
    %v2723 = vpop.f32.mrb[0].mxu0
    %v2724 = vadd.f32 0.0, %v2723
    %2725 = vdwg.mxu0
    %2726 = vmatprep.subr.bf16.mxu0 %v2620
    %2727 = vmatpush1.bf16.msra.mxu0 %v2619
    %2728 = vmatprep.subr.bf16.mxu0 %v2624
    %2729 = vmatpush1.bf16.msra.mxu0 %v2623
    %2730 = vmatprep.subr.bf16.mxu0 %v2628
    %2731 = vmatpush1.bf16.msra.mxu0 %v2627
    %2732 = vmatprep.subr.bf16.mxu0 %v2632
    %2733 = vmatpush1.bf16.msra.mxu0 %v2631
    %2734 = vmatprep.subr.bf16.mxu0 %v2636
    %2735 = vmatpush1.bf16.msra.mxu0 %v2635
    %2736 = vmatprep.subr.bf16.mxu0 %v2640
    %2737 = vmatpush1.bf16.msra.mxu0 %v2639
    %2738 = vmatprep.subr.bf16.mxu0 %v2644
    %2739 = vmatpush1.bf16.msra.mxu0 %v2643
    %2740 = vmatprep.subr.bf16.mxu0 %v2648
    %2741 = vmatpush1.bf16.msra.mxu0 %v2647
    %2742 = vmatprep.subr.bf16.mxu0 %v2652
    %2743 = vmatpush1.bf16.msra.mxu0 %v2651
    %2744 = vmatprep.subr.bf16.mxu0 %v2656
    %2745 = vmatpush1.bf16.msra.mxu0 %v2655
    %2746 = vmatprep.subr.bf16.mxu0 %v2660
    %2747 = vmatpush1.bf16.msra.mxu0 %v2659
    %2748 = vmatprep.subr.bf16.mxu0 %v2664
    %2749 = vmatpush1.bf16.msra.mxu0 %v2663
    %2750 = vmatprep.subr.bf16.mxu0 %v2668
    %2751 = vmatpush1.bf16.msra.mxu0 %v2667
    %2752 = vmatprep.subr.bf16.mxu0 %v2672
    %2753 = vmatpush1.bf16.msra.mxu0 %v2671
    %2754 = vmatprep.subr.bf16.mxu0 %v2676
    %2755 = vmatpush1.bf16.msra.mxu0 %v2675
    %2756 = vmatprep.subr.bf16.mxu0 %v2680
    %2757 = vmatpush1.bf16.msra.mxu0 %v2679
    %2758 = vmatprep.mubr.bf16.mxu0 %v2490
    %2759 = vmatmul.mubr.bf16.gmra.mrb[0].mxu0 %v2489
    %v2760 = vpop.f32.mrb[0].mxu0
    %v2761 = vadd.f32 %v2718, %v2760
    %v2762 = vpop.f32.mrb[0].mxu0
    %v2763 = vadd.f32 %v2720, %v2762
    %v2764 = vpop.f32.mrb[0].mxu0
    %v2765 = vadd.f32 %v2722, %v2764
    %v2766 = vpop.f32.mrb[0].mxu0
    %v2767 = vadd.f32 %v2724, %v2766
    %2768 = vdwg.mxu0
    %2769 = vmatprep.subr.bf16.mxu0 %v2558
    %2770 = vmatpush1.bf16.msra.mxu0 %v2557
    %2771 = vmatprep.subr.bf16.mxu0 %v2562
    %2772 = vmatpush1.bf16.msra.mxu0 %v2561
    %2773 = vmatprep.subr.bf16.mxu0 %v2566
    %2774 = vmatpush1.bf16.msra.mxu0 %v2565
    %2775 = vmatprep.subr.bf16.mxu0 %v2570
    %2776 = vmatpush1.bf16.msra.mxu0 %v2569
    %2777 = vmatprep.subr.bf16.mxu0 %v2574
    %2778 = vmatpush1.bf16.msra.mxu0 %v2573
    %2779 = vmatprep.subr.bf16.mxu0 %v2578
    %2780 = vmatpush1.bf16.msra.mxu0 %v2577
    %2781 = vmatprep.subr.bf16.mxu0 %v2582
    %2782 = vmatpush1.bf16.msra.mxu0 %v2581
    %2783 = vmatprep.subr.bf16.mxu0 %v2586
    %2784 = vmatpush1.bf16.msra.mxu0 %v2585
    %2785 = vmatprep.subr.bf16.mxu0 %v2590
    %2786 = vmatpush1.bf16.msra.mxu0 %v2589
    %2787 = vmatprep.subr.bf16.mxu0 %v2594
    %2788 = vmatpush1.bf16.msra.mxu0 %v2593
    %2789 = vmatprep.subr.bf16.mxu0 %v2598
    %2790 = vmatpush1.bf16.msra.mxu0 %v2597
    %2791 = vmatprep.subr.bf16.mxu0 %v2602
    %2792 = vmatpush1.bf16.msra.mxu0 %v2601
    %2793 = vmatprep.subr.bf16.mxu0 %v2606
    %2794 = vmatpush1.bf16.msra.mxu0 %v2605
    %2795 = vmatprep.subr.bf16.mxu0 %v2610
    %2796 = vmatpush1.bf16.msra.mxu0 %v2609
    %2797 = vmatprep.subr.bf16.mxu0 %v2614
    %2798 = vmatpush1.bf16.msra.mxu0 %v2613
    %2799 = vmatprep.subr.bf16.mxu0 %v2618
    %2800 = vmatpush1.bf16.msra.mxu0 %v2617
    %2801 = vmatprep.mubr.bf16.mxu0 %v2488
    %2802 = vmatmul.mubr.bf16.gmra.mrb[0].mxu0 %v2487
    %v2803 = vpop.f32.mrb[0].mxu0
    %v2804 = vadd.f32 0.0, %v2803
    %v2805 = vpop.f32.mrb[0].mxu0
    %v2806 = vadd.f32 0.0, %v2805
    %v2807 = vpop.f32.mrb[0].mxu0
    %v2808 = vadd.f32 0.0, %v2807
    %v2809 = vpop.f32.mrb[0].mxu0
    %v2810 = vadd.f32 0.0, %v2809
    %2811 = vdwg.mxu0
    %2812 = vmatprep.subr.bf16.mxu0 %v2622
    %2813 = vmatpush1.bf16.msra.mxu0 %v2621
    %2814 = vmatprep.subr.bf16.mxu0 %v2626
    %2815 = vmatpush1.bf16.msra.mxu0 %v2625
    %2816 = vmatprep.subr.bf16.mxu0 %v2630
    %2817 = vmatpush1.bf16.msra.mxu0 %v2629
    %2818 = vmatprep.subr.bf16.mxu0 %v2634
    %2819 = vmatpush1.bf16.msra.mxu0 %v2633
    %2820 = vmatprep.subr.bf16.mxu0 %v2638
    %2821 = vmatpush1.bf16.msra.mxu0 %v2637
    %2822 = vmatprep.subr.bf16.mxu0 %v2642
    %2823 = vmatpush1.bf16.msra.mxu0 %v2641
    %2824 = vmatprep.subr.bf16.mxu0 %v2646
    %2825 = vmatpush1.bf16.msra.mxu0 %v2645
    %2826 = vmatprep.subr.bf16.mxu0 %v2650
    %2827 = vmatpush1.bf16.msra.mxu0 %v2649
    %2828 = vmatprep.subr.bf16.mxu0 %v2654
    %2829 = vmatpush1.bf16.msra.mxu0 %v2653
    %2830 = vmatprep.subr.bf16.mxu0 %v2658
    %2831 = vmatpush1.bf16.msra.mxu0 %v2657
    %2832 = vmatprep.subr.bf16.mxu0 %v2662
    %2833 = vmatpush1.bf16.msra.mxu0 %v2661
    %2834 = vmatprep.subr.bf16.mxu0 %v2666
    %2835 = vmatpush1.bf16.msra.mxu0 %v2665
    %2836 = vmatprep.subr.bf16.mxu0 %v2670
    %2837 = vmatpush1.bf16.msra.mxu0 %v2669
    %2838 = vmatprep.subr.bf16.mxu0 %v2674
    %2839 = vmatpush1.bf16.msra.mxu0 %v2673
    %2840 = vmatprep.subr.bf16.mxu0 %v2678
    %2841 = vmatpush1.bf16.msra.mxu0 %v2677
    %2842 = vmatprep.subr.bf16.mxu0 %v2682
    %2843 = vmatpush1.bf16.msra.mxu0 %v2681
    %2844 = vmatprep.mubr.bf16.mxu0 %v2490
    %2845 = vmatmul.mubr.bf16.gmra.mrb[0].mxu0 %v2489
    %v2846 = vpop.f32.mrb[0].mxu0
    %v2847 = vadd.f32 %v2804, %v2846
    %v2848 = vpop.f32.mrb[0].mxu0
    %v2849 = vadd.f32 %v2806, %v2848
    %v2850 = vpop.f32.mrb[0].mxu0
    %v2851 = vadd.f32 %v2808, %v2850
    %v2852 = vpop.f32.mrb[0].mxu0
    %v2853 = vadd.f32 %v2810, %v2852
    %2854 = vdwg.mxu0
    %v2855 = vld [vmem:[%s9] sm:$0xf]
    %v2857 = vlaneseq
    %v2858 = vshrl.u32 %v2857, 7
    %v2859 = vsub.s32 0, %v2858
    %v2860 = vrot.slane %v2855, %v2859
    %v2861 = vlaneseq
    %v2862 = vshrl.u32 %v2861, 7
    %v2863 = vsub.s32 1, %v2862
    %v2864 = vrot.slane %v2855, %v2863
    %v2865 = vlaneseq
    %v2866 = vshrl.u32 %v2865, 7
    %v2867 = vsub.s32 2, %v2866
    %v2868 = vrot.slane %v2855, %v2867
    %v2869 = vlaneseq
    %v2870 = vshrl.u32 %v2869, 7
    %v2871 = vsub.s32 3, %v2870
    %v2872 = vrot.slane %v2855, %v2871
    %v2877 = vmul.f32 %v2761, %v2860
    %v2878 = vmul.f32 %v2763, %v2864
    %v2879 = vmul.f32 %v2847, %v2868
    %v2880 = vmul.f32 %v2849, %v2872
    %v2881 = vmul.f32 %v2765, %v2860
    %v2882 = vmul.f32 %v2767, %v2864
    %v2883 = vmul.f32 %v2851, %v2868
    %v2884 = vmul.f32 %v2853, %v2872
    %2885 = vst [vmem:[#allocation11] sm:$0xff] %v2877
    %2886 = vst [vmem:[#allocation11 + $0x8] sm:$0xff] %v2878
    %2887 = vst [vmem:[#allocation11 + $0x10] sm:$0xff] %v2879
    %2888 = vst [vmem:[#allocation11 + $0x18] sm:$0xff] %v2880
    %2889 = vst [vmem:[#allocation11 + $0x20] sm:$0xff] %v2881
    %2890 = vst [vmem:[#allocation11 + $0x28] sm:$0xff] %v2882
    %2891 = vst [vmem:[#allocation11 + $0x30] sm:$0xff] %v2883
    %2892 = vst [vmem:[#allocation11 + $0x38] sm:$0xff] %v2884
    // Predicated region
    $region62: #{tpu_custom_call.1} parent=1 // pred_check
      _
    $region63: #{tpu_custom_call.1} parent=1 // pred_check_branch
      %2894 = sbr.rel (0) target = $region65
    $region64: #{tpu_custom_call.1} parent=1 // pred_region
      %s2896 = ssub.s32 1024, 1024
      %2897 = vsyncadd [#allocation4], %s2896
      %s2898 = sshll.u32 [#allocation11], 4
      %s2899 = int_to_ptr.vmem [resolvable:$true] %s2898
      %2904 = dma.vmem_to_hbm [thread:$0]  %s2899, 1024, %s10, [#allocation4], 512, 512, 32
    $region65: #{tpu_custom_call.1} parent=1 // pred_fallthru
      _
    // Predicated region
    $region66: #{tpu_custom_call.1} parent=1 // pred_check
      _
    $region67: #{tpu_custom_call.1} parent=1 // pred_check_branch
      %2906 = sbr.rel (0) target = $region69
    $region68: #{tpu_custom_call.1} parent=1 // pred_region
      %2907 = dma.done [#allocation4], 1024
    $region69: #{tpu_custom_call.1} parent=1 // pred_fallthru
      _
    %2908 = vsyncpa [#allocation3], 1
    %2909 = vsyncpa [#allocation6], 1
    %2910 = vsyncpa [#allocation9], 1
    %2911 = vsyncpa [#allocation4], 1

</llo_original>
